<compile_context>
chip_gen: v7x
topology: tpu7x:2x2x1
jax: 0.10.0
libtpu: 0.0.40
codegen_flags: <defaults>
</compile_context>

<pallas_src>
import math
import functools

import numpy as np
import jax
import jax.numpy as jnp
from jax.experimental import pallas as pl
from jax.experimental.pallas import tpu as pltpu

# ----------------------------- configuration -----------------------------
VOCAB = 64
VOCAB_PAD = 128      # lane-dense padded logits width (sliced back to VOCAB in wrapper)
DIM = 32
D2 = 2 * DIM         # [real | imag] stacked along lanes
HEADS = 4            # DIM % HEADS == 0 -> HEAD_DIM = 8
HEAD_DIM = DIM // HEADS
SCALE = 1.0 / math.sqrt(HEAD_DIM)
DEPTH = 6            # hierarchical depth = DEPTH // 3 = 2 (word, phrase), 1 sentence layer
N_WORD = DEPTH // 3
N_PHRASE = DEPTH // 3
N_SENT = max(1, (DEPTH // 3) // 2)
N_LAYERS = N_WORD + N_PHRASE + N_SENT        # layer order: [word..., phrase..., sentence...]
MEM_SIZE = 32        # must equal DIM for the reference's `scores / |x|` broadcast
BATCH = 2
SEQ = 8              # divisible by 2 (kernel-2 pooling)
EPS = 1e-5
NEG = -1e9

_VMEM = pl.BlockSpec(memory_space=pltpu.MemorySpace.VMEM)


# ----------------------------- fused Pallas kernel -----------------------------
def _fused_kernel(batch, seq,
                  tok_ref, pe_ref,
                  ng_ref, nb_ref, hg_ref, hb_ref,
                  emb_ref,
                  qkvw_ref, qkvb_ref, ow_ref, ob_ref,
                  projw_ref, projb_ref,
                  mavg_ref, pool_ref, up_ref,
                  hmw_ref, hmp_ref, biasw_ref, biasp_ref, bsw_ref, bsp_ref,
                  memsc_ref, memcat_ref, pair_ref, readw_ref, readb_ref,
                  collw_ref, collb_ref,
                  out_ref):
    bs = batch * seq
    ng, nb = ng_ref[...], nb_ref[...]
    hg, hb = hg_ref[...], hb_ref[...]
    mavg = mavg_ref[...]                       # (2D, 2D) bf16 block-diag per-half averaging

    def bf(x):
        return x.astype(jnp.bfloat16)

    def layernorm(x, g, b):
        # Segmented (real/imag) LayerNorm: per-half mean / variance computed with one
        # block-diagonal averaging matmul each (keeps statistics separate, no lane slices).
        mean = jnp.dot(bf(x), mavg, preferred_element_type=jnp.float32)
        xc = x - mean
        var = jnp.dot(bf(xc * xc), mavg, preferred_element_type=jnp.float32)
        return xc * jax.lax.rsqrt(var + EPS) * g + b

    dn = (((1,), (1,)), ((), ()))              # contract last dims (A @ B^T without .T)

    def attention(x, l, hmask, bias, bsum):
        # x: (bsl, 2D), lanes = [real | imag].  5 MXU pushes, no per-head lane slicing.
        qkv = jnp.dot(bf(x), qkvw_ref[l], preferred_element_type=jnp.float32) + qkvb_ref[l]
        q = qkv[:, :D2]                        # offset 0   (free)
        k = qkv[:, D2:2 * D2]                  # offset 64  (single relayout per layer)
        v = qkv[:, 2 * D2:]                    # offset 128 (vreg aligned, free)
        # Expand K/V on a head-major row axis; hmask zeroes every other head's lanes so a
        # single matmul produces all per-head scores / PV outputs side by side.
        k_exp = bf(jnp.concatenate([k] * HEADS, axis=0) * hmask)
        v_exp = bf(jnp.concatenate([v] * HEADS, axis=0) * hmask)
        # Re(q . conj(k)) = q_r.k_r + q_i.k_i : one contraction over 2*HEAD_DIM lanes.
        s = jax.lax.dot_general(bf(q), k_exp, dn,
                                preferred_element_type=jnp.float32) * SCALE + bias
        # No row-max subtraction: scores are O(1); masked entries (-1e9) underflow to 0.
        p = jnp.exp(s)
        denom = jnp.dot(bf(p), bsum, preferred_element_type=jnp.float32)  # per-head block sums
        p = p * pl.reciprocal(denom, approx=True)
        o = jnp.dot(bf(p), v_exp, preferred_element_type=jnp.float32)     # (bsl, 2D)
        return jnp.dot(bf(o), ow_ref[l], preferred_element_type=jnp.float32) + ob_ref[l]

    # ---- embedding (one-hot gather on the MXU) + positional encoding + initial LN ----
    onehot = (tok_ref[...] ==
              jax.lax.broadcasted_iota(jnp.int32, (bs, VOCAB), 1)).astype(jnp.float32)
    x = jnp.dot(bf(onehot), emb_ref[...], preferred_element_type=jnp.float32) + pe_ref[...]
    x = layernorm(x, ng, nb)

    hm_w, bias_w, bs_w = hmw_ref[...], biasw_ref[...], bsw_ref[...]
    hm_p, bias_p, bs_p = hmp_ref[...], biasp_ref[...], bsp_ref[...]

    # ----- word level -----
    w = x
    for l in range(N_WORD):
        w = w + attention(layernorm(w, hg, hb), l, hm_w, bias_w, bs_w)

    pool = pool_ref[...]
    up = up_ref[...]

    # ----- phrase level -----
    p_act = jnp.dot(pool, bf(w), preferred_element_type=jnp.float32)
    for l in range(N_WORD, N_WORD + N_PHRASE):
        p_act = p_act + attention(layernorm(p_act, hg, hb), l, hm_p, bias_p, bs_p)
    up_p = jnp.dot(bf(jnp.dot(up, bf(p_act), preferred_element_type=jnp.float32)),
                   projw_ref[0], preferred_element_type=jnp.float32) + projb_ref[0]
    combined = w + up_p

    # ----- sentence level -----
    st = jnp.dot(pool, bf(combined), preferred_element_type=jnp.float32)
    for l in range(N_WORD + N_PHRASE, N_LAYERS):
        st = st + attention(layernorm(st, hg, hb), l, hm_p, bias_p, bs_p)
    up_s = jnp.dot(bf(jnp.dot(up, bf(st), preferred_element_type=jnp.float32)),
                   projw_ref[1], preferred_element_type=jnp.float32) + projb_ref[1]
    h = layernorm(combined + up_s, hg, hb)

    # ----- memory read + residual -----
    # TODO(synk): elementwise score/|x| pairing inherited from the (broken) reference;
    # only shape-valid because MEM_SIZE == DIM.
    scores = jnp.dot(bf(h), memsc_ref[...], preferred_element_type=jnp.float32)   # h_r @ mem_r^T
    dens = jnp.dot(bf(h * h), pair_ref[...], preferred_element_type=jnp.float32)  # h_r^2 + h_i^2
    scores = scores * jax.lax.rsqrt(dens + 1e-8)      # ~ scores / (|x| + 1e-8), on the EUP
    scores = scores - jnp.max(scores, axis=-1, keepdims=True)   # keep exact max-sub here
    wts = jnp.exp(scores)
    wts = wts * pl.reciprocal(jnp.sum(wts, axis=-1, keepdims=True), approx=True)
    read = jnp.dot(bf(wts), memcat_ref[...], preferred_element_type=jnp.float32)  # [c_r | c_i]
    read = jnp.dot(bf(read), readw_ref[...], preferred_element_type=jnp.float32) + readb_ref[...]
    h = layernorm(h + read, ng, nb)

    # ----- collapse: density -> lane-dense padded vocab logits -----
    logits = jnp.dot(bf(h * h), collw_ref[...], preferred_element_type=jnp.float32) + collb_ref[...]
    out_ref[...] = jnp.maximum(logits, 0.0) + 1e-10


# ----------------------------- constant matrices -----------------------------
def _const_mats(batch, seq):
    d = DIM
    # block-diagonal per-half averaging matrix for segmented LayerNorm
    mavg = np.kron(np.eye(2, dtype=np.float32), np.full((d, d), 1.0 / d, np.float32))
    # avg-pool(k=2) / repeat_interleave(2) over the (batch-major) row axis
    half = seq // 2
    p1 = np.zeros((half, seq), np.float32)
    p1[np.arange(half), 2 * np.arange(half)] = 0.5
    p1[np.arange(half), 2 * np.arange(half) + 1] = 0.5
    u1 = np.zeros((seq, half), np.float32)
    u1[np.arange(seq), np.arange(seq) // 2] = 1.0
    eye_b = np.eye(batch, dtype=np.float32)
    pool = np.kron(eye_b, p1)
    up = np.kron(eye_b, u1)
    # pair matrix: column j of (h*h) @ pair = h[:, j]^2 + h[:, D+j]^2  (density, no slicing)
    pair = np.concatenate([np.eye(d, dtype=np.float32), np.eye(d, dtype=np.float32)], axis=0)

    def level(s_len):
        bsl = batch * s_len
        hb_rows = HEADS * bsl
        rows = np.arange(hb_rows)
        cols = np.arange(D2)
        # head-column selector for the expanded K/V rows
        hmask = (rows[:, None] // bsl == (cols[None, :] % d) // HEAD_DIM).astype(np.float32)
        r = np.arange(bsl)
        j = np.arange(hb_rows)
        # additive batch block-diagonal mask bias (0 / -1e9), per head block
        bias = np.where(r[:, None] // s_len == (j[None, :] % bsl) // s_len,
                        0.0, NEG).astype(np.float32)
        # per-head-block ones matrix (softmax denominator sum + broadcast in one matmul)
        bsum = (j[:, None] // bsl == j[None, :] // bsl).astype(np.float32)
        return hmask, bias, bsum

    hm_w, bias_w, bs_w = level(seq)
    hm_p, bias_p, bs_p = level(seq // 2)
    return dict(mavg=mavg, pool=pool, up=up, pair=pair,
                hm_w=hm_w, bias_w=bias_w, bs_w=bs_w,
                hm_p=hm_p, bias_p=bias_p, bs_p=bs_p)


# ----------------------------- parameter init / packing -----------------------------
def _init_linear(key, fan_in, fan_out, scale=0.05):
    kw, kb = jax.random.split(key)
    return (jax.random.normal(kw, (fan_in, fan_out), jnp.float32) * scale,
            jax.random.normal(kb, (fan_out,), jnp.float32) * scale)


def _cplx_block(w):
    """(Din, Dout) real weight -> (2Din, 2Dout) block-diag (applies to real & imag lanes)."""
    z = jnp.zeros_like(w)
    return jnp.concatenate([jnp.concatenate([w, z], axis=1),
                            jnp.concatenate([z, w], axis=1)], axis=0)


def _dup(b):
    """(D,) bias -> (1, 2D) applied to both real and imag lane halves."""
    return jnp.concatenate([b, b])[None, :]


def _init_attn(key):
    qkv_w, qkv_b, o_w, o_b = [], [], [], []
    for i in range(N_LAYERS):
        k = jax.random.fold_in(key, i)
        kq, kk, kv, ko = jax.random.split(k, 4)
        wq, bq = _init_linear(kq, DIM, DIM)
        wk, bk = _init_linear(kk, DIM, DIM)
        wv, bv = _init_linear(kv, DIM, DIM)
        wo, bo = _init_linear(ko, DIM, DIM)
        qkv_w.append(jnp.concatenate(
            [_cplx_block(wq), _cplx_block(wk), _cplx_block(wv)], axis=1))   # (2D, 6D)
        qkv_b.append(jnp.concatenate([_dup(bq), _dup(bk), _dup(bv)], axis=1))  # (1, 6D)
        o_w.append(_cplx_block(wo))
        o_b.append(_dup(bo))
    return (jnp.stack(qkv_w).astype(jnp.bfloat16), jnp.stack(qkv_b),
            jnp.stack(o_w).astype(jnp.bfloat16), jnp.stack(o_b))


def init_params(key):
    keys = jax.random.split(key, 12)
    qkv_w, qkv_b, o_w, o_b = _init_attn(keys[0])
    w2p_w, w2p_b = _init_linear(keys[1], DIM, DIM)
    p2s_w, p2s_b = _init_linear(keys[2], DIM, DIM)
    read_w, read_b = _init_linear(keys[3], DIM, DIM)
    coll_w, coll_b = _init_linear(keys[4], DIM, VOCAB)
    emb_r = jax.random.normal(keys[5], (VOCAB, DIM), jnp.float32) * 0.02
    emb_i = jax.random.normal(keys[6], (VOCAB, DIM), jnp.float32) * 0.02
    mem_r = jax.random.normal(keys[7], (MEM_SIZE, DIM), jnp.float32) * 0.01
    mem_i = jax.random.normal(keys[8], (MEM_SIZE, DIM), jnp.float32) * 0.01

    c = _const_mats(BATCH, SEQ)

    # collapse folded so (h*h) @ [W; W] = (h_r^2 + h_i^2) @ W, padded to 128 lanes
    coll_w2 = jnp.zeros((D2, VOCAB_PAD), jnp.float32)
    coll_w2 = coll_w2.at[:DIM, :VOCAB].set(coll_w).at[DIM:, :VOCAB].set(coll_w)
    coll_b2 = jnp.zeros((1, VOCAB_PAD), jnp.float32).at[0, :VOCAB].set(coll_b)

    # memory: score weight (h_r @ mem_r^T via zero imag block), complex content matrix
    memsc = jnp.concatenate([mem_r.T, jnp.zeros((DIM, MEM_SIZE), jnp.float32)], axis=0)
    memcat = jnp.concatenate([mem_r, mem_i], axis=1)

    return {
        "freq": jnp.linspace(0.0, 1.0, DIM, dtype=jnp.float32),
        "emb": jnp.concatenate([emb_r, emb_i], axis=1).astype(jnp.bfloat16),   # (V, 2D)
        "norm_g": _dup(jnp.ones((DIM,), jnp.float32)),
        "norm_b": _dup(jnp.zeros((DIM,), jnp.float32)),
        "hnorm_g": _dup(jnp.ones((DIM,), jnp.float32)),
        "hnorm_b": _dup(jnp.zeros((DIM,), jnp.float32)),
        "qkv_w": qkv_w, "qkv_b": qkv_b, "o_w": o_w, "o_b": o_b,
        "proj_w": jnp.stack([_cplx_block(w2p_w), _cplx_block(p2s_w)]).astype(jnp.bfloat16),
        "proj_b": jnp.stack([_dup(w2p_b), _dup(p2s_b)]),
        "mavg": jnp.asarray(c["mavg"], jnp.bfloat16),
        "pool": jnp.asarray(c["pool"], jnp.bfloat16),
        "up": jnp.asarray(c["up"], jnp.bfloat16),
        "pair": jnp.asarray(c["pair"], jnp.bfloat16),
        "hm_w": jnp.asarray(c["hm_w"], jnp.float32),
        "hm_p": jnp.asarray(c["hm_p"], jnp.float32),
        "bias_w": jnp.asarray(c["bias_w"], jnp.float32),
        "bias_p": jnp.asarray(c["bias_p"], jnp.float32),
        "bs_w": jnp.asarray(c["bs_w"], jnp.bfloat16),
        "bs_p": jnp.asarray(c["bs_p"], jnp.bfloat16),
        "memsc": memsc.astype(jnp.bfloat16),
        "memcat": memcat.astype(jnp.bfloat16),
        "read_w": _cplx_block(read_w).astype(jnp.bfloat16),
        "read_b": _dup(read_b),
        "coll_w": coll_w2.astype(jnp.bfloat16),
        "coll_b": coll_b2,
    }


# ----------------------------- wrapper -----------------------------
def forward(params, tokens):
    B, S = tokens.shape
    # complex positional encoding exp(i*pos*freq); cos/sin kept in the wrapper
    # TODO(synk): move cos/sin in-kernel once Mosaic transcendental support is confirmed.
    pos = jnp.arange(S, dtype=jnp.float32)[:, None]
    angle = pos * params["freq"][None, :]
    pe = jnp.concatenate([jnp.cos(angle), jnp.sin(angle)], axis=1)   # (S, 2D)
    pe = jnp.tile(pe, (B, 1))                                        # (B*S, 2D)
    tok = tokens.reshape(B * S, 1).astype(jnp.int32)

    inputs = (
        tok, pe,
        params["norm_g"], params["norm_b"], params["hnorm_g"], params["hnorm_b"],
        params["emb"],
        params["qkv_w"], params["qkv_b"], params["o_w"], params["o_b"],
        params["proj_w"], params["proj_b"],
        params["mavg"], params["pool"], params["up"],
        params["hm_w"], params["hm_p"], params["bias_w"], params["bias_p"],
        params["bs_w"], params["bs_p"],
        params["memsc"], params["memcat"], params["pair"],
        params["read_w"], params["read_b"],
        params["coll_w"], params["coll_b"],
    )
    logits = pl.pallas_call(
        functools.partial(_fused_kernel, B, S),
        out_shape=jax.ShapeDtypeStruct((B * S, VOCAB_PAD), jnp.float32),
        in_specs=[_VMEM] * len(inputs),
        out_specs=_VMEM,
        # TODO(synk): on v7x (2 TensorCores) split the independent batch elements across
        # cores via grid=(B,) + dimension_semantics=("parallel",); kept grid-less here
        # since v5e/v6e have a single TC and a grid only adds per-step overhead.
    )(*inputs)
    return logits[:, :VOCAB].reshape(B, S, VOCAB)


# ----------------------------- main -----------------------------
if __name__ == "__main__":
    assert MEM_SIZE == DIM, "reference's score/|x| broadcast requires mem_size == dim"
    key = jax.random.PRNGKey(0)
    params = init_params(key)
    tokens = jax.random.randint(jax.random.fold_in(key, 123), (BATCH, SEQ), 0, VOCAB,
                                dtype=jnp.int32)
    fwd = jax.jit(forward)
    logits = fwd(params, tokens)
    jax.block_until_ready(logits)
    assert logits.shape == (BATCH, SEQ, VOCAB)
    assert bool(jnp.all(logits >= 0.0))
    assert bool(jnp.all(jnp.isfinite(logits)))
    print("KERNEL_OK")
</pallas_src>

<mosaic_0001>
module attributes {stable_mosaic.version = 11 : i64} {
  func.func @_fused_kernel(%arg0: memref<16x1xi32, #tpu.memory_space<vmem>>, %arg1: memref<16x64xf32, #tpu.memory_space<vmem>>, %arg2: memref<1x64xf32, #tpu.memory_space<vmem>>, %arg3: memref<1x64xf32, #tpu.memory_space<vmem>>, %arg4: memref<1x64xf32, #tpu.memory_space<vmem>>, %arg5: memref<1x64xf32, #tpu.memory_space<vmem>>, %arg6: memref<64x64xbf16, #tpu.memory_space<vmem>>, %arg7: memref<5x64x192xbf16, #tpu.memory_space<vmem>>, %arg8: memref<5x1x192xf32, #tpu.memory_space<vmem>>, %arg9: memref<5x64x64xbf16, #tpu.memory_space<vmem>>, %arg10: memref<5x1x64xf32, #tpu.memory_space<vmem>>, %arg11: memref<2x64x64xbf16, #tpu.memory_space<vmem>>, %arg12: memref<2x1x64xf32, #tpu.memory_space<vmem>>, %arg13: memref<64x64xbf16, #tpu.memory_space<vmem>>, %arg14: memref<8x16xbf16, #tpu.memory_space<vmem>>, %arg15: memref<16x8xbf16, #tpu.memory_space<vmem>>, %arg16: memref<64x64xf32, #tpu.memory_space<vmem>>, %arg17: memref<32x64xf32, #tpu.memory_space<vmem>>, %arg18: memref<16x64xf32, #tpu.memory_space<vmem>>, %arg19: memref<8x32xf32, #tpu.memory_space<vmem>>, %arg20: memref<64x64xbf16, #tpu.memory_space<vmem>>, %arg21: memref<32x32xbf16, #tpu.memory_space<vmem>>, %arg22: memref<64x32xbf16, #tpu.memory_space<vmem>>, %arg23: memref<32x64xbf16, #tpu.memory_space<vmem>>, %arg24: memref<64x32xbf16, #tpu.memory_space<vmem>>, %arg25: memref<64x64xbf16, #tpu.memory_space<vmem>>, %arg26: memref<1x64xf32, #tpu.memory_space<vmem>>, %arg27: memref<64x128xbf16, #tpu.memory_space<vmem>>, %arg28: memref<1x128xf32, #tpu.memory_space<vmem>>, %arg29: memref<16x128xf32, #tpu.memory_space<vmem>>) attributes {dimension_semantics = [], scalar_prefetch = 0 : i64, scratch_operands = 0 : i64, tpu.core_type = #tpu.core_type<tc>} {
    %c0 = arith.constant 0 : index
    %c0_0 = arith.constant 0 : index
    %0 = vector.load %arg2[%c0, %c0_0] : memref<1x64xf32, #tpu.memory_space<vmem>>, vector<1x64xf32>
    %c0_1 = arith.constant 0 : index
    %c0_2 = arith.constant 0 : index
    %1 = vector.load %arg3[%c0_1, %c0_2] : memref<1x64xf32, #tpu.memory_space<vmem>>, vector<1x64xf32>
    %c0_3 = arith.constant 0 : index
    %c0_4 = arith.constant 0 : index
    %2 = vector.load %arg4[%c0_3, %c0_4] : memref<1x64xf32, #tpu.memory_space<vmem>>, vector<1x64xf32>
    %c0_5 = arith.constant 0 : index
    %c0_6 = arith.constant 0 : index
    %3 = vector.load %arg5[%c0_5, %c0_6] : memref<1x64xf32, #tpu.memory_space<vmem>>, vector<1x64xf32>
    %c0_7 = arith.constant 0 : index
    %c0_8 = arith.constant 0 : index
    %4 = vector.load %arg13[%c0_7, %c0_8] : memref<64x64xbf16, #tpu.memory_space<vmem>>, vector<64x64xbf16>
    %c0_9 = arith.constant 0 : index
    %c0_10 = arith.constant 0 : index
    %5 = vector.load %arg0[%c0_9, %c0_10] : memref<16x1xi32, #tpu.memory_space<vmem>>, vector<16x1xi32>
    %6 = tpu.iota {dimensions = array<i32: 1>} : vector<16x64xi32>
    %7 = vector.broadcast %5 : vector<16x1xi32> to vector<16x64xi32>
    %8 = arith.cmpi eq, %7, %6 : vector<16x64xi32>
    %9 = arith.extui %8 : vector<16x64xi1> to vector<16x64xi32>
    %10 = arith.sitofp %9 : vector<16x64xi32> to vector<16x64xf32>
    %11 = arith.truncf %10 : vector<16x64xf32> to vector<16x64xbf16>
    %c0_11 = arith.constant 0 : index
    %c0_12 = arith.constant 0 : index
    %12 = vector.load %arg6[%c0_11, %c0_12] : memref<64x64xbf16, #tpu.memory_space<vmem>>, vector<64x64xbf16>
    %cst = arith.constant dense<0.000000e+00> : vector<16x64xf32>
    %13 = tpu.matmul %11, %12, %cst {dimension_numbers = #tpu.dot_dimension_numbers<[1], [0], [0], [1], [0, 0, 1, 1], [], []>} : vector<16x64xbf16>, vector<64x64xbf16>, vector<16x64xf32> -> vector<16x64xf32>
    %c0_13 = arith.constant 0 : index
    %c0_14 = arith.constant 0 : index
    %14 = vector.load %arg1[%c0_13, %c0_14] : memref<16x64xf32, #tpu.memory_space<vmem>>, vector<16x64xf32>
    %15 = arith.addf %13, %14 : vector<16x64xf32>
    %16 = arith.truncf %15 : vector<16x64xf32> to vector<16x64xbf16>
    %cst_15 = arith.constant dense<0.000000e+00> : vector<16x64xf32>
    %17 = tpu.matmul %16, %4, %cst_15 {dimension_numbers = #tpu.dot_dimension_numbers<[1], [0], [0], [1], [0, 0, 1, 1], [], []>} : vector<16x64xbf16>, vector<64x64xbf16>, vector<16x64xf32> -> vector<16x64xf32>
    %18 = arith.subf %15, %17 : vector<16x64xf32>
    %19 = arith.mulf %18, %18 : vector<16x64xf32>
    %20 = arith.truncf %19 : vector<16x64xf32> to vector<16x64xbf16>
    %cst_16 = arith.constant dense<0.000000e+00> : vector<16x64xf32>
    %21 = tpu.matmul %20, %4, %cst_16 {dimension_numbers = #tpu.dot_dimension_numbers<[1], [0], [0], [1], [0, 0, 1, 1], [], []>} : vector<16x64xbf16>, vector<64x64xbf16>, vector<16x64xf32> -> vector<16x64xf32>
    %cst_17 = arith.constant 9.99999974E-6 : f32
    %22 = vector.broadcast %cst_17 : f32 to vector<16x64xf32>
    %23 = arith.addf %21, %22 : vector<16x64xf32>
    %24 = math.rsqrt %23 : vector<16x64xf32>
    %25 = arith.mulf %18, %24 : vector<16x64xf32>
    %26 = vector.broadcast %0 : vector<1x64xf32> to vector<16x64xf32>
    %27 = arith.mulf %25, %26 : vector<16x64xf32>
    %28 = vector.broadcast %1 : vector<1x64xf32> to vector<16x64xf32>
    %29 = arith.addf %27, %28 : vector<16x64xf32>
    %c0_18 = arith.constant 0 : index
    %c0_19 = arith.constant 0 : index
    %30 = vector.load %arg16[%c0_18, %c0_19] : memref<64x64xf32, #tpu.memory_space<vmem>>, vector<64x64xf32>
    %c0_20 = arith.constant 0 : index
    %c0_21 = arith.constant 0 : index
    %31 = vector.load %arg18[%c0_20, %c0_21] : memref<16x64xf32, #tpu.memory_space<vmem>>, vector<16x64xf32>
    %c0_22 = arith.constant 0 : index
    %c0_23 = arith.constant 0 : index
    %32 = vector.load %arg20[%c0_22, %c0_23] : memref<64x64xbf16, #tpu.memory_space<vmem>>, vector<64x64xbf16>
    %c0_24 = arith.constant 0 : index
    %c0_25 = arith.constant 0 : index
    %33 = vector.load %arg17[%c0_24, %c0_25] : memref<32x64xf32, #tpu.memory_space<vmem>>, vector<32x64xf32>
    %c0_26 = arith.constant 0 : index
    %c0_27 = arith.constant 0 : index
    %34 = vector.load %arg19[%c0_26, %c0_27] : memref<8x32xf32, #tpu.memory_space<vmem>>, vector<8x32xf32>
    %c0_28 = arith.constant 0 : index
    %c0_29 = arith.constant 0 : index
    %35 = vector.load %arg21[%c0_28, %c0_29] : memref<32x32xbf16, #tpu.memory_space<vmem>>, vector<32x32xbf16>
    %36 = arith.truncf %29 : vector<16x64xf32> to vector<16x64xbf16>
    %cst_30 = arith.constant dense<0.000000e+00> : vector<16x64xf32>
    %37 = tpu.matmul %36, %4, %cst_30 {dimension_numbers = #tpu.dot_dimension_numbers<[1], [0], [0], [1], [0, 0, 1, 1], [], []>} : vector<16x64xbf16>, vector<64x64xbf16>, vector<16x64xf32> -> vector<16x64xf32>
    %38 = arith.subf %29, %37 : vector<16x64xf32>
    %39 = arith.mulf %38, %38 : vector<16x64xf32>
    %40 = arith.truncf %39 : vector<16x64xf32> to vector<16x64xbf16>
    %cst_31 = arith.constant dense<0.000000e+00> : vector<16x64xf32>
    %41 = tpu.matmul %40, %4, %cst_31 {dimension_numbers = #tpu.dot_dimension_numbers<[1], [0], [0], [1], [0, 0, 1, 1], [], []>} : vector<16x64xbf16>, vector<64x64xbf16>, vector<16x64xf32> -> vector<16x64xf32>
    %cst_32 = arith.constant 9.99999974E-6 : f32
    %42 = vector.broadcast %cst_32 : f32 to vector<16x64xf32>
    %43 = arith.addf %41, %42 : vector<16x64xf32>
    %44 = math.rsqrt %43 : vector<16x64xf32>
    %45 = arith.mulf %38, %44 : vector<16x64xf32>
    %46 = vector.broadcast %2 : vector<1x64xf32> to vector<16x64xf32>
    %47 = arith.mulf %45, %46 : vector<16x64xf32>
    %48 = vector.broadcast %3 : vector<1x64xf32> to vector<16x64xf32>
    %49 = arith.addf %47, %48 : vector<16x64xf32>
    %50 = arith.truncf %49 : vector<16x64xf32> to vector<16x64xbf16>
    %c0_33 = arith.constant 0 : index
    %c0_34 = arith.constant 0 : index
    %c0_35 = arith.constant 0 : index
    %51 = vector.load %arg7[%c0_33, %c0_34, %c0_35] : memref<5x64x192xbf16, #tpu.memory_space<vmem>>, vector<1x64x192xbf16>
    %52 = vector.shape_cast %51 : vector<1x64x192xbf16> to vector<64x192xbf16>
    %cst_36 = arith.constant dense<0.000000e+00> : vector<16x192xf32>
    %53 = tpu.matmul %50, %52, %cst_36 {dimension_numbers = #tpu.dot_dimension_numbers<[1], [0], [0], [1], [0, 0, 1, 1], [], []>} : vector<16x64xbf16>, vector<64x192xbf16>, vector<16x192xf32> -> vector<16x192xf32>
    %c0_37 = arith.constant 0 : index
    %c0_38 = arith.constant 0 : index
    %c0_39 = arith.constant 0 : index
    %54 = vector.load %arg8[%c0_37, %c0_38, %c0_39] : memref<5x1x192xf32, #tpu.memory_space<vmem>>, vector<1x1x192xf32>
    %55 = vector.shape_cast %54 : vector<1x1x192xf32> to vector<1x192xf32>
    %56 = vector.broadcast %55 : vector<1x192xf32> to vector<16x192xf32>
    %57 = arith.addf %53, %56 : vector<16x192xf32>
    %58 = vector.extract_strided_slice %57 {offsets = [0, 0], sizes = [16, 64], strides = [1, 1]} : vector<16x192xf32> to vector<16x64xf32>
    %59 = vector.extract_strided_slice %57 {offsets = [0, 64], sizes = [16, 64], strides = [1, 1]} : vector<16x192xf32> to vector<16x64xf32>
    %60 = vector.extract_strided_slice %57 {offsets = [0, 128], sizes = [16, 64], strides = [1, 1]} : vector<16x192xf32> to vector<16x64xf32>
    %61 = tpu.concatenate %59, %59, %59, %59 in 0 : vector<16x64xf32>, vector<16x64xf32>, vector<16x64xf32>, vector<16x64xf32> -> vector<64x64xf32>
    %62 = arith.mulf %61, %30 : vector<64x64xf32>
    %63 = arith.truncf %62 : vector<64x64xf32> to vector<64x64xbf16>
    %64 = tpu.concatenate %60, %60, %60, %60 in 0 : vector<16x64xf32>, vector<16x64xf32>, vector<16x64xf32>, vector<16x64xf32> -> vector<64x64xf32>
    %65 = arith.mulf %64, %30 : vector<64x64xf32>
    %66 = arith.truncf %65 : vector<64x64xf32> to vector<64x64xbf16>
    %67 = arith.truncf %58 : vector<16x64xf32> to vector<16x64xbf16>
    %cst_40 = arith.constant dense<0.000000e+00> : vector<16x64xf32>
    %68 = tpu.matmul %67, %63, %cst_40 {dimension_numbers = #tpu.dot_dimension_numbers<[1], [1], [0], [0], [0, 0, 1, 0], [], []>} : vector<16x64xbf16>, vector<64x64xbf16>, vector<16x64xf32> -> vector<16x64xf32>
    %cst_41 = arith.constant 0.353553385 : f32
    %69 = vector.broadcast %cst_41 : f32 to vector<16x64xf32>
    %70 = arith.mulf %68, %69 : vector<16x64xf32>
    %71 = arith.addf %70, %31 : vector<16x64xf32>
    %72 = math.exp %71 : vector<16x64xf32>
    %73 = arith.truncf %72 : vector<16x64xf32> to vector<16x64xbf16>
    %cst_42 = arith.constant dense<0.000000e+00> : vector<16x64xf32>
    %74 = tpu.matmul %73, %32, %cst_42 {dimension_numbers = #tpu.dot_dimension_numbers<[1], [0], [0], [1], [0, 0, 1, 1], [], []>} : vector<16x64xbf16>, vector<64x64xbf16>, vector<16x64xf32> -> vector<16x64xf32>
    %75 = tpu.reciprocal %74 {approx = true} : vector<16x64xf32> -> vector<16x64xf32>
    %76 = arith.mulf %72, %75 : vector<16x64xf32>
    %77 = arith.truncf %76 : vector<16x64xf32> to vector<16x64xbf16>
    %cst_43 = arith.constant dense<0.000000e+00> : vector<16x64xf32>
    %78 = tpu.matmul %77, %66, %cst_43 {dimension_numbers = #tpu.dot_dimension_numbers<[1], [0], [0], [1], [0, 0, 1, 1], [], []>} : vector<16x64xbf16>, vector<64x64xbf16>, vector<16x64xf32> -> vector<16x64xf32>
    %79 = arith.truncf %78 : vector<16x64xf32> to vector<16x64xbf16>
    %c0_44 = arith.constant 0 : index
    %c0_45 = arith.constant 0 : index
    %c0_46 = arith.constant 0 : index
    %80 = vector.load %arg9[%c0_44, %c0_45, %c0_46] : memref<5x64x64xbf16, #tpu.memory_space<vmem>>, vector<1x64x64xbf16>
    %81 = vector.shape_cast %80 : vector<1x64x64xbf16> to vector<64x64xbf16>
    %cst_47 = arith.constant dense<0.000000e+00> : vector<16x64xf32>
    %82 = tpu.matmul %79, %81, %cst_47 {dimension_numbers = #tpu.dot_dimension_numbers<[1], [0], [0], [1], [0, 0, 1, 1], [], []>} : vector<16x64xbf16>, vector<64x64xbf16>, vector<16x64xf32> -> vector<16x64xf32>
    %c0_48 = arith.constant 0 : index
    %c0_49 = arith.constant 0 : index
    %c0_50 = arith.constant 0 : index
    %83 = vector.load %arg10[%c0_48, %c0_49, %c0_50] : memref<5x1x64xf32, #tpu.memory_space<vmem>>, vector<1x1x64xf32>
    %84 = vector.shape_cast %83 : vector<1x1x64xf32> to vector<1x64xf32>
    %85 = vector.broadcast %84 : vector<1x64xf32> to vector<16x64xf32>
    %86 = arith.addf %82, %85 : vector<16x64xf32>
    %87 = arith.addf %29, %86 : vector<16x64xf32>
    %88 = arith.truncf %87 : vector<16x64xf32> to vector<16x64xbf16>
    %cst_51 = arith.constant dense<0.000000e+00> : vector<16x64xf32>
    %89 = tpu.matmul %88, %4, %cst_51 {dimension_numbers = #tpu.dot_dimension_numbers<[1], [0], [0], [1], [0, 0, 1, 1], [], []>} : vector<16x64xbf16>, vector<64x64xbf16>, vector<16x64xf32> -> vector<16x64xf32>
    %90 = arith.subf %87, %89 : vector<16x64xf32>
    %91 = arith.mulf %90, %90 : vector<16x64xf32>
    %92 = arith.truncf %91 : vector<16x64xf32> to vector<16x64xbf16>
    %cst_52 = arith.constant dense<0.000000e+00> : vector<16x64xf32>
    %93 = tpu.matmul %92, %4, %cst_52 {dimension_numbers = #tpu.dot_dimension_numbers<[1], [0], [0], [1], [0, 0, 1, 1], [], []>} : vector<16x64xbf16>, vector<64x64xbf16>, vector<16x64xf32> -> vector<16x64xf32>
    %cst_53 = arith.constant 9.99999974E-6 : f32
    %94 = vector.broadcast %cst_53 : f32 to vector<16x64xf32>
    %95 = arith.addf %93, %94 : vector<16x64xf32>
    %96 = math.rsqrt %95 : vector<16x64xf32>
    %97 = arith.mulf %90, %96 : vector<16x64xf32>
    %98 = vector.broadcast %2 : vector<1x64xf32> to vector<16x64xf32>
    %99 = arith.mulf %97, %98 : vector<16x64xf32>
    %100 = vector.broadcast %3 : vector<1x64xf32> to vector<16x64xf32>
    %101 = arith.addf %99, %100 : vector<16x64xf32>
    %102 = arith.truncf %101 : vector<16x64xf32> to vector<16x64xbf16>
    %c1 = arith.constant 1 : index
    %c0_54 = arith.constant 0 : index
    %c0_55 = arith.constant 0 : index
    %103 = vector.load %arg7[%c1, %c0_54, %c0_55] : memref<5x64x192xbf16, #tpu.memory_space<vmem>>, vector<1x64x192xbf16>
    %104 = vector.shape_cast %103 : vector<1x64x192xbf16> to vector<64x192xbf16>
    %cst_56 = arith.constant dense<0.000000e+00> : vector<16x192xf32>
    %105 = tpu.matmul %102, %104, %cst_56 {dimension_numbers = #tpu.dot_dimension_numbers<[1], [0], [0], [1], [0, 0, 1, 1], [], []>} : vector<16x64xbf16>, vector<64x192xbf16>, vector<16x192xf32> -> vector<16x192xf32>
    %c1_57 = arith.constant 1 : index
    %c0_58 = arith.constant 0 : index
    %c0_59 = arith.constant 0 : index
    %106 = vector.load %arg8[%c1_57, %c0_58, %c0_59] : memref<5x1x192xf32, #tpu.memory_space<vmem>>, vector<1x1x192xf32>
    %107 = vector.shape_cast %106 : vector<1x1x192xf32> to vector<1x192xf32>
    %108 = vector.broadcast %107 : vector<1x192xf32> to vector<16x192xf32>
    %109 = arith.addf %105, %108 : vector<16x192xf32>
    %110 = vector.extract_strided_slice %109 {offsets = [0, 0], sizes = [16, 64], strides = [1, 1]} : vector<16x192xf32> to vector<16x64xf32>
    %111 = vector.extract_strided_slice %109 {offsets = [0, 64], sizes = [16, 64], strides = [1, 1]} : vector<16x192xf32> to vector<16x64xf32>
    %112 = vector.extract_strided_slice %109 {offsets = [0, 128], sizes = [16, 64], strides = [1, 1]} : vector<16x192xf32> to vector<16x64xf32>
    %113 = tpu.concatenate %111, %111, %111, %111 in 0 : vector<16x64xf32>, vector<16x64xf32>, vector<16x64xf32>, vector<16x64xf32> -> vector<64x64xf32>
    %114 = arith.mulf %113, %30 : vector<64x64xf32>
    %115 = arith.truncf %114 : vector<64x64xf32> to vector<64x64xbf16>
    %116 = tpu.concatenate %112, %112, %112, %112 in 0 : vector<16x64xf32>, vector<16x64xf32>, vector<16x64xf32>, vector<16x64xf32> -> vector<64x64xf32>
    %117 = arith.mulf %116, %30 : vector<64x64xf32>
    %118 = arith.truncf %117 : vector<64x64xf32> to vector<64x64xbf16>
    %119 = arith.truncf %110 : vector<16x64xf32> to vector<16x64xbf16>
    %cst_60 = arith.constant dense<0.000000e+00> : vector<16x64xf32>
    %120 = tpu.matmul %119, %115, %cst_60 {dimension_numbers = #tpu.dot_dimension_numbers<[1], [1], [0], [0], [0, 0, 1, 0], [], []>} : vector<16x64xbf16>, vector<64x64xbf16>, vector<16x64xf32> -> vector<16x64xf32>
    %cst_61 = arith.constant 0.353553385 : f32
    %121 = vector.broadcast %cst_61 : f32 to vector<16x64xf32>
    %122 = arith.mulf %120, %121 : vector<16x64xf32>
    %123 = arith.addf %122, %31 : vector<16x64xf32>
    %124 = math.exp %123 : vector<16x64xf32>
    %125 = arith.truncf %124 : vector<16x64xf32> to vector<16x64xbf16>
    %cst_62 = arith.constant dense<0.000000e+00> : vector<16x64xf32>
    %126 = tpu.matmul %125, %32, %cst_62 {dimension_numbers = #tpu.dot_dimension_numbers<[1], [0], [0], [1], [0, 0, 1, 1], [], []>} : vector<16x64xbf16>, vector<64x64xbf16>, vector<16x64xf32> -> vector<16x64xf32>
    %127 = tpu.reciprocal %126 {approx = true} : vector<16x64xf32> -> vector<16x64xf32>
    %128 = arith.mulf %124, %127 : vector<16x64xf32>
    %129 = arith.truncf %128 : vector<16x64xf32> to vector<16x64xbf16>
    %cst_63 = arith.constant dense<0.000000e+00> : vector<16x64xf32>
    %130 = tpu.matmul %129, %118, %cst_63 {dimension_numbers = #tpu.dot_dimension_numbers<[1], [0], [0], [1], [0, 0, 1, 1], [], []>} : vector<16x64xbf16>, vector<64x64xbf16>, vector<16x64xf32> -> vector<16x64xf32>
    %131 = arith.truncf %130 : vector<16x64xf32> to vector<16x64xbf16>
    %c1_64 = arith.constant 1 : index
    %c0_65 = arith.constant 0 : index
    %c0_66 = arith.constant 0 : index
    %132 = vector.load %arg9[%c1_64, %c0_65, %c0_66] : memref<5x64x64xbf16, #tpu.memory_space<vmem>>, vector<1x64x64xbf16>
    %133 = vector.shape_cast %132 : vector<1x64x64xbf16> to vector<64x64xbf16>
    %cst_67 = arith.constant dense<0.000000e+00> : vector<16x64xf32>
    %134 = tpu.matmul %131, %133, %cst_67 {dimension_numbers = #tpu.dot_dimension_numbers<[1], [0], [0], [1], [0, 0, 1, 1], [], []>} : vector<16x64xbf16>, vector<64x64xbf16>, vector<16x64xf32> -> vector<16x64xf32>
    %c1_68 = arith.constant 1 : index
    %c0_69 = arith.constant 0 : index
    %c0_70 = arith.constant 0 : index
    %135 = vector.load %arg10[%c1_68, %c0_69, %c0_70] : memref<5x1x64xf32, #tpu.memory_space<vmem>>, vector<1x1x64xf32>
    %136 = vector.shape_cast %135 : vector<1x1x64xf32> to vector<1x64xf32>
    %137 = vector.broadcast %136 : vector<1x64xf32> to vector<16x64xf32>
    %138 = arith.addf %134, %137 : vector<16x64xf32>
    %139 = arith.addf %87, %138 : vector<16x64xf32>
    %c0_71 = arith.constant 0 : index
    %c0_72 = arith.constant 0 : index
    %140 = vector.load %arg14[%c0_71, %c0_72] : memref<8x16xbf16, #tpu.memory_space<vmem>>, vector<8x16xbf16>
    %c0_73 = arith.constant 0 : index
    %c0_74 = arith.constant 0 : index
    %141 = vector.load %arg15[%c0_73, %c0_74] : memref<16x8xbf16, #tpu.memory_space<vmem>>, vector<16x8xbf16>
    %142 = arith.truncf %139 : vector<16x64xf32> to vector<16x64xbf16>
    %cst_75 = arith.constant dense<0.000000e+00> : vector<8x64xf32>
    %143 = tpu.matmul %140, %142, %cst_75 {dimension_numbers = #tpu.dot_dimension_numbers<[1], [0], [0], [1], [0, 0, 1, 1], [], []>} : vector<8x16xbf16>, vector<16x64xbf16>, vector<8x64xf32> -> vector<8x64xf32>
    %144 = arith.truncf %143 : vector<8x64xf32> to vector<8x64xbf16>
    %cst_76 = arith.constant dense<0.000000e+00> : vector<8x64xf32>
    %145 = tpu.matmul %144, %4, %cst_76 {dimension_numbers = #tpu.dot_dimension_numbers<[1], [0], [0], [1], [0, 0, 1, 1], [], []>} : vector<8x64xbf16>, vector<64x64xbf16>, vector<8x64xf32> -> vector<8x64xf32>
    %146 = arith.subf %143, %145 : vector<8x64xf32>
    %147 = arith.mulf %146, %146 : vector<8x64xf32>
    %148 = arith.truncf %147 : vector<8x64xf32> to vector<8x64xbf16>
    %cst_77 = arith.constant dense<0.000000e+00> : vector<8x64xf32>
    %149 = tpu.matmul %148, %4, %cst_77 {dimension_numbers = #tpu.dot_dimension_numbers<[1], [0], [0], [1], [0, 0, 1, 1], [], []>} : vector<8x64xbf16>, vector<64x64xbf16>, vector<8x64xf32> -> vector<8x64xf32>
    %cst_78 = arith.constant 9.99999974E-6 : f32
    %150 = vector.broadcast %cst_78 : f32 to vector<8x64xf32>
    %151 = arith.addf %149, %150 : vector<8x64xf32>
    %152 = math.rsqrt %151 : vector<8x64xf32>
    %153 = arith.mulf %146, %152 : vector<8x64xf32>
    %154 = vector.broadcast %2 : vector<1x64xf32> to vector<8x64xf32>
    %155 = arith.mulf %153, %154 : vector<8x64xf32>
    %156 = vector.broadcast %3 : vector<1x64xf32> to vector<8x64xf32>
    %157 = arith.addf %155, %156 : vector<8x64xf32>
    %158 = arith.truncf %157 : vector<8x64xf32> to vector<8x64xbf16>
    %c2 = arith.constant 2 : index
    %c0_79 = arith.constant 0 : index
    %c0_80 = arith.constant 0 : index
    %159 = vector.load %arg7[%c2, %c0_79, %c0_80] : memref<5x64x192xbf16, #tpu.memory_space<vmem>>, vector<1x64x192xbf16>
    %160 = vector.shape_cast %159 : vector<1x64x192xbf16> to vector<64x192xbf16>
    %cst_81 = arith.constant dense<0.000000e+00> : vector<8x192xf32>
    %161 = tpu.matmul %158, %160, %cst_81 {dimension_numbers = #tpu.dot_dimension_numbers<[1], [0], [0], [1], [0, 0, 1, 1], [], []>} : vector<8x64xbf16>, vector<64x192xbf16>, vector<8x192xf32> -> vector<8x192xf32>
    %c2_82 = arith.constant 2 : index
    %c0_83 = arith.constant 0 : index
    %c0_84 = arith.constant 0 : index
    %162 = vector.load %arg8[%c2_82, %c0_83, %c0_84] : memref<5x1x192xf32, #tpu.memory_space<vmem>>, vector<1x1x192xf32>
    %163 = vector.shape_cast %162 : vector<1x1x192xf32> to vector<1x192xf32>
    %164 = vector.broadcast %163 : vector<1x192xf32> to vector<8x192xf32>
    %165 = arith.addf %161, %164 : vector<8x192xf32>
    %166 = vector.extract_strided_slice %165 {offsets = [0, 0], sizes = [8, 64], strides = [1, 1]} : vector<8x192xf32> to vector<8x64xf32>
    %167 = vector.extract_strided_slice %165 {offsets = [0, 64], sizes = [8, 64], strides = [1, 1]} : vector<8x192xf32> to vector<8x64xf32>
    %168 = vector.extract_strided_slice %165 {offsets = [0, 128], sizes = [8, 64], strides = [1, 1]} : vector<8x192xf32> to vector<8x64xf32>
    %169 = tpu.concatenate %167, %167, %167, %167 in 0 : vector<8x64xf32>, vector<8x64xf32>, vector<8x64xf32>, vector<8x64xf32> -> vector<32x64xf32>
    %170 = arith.mulf %169, %33 : vector<32x64xf32>
    %171 = arith.truncf %170 : vector<32x64xf32> to vector<32x64xbf16>
    %172 = tpu.concatenate %168, %168, %168, %168 in 0 : vector<8x64xf32>, vector<8x64xf32>, vector<8x64xf32>, vector<8x64xf32> -> vector<32x64xf32>
    %173 = arith.mulf %172, %33 : vector<32x64xf32>
    %174 = arith.truncf %173 : vector<32x64xf32> to vector<32x64xbf16>
    %175 = arith.truncf %166 : vector<8x64xf32> to vector<8x64xbf16>
    %cst_85 = arith.constant dense<0.000000e+00> : vector<8x32xf32>
    %176 = tpu.matmul %175, %171, %cst_85 {dimension_numbers = #tpu.dot_dimension_numbers<[1], [1], [0], [0], [0, 0, 1, 0], [], []>} : vector<8x64xbf16>, vector<32x64xbf16>, vector<8x32xf32> -> vector<8x32xf32>
    %cst_86 = arith.constant 0.353553385 : f32
    %177 = vector.broadcast %cst_86 : f32 to vector<8x32xf32>
    %178 = arith.mulf %176, %177 : vector<8x32xf32>
    %179 = arith.addf %178, %34 : vector<8x32xf32>
    %180 = math.exp %179 : vector<8x32xf32>
    %181 = arith.truncf %180 : vector<8x32xf32> to vector<8x32xbf16>
    %cst_87 = arith.constant dense<0.000000e+00> : vector<8x32xf32>
    %182 = tpu.matmul %181, %35, %cst_87 {dimension_numbers = #tpu.dot_dimension_numbers<[1], [0], [0], [1], [0, 0, 1, 1], [], []>} : vector<8x32xbf16>, vector<32x32xbf16>, vector<8x32xf32> -> vector<8x32xf32>
    %183 = tpu.reciprocal %182 {approx = true} : vector<8x32xf32> -> vector<8x32xf32>
    %184 = arith.mulf %180, %183 : vector<8x32xf32>
    %185 = arith.truncf %184 : vector<8x32xf32> to vector<8x32xbf16>
    %cst_88 = arith.constant dense<0.000000e+00> : vector<8x64xf32>
    %186 = tpu.matmul %185, %174, %cst_88 {dimension_numbers = #tpu.dot_dimension_numbers<[1], [0], [0], [1], [0, 0, 1, 1], [], []>} : vector<8x32xbf16>, vector<32x64xbf16>, vector<8x64xf32> -> vector<8x64xf32>
    %187 = arith.truncf %186 : vector<8x64xf32> to vector<8x64xbf16>
    %c2_89 = arith.constant 2 : index
    %c0_90 = arith.constant 0 : index
    %c0_91 = arith.constant 0 : index
    %188 = vector.load %arg9[%c2_89, %c0_90, %c0_91] : memref<5x64x64xbf16, #tpu.memory_space<vmem>>, vector<1x64x64xbf16>
    %189 = vector.shape_cast %188 : vector<1x64x64xbf16> to vector<64x64xbf16>
    %cst_92 = arith.constant dense<0.000000e+00> : vector<8x64xf32>
    %190 = tpu.matmul %187, %189, %cst_92 {dimension_numbers = #tpu.dot_dimension_numbers<[1], [0], [0], [1], [0, 0, 1, 1], [], []>} : vector<8x64xbf16>, vector<64x64xbf16>, vector<8x64xf32> -> vector<8x64xf32>
    %c2_93 = arith.constant 2 : index
    %c0_94 = arith.constant 0 : index
    %c0_95 = arith.constant 0 : index
    %191 = vector.load %arg10[%c2_93, %c0_94, %c0_95] : memref<5x1x64xf32, #tpu.memory_space<vmem>>, vector<1x1x64xf32>
    %192 = vector.shape_cast %191 : vector<1x1x64xf32> to vector<1x64xf32>
    %193 = vector.broadcast %192 : vector<1x64xf32> to vector<8x64xf32>
    %194 = arith.addf %190, %193 : vector<8x64xf32>
    %195 = arith.addf %143, %194 : vector<8x64xf32>
    %196 = arith.truncf %195 : vector<8x64xf32> to vector<8x64xbf16>
    %cst_96 = arith.constant dense<0.000000e+00> : vector<8x64xf32>
    %197 = tpu.matmul %196, %4, %cst_96 {dimension_numbers = #tpu.dot_dimension_numbers<[1], [0], [0], [1], [0, 0, 1, 1], [], []>} : vector<8x64xbf16>, vector<64x64xbf16>, vector<8x64xf32> -> vector<8x64xf32>
    %198 = arith.subf %195, %197 : vector<8x64xf32>
    %199 = arith.mulf %198, %198 : vector<8x64xf32>
    %200 = arith.truncf %199 : vector<8x64xf32> to vector<8x64xbf16>
    %cst_97 = arith.constant dense<0.000000e+00> : vector<8x64xf32>
    %201 = tpu.matmul %200, %4, %cst_97 {dimension_numbers = #tpu.dot_dimension_numbers<[1], [0], [0], [1], [0, 0, 1, 1], [], []>} : vector<8x64xbf16>, vector<64x64xbf16>, vector<8x64xf32> -> vector<8x64xf32>
    %cst_98 = arith.constant 9.99999974E-6 : f32
    %202 = vector.broadcast %cst_98 : f32 to vector<8x64xf32>
    %203 = arith.addf %201, %202 : vector<8x64xf32>
    %204 = math.rsqrt %203 : vector<8x64xf32>
    %205 = arith.mulf %198, %204 : vector<8x64xf32>
    %206 = vector.broadcast %2 : vector<1x64xf32> to vector<8x64xf32>
    %207 = arith.mulf %205, %206 : vector<8x64xf32>
    %208 = vector.broadcast %3 : vector<1x64xf32> to vector<8x64xf32>
    %209 = arith.addf %207, %208 : vector<8x64xf32>
    %210 = arith.truncf %209 : vector<8x64xf32> to vector<8x64xbf16>
    %c3 = arith.constant 3 : index
    %c0_99 = arith.constant 0 : index
    %c0_100 = arith.constant 0 : index
    %211 = vector.load %arg7[%c3, %c0_99, %c0_100] : memref<5x64x192xbf16, #tpu.memory_space<vmem>>, vector<1x64x192xbf16>
    %212 = vector.shape_cast %211 : vector<1x64x192xbf16> to vector<64x192xbf16>
    %cst_101 = arith.constant dense<0.000000e+00> : vector<8x192xf32>
    %213 = tpu.matmul %210, %212, %cst_101 {dimension_numbers = #tpu.dot_dimension_numbers<[1], [0], [0], [1], [0, 0, 1, 1], [], []>} : vector<8x64xbf16>, vector<64x192xbf16>, vector<8x192xf32> -> vector<8x192xf32>
    %c3_102 = arith.constant 3 : index
    %c0_103 = arith.constant 0 : index
    %c0_104 = arith.constant 0 : index
    %214 = vector.load %arg8[%c3_102, %c0_103, %c0_104] : memref<5x1x192xf32, #tpu.memory_space<vmem>>, vector<1x1x192xf32>
    %215 = vector.shape_cast %214 : vector<1x1x192xf32> to vector<1x192xf32>
    %216 = vector.broadcast %215 : vector<1x192xf32> to vector<8x192xf32>
    %217 = arith.addf %213, %216 : vector<8x192xf32>
    %218 = vector.extract_strided_slice %217 {offsets = [0, 0], sizes = [8, 64], strides = [1, 1]} : vector<8x192xf32> to vector<8x64xf32>
    %219 = vector.extract_strided_slice %217 {offsets = [0, 64], sizes = [8, 64], strides = [1, 1]} : vector<8x192xf32> to vector<8x64xf32>
    %220 = vector.extract_strided_slice %217 {offsets = [0, 128], sizes = [8, 64], strides = [1, 1]} : vector<8x192xf32> to vector<8x64xf32>
    %221 = tpu.concatenate %219, %219, %219, %219 in 0 : vector<8x64xf32>, vector<8x64xf32>, vector<8x64xf32>, vector<8x64xf32> -> vector<32x64xf32>
    %222 = arith.mulf %221, %33 : vector<32x64xf32>
    %223 = arith.truncf %222 : vector<32x64xf32> to vector<32x64xbf16>
    %224 = tpu.concatenate %220, %220, %220, %220 in 0 : vector<8x64xf32>, vector<8x64xf32>, vector<8x64xf32>, vector<8x64xf32> -> vector<32x64xf32>
    %225 = arith.mulf %224, %33 : vector<32x64xf32>
    %226 = arith.truncf %225 : vector<32x64xf32> to vector<32x64xbf16>
    %227 = arith.truncf %218 : vector<8x64xf32> to vector<8x64xbf16>
    %cst_105 = arith.constant dense<0.000000e+00> : vector<8x32xf32>
    %228 = tpu.matmul %227, %223, %cst_105 {dimension_numbers = #tpu.dot_dimension_numbers<[1], [1], [0], [0], [0, 0, 1, 0], [], []>} : vector<8x64xbf16>, vector<32x64xbf16>, vector<8x32xf32> -> vector<8x32xf32>
    %cst_106 = arith.constant 0.353553385 : f32
    %229 = vector.broadcast %cst_106 : f32 to vector<8x32xf32>
    %230 = arith.mulf %228, %229 : vector<8x32xf32>
    %231 = arith.addf %230, %34 : vector<8x32xf32>
    %232 = math.exp %231 : vector<8x32xf32>
    %233 = arith.truncf %232 : vector<8x32xf32> to vector<8x32xbf16>
    %cst_107 = arith.constant dense<0.000000e+00> : vector<8x32xf32>
    %234 = tpu.matmul %233, %35, %cst_107 {dimension_numbers = #tpu.dot_dimension_numbers<[1], [0], [0], [1], [0, 0, 1, 1], [], []>} : vector<8x32xbf16>, vector<32x32xbf16>, vector<8x32xf32> -> vector<8x32xf32>
    %235 = tpu.reciprocal %234 {approx = true} : vector<8x32xf32> -> vector<8x32xf32>
    %236 = arith.mulf %232, %235 : vector<8x32xf32>
    %237 = arith.truncf %236 : vector<8x32xf32> to vector<8x32xbf16>
    %cst_108 = arith.constant dense<0.000000e+00> : vector<8x64xf32>
    %238 = tpu.matmul %237, %226, %cst_108 {dimension_numbers = #tpu.dot_dimension_numbers<[1], [0], [0], [1], [0, 0, 1, 1], [], []>} : vector<8x32xbf16>, vector<32x64xbf16>, vector<8x64xf32> -> vector<8x64xf32>
    %239 = arith.truncf %238 : vector<8x64xf32> to vector<8x64xbf16>
    %c3_109 = arith.constant 3 : index
    %c0_110 = arith.constant 0 : index
    %c0_111 = arith.constant 0 : index
    %240 = vector.load %arg9[%c3_109, %c0_110, %c0_111] : memref<5x64x64xbf16, #tpu.memory_space<vmem>>, vector<1x64x64xbf16>
    %241 = vector.shape_cast %240 : vector<1x64x64xbf16> to vector<64x64xbf16>
    %cst_112 = arith.constant dense<0.000000e+00> : vector<8x64xf32>
    %242 = tpu.matmul %239, %241, %cst_112 {dimension_numbers = #tpu.dot_dimension_numbers<[1], [0], [0], [1], [0, 0, 1, 1], [], []>} : vector<8x64xbf16>, vector<64x64xbf16>, vector<8x64xf32> -> vector<8x64xf32>
    %c3_113 = arith.constant 3 : index
    %c0_114 = arith.constant 0 : index
    %c0_115 = arith.constant 0 : index
    %243 = vector.load %arg10[%c3_113, %c0_114, %c0_115] : memref<5x1x64xf32, #tpu.memory_space<vmem>>, vector<1x1x64xf32>
    %244 = vector.shape_cast %243 : vector<1x1x64xf32> to vector<1x64xf32>
    %245 = vector.broadcast %244 : vector<1x64xf32> to vector<8x64xf32>
    %246 = arith.addf %242, %245 : vector<8x64xf32>
    %247 = arith.addf %195, %246 : vector<8x64xf32>
    %248 = arith.truncf %247 : vector<8x64xf32> to vector<8x64xbf16>
    %cst_116 = arith.constant dense<0.000000e+00> : vector<16x64xf32>
    %249 = tpu.matmul %141, %248, %cst_116 {dimension_numbers = #tpu.dot_dimension_numbers<[1], [0], [0], [1], [0, 0, 1, 1], [], []>} : vector<16x8xbf16>, vector<8x64xbf16>, vector<16x64xf32> -> vector<16x64xf32>
    %250 = arith.truncf %249 : vector<16x64xf32> to vector<16x64xbf16>
    %c0_117 = arith.constant 0 : index
    %c0_118 = arith.constant 0 : index
    %c0_119 = arith.constant 0 : index
    %251 = vector.load %arg11[%c0_117, %c0_118, %c0_119] : memref<2x64x64xbf16, #tpu.memory_space<vmem>>, vector<1x64x64xbf16>
    %252 = vector.shape_cast %251 : vector<1x64x64xbf16> to vector<64x64xbf16>
    %cst_120 = arith.constant dense<0.000000e+00> : vector<16x64xf32>
    %253 = tpu.matmul %250, %252, %cst_120 {dimension_numbers = #tpu.dot_dimension_numbers<[1], [0], [0], [1], [0, 0, 1, 1], [], []>} : vector<16x64xbf16>, vector<64x64xbf16>, vector<16x64xf32> -> vector<16x64xf32>
    %c0_121 = arith.constant 0 : index
    %c0_122 = arith.constant 0 : index
    %c0_123 = arith.constant 0 : index
    %254 = vector.load %arg12[%c0_121, %c0_122, %c0_123] : memref<2x1x64xf32, #tpu.memory_space<vmem>>, vector<1x1x64xf32>
    %255 = vector.shape_cast %254 : vector<1x1x64xf32> to vector<1x64xf32>
    %256 = vector.broadcast %255 : vector<1x64xf32> to vector<16x64xf32>
    %257 = arith.addf %253, %256 : vector<16x64xf32>
    %258 = arith.addf %139, %257 : vector<16x64xf32>
    %259 = arith.truncf %258 : vector<16x64xf32> to vector<16x64xbf16>
    %cst_124 = arith.constant dense<0.000000e+00> : vector<8x64xf32>
    %260 = tpu.matmul %140, %259, %cst_124 {dimension_numbers = #tpu.dot_dimension_numbers<[1], [0], [0], [1], [0, 0, 1, 1], [], []>} : vector<8x16xbf16>, vector<16x64xbf16>, vector<8x64xf32> -> vector<8x64xf32>
    %261 = arith.truncf %260 : vector<8x64xf32> to vector<8x64xbf16>
    %cst_125 = arith.constant dense<0.000000e+00> : vector<8x64xf32>
    %262 = tpu.matmul %261, %4, %cst_125 {dimension_numbers = #tpu.dot_dimension_numbers<[1], [0], [0], [1], [0, 0, 1, 1], [], []>} : vector<8x64xbf16>, vector<64x64xbf16>, vector<8x64xf32> -> vector<8x64xf32>
    %263 = arith.subf %260, %262 : vector<8x64xf32>
    %264 = arith.mulf %263, %263 : vector<8x64xf32>
    %265 = arith.truncf %264 : vector<8x64xf32> to vector<8x64xbf16>
    %cst_126 = arith.constant dense<0.000000e+00> : vector<8x64xf32>
    %266 = tpu.matmul %265, %4, %cst_126 {dimension_numbers = #tpu.dot_dimension_numbers<[1], [0], [0], [1], [0, 0, 1, 1], [], []>} : vector<8x64xbf16>, vector<64x64xbf16>, vector<8x64xf32> -> vector<8x64xf32>
    %cst_127 = arith.constant 9.99999974E-6 : f32
    %267 = vector.broadcast %cst_127 : f32 to vector<8x64xf32>
    %268 = arith.addf %266, %267 : vector<8x64xf32>
    %269 = math.rsqrt %268 : vector<8x64xf32>
    %270 = arith.mulf %263, %269 : vector<8x64xf32>
    %271 = vector.broadcast %2 : vector<1x64xf32> to vector<8x64xf32>
    %272 = arith.mulf %270, %271 : vector<8x64xf32>
    %273 = vector.broadcast %3 : vector<1x64xf32> to vector<8x64xf32>
    %274 = arith.addf %272, %273 : vector<8x64xf32>
    %275 = arith.truncf %274 : vector<8x64xf32> to vector<8x64xbf16>
    %c4 = arith.constant 4 : index
    %c0_128 = arith.constant 0 : index
    %c0_129 = arith.constant 0 : index
    %276 = vector.load %arg7[%c4, %c0_128, %c0_129] : memref<5x64x192xbf16, #tpu.memory_space<vmem>>, vector<1x64x192xbf16>
    %277 = vector.shape_cast %276 : vector<1x64x192xbf16> to vector<64x192xbf16>
    %cst_130 = arith.constant dense<0.000000e+00> : vector<8x192xf32>
    %278 = tpu.matmul %275, %277, %cst_130 {dimension_numbers = #tpu.dot_dimension_numbers<[1], [0], [0], [1], [0, 0, 1, 1], [], []>} : vector<8x64xbf16>, vector<64x192xbf16>, vector<8x192xf32> -> vector<8x192xf32>
    %c4_131 = arith.constant 4 : index
    %c0_132 = arith.constant 0 : index
    %c0_133 = arith.constant 0 : index
    %279 = vector.load %arg8[%c4_131, %c0_132, %c0_133] : memref<5x1x192xf32, #tpu.memory_space<vmem>>, vector<1x1x192xf32>
    %280 = vector.shape_cast %279 : vector<1x1x192xf32> to vector<1x192xf32>
    %281 = vector.broadcast %280 : vector<1x192xf32> to vector<8x192xf32>
    %282 = arith.addf %278, %281 : vector<8x192xf32>
    %283 = vector.extract_strided_slice %282 {offsets = [0, 0], sizes = [8, 64], strides = [1, 1]} : vector<8x192xf32> to vector<8x64xf32>
    %284 = vector.extract_strided_slice %282 {offsets = [0, 64], sizes = [8, 64], strides = [1, 1]} : vector<8x192xf32> to vector<8x64xf32>
    %285 = vector.extract_strided_slice %282 {offsets = [0, 128], sizes = [8, 64], strides = [1, 1]} : vector<8x192xf32> to vector<8x64xf32>
    %286 = tpu.concatenate %284, %284, %284, %284 in 0 : vector<8x64xf32>, vector<8x64xf32>, vector<8x64xf32>, vector<8x64xf32> -> vector<32x64xf32>
    %287 = arith.mulf %286, %33 : vector<32x64xf32>
    %288 = arith.truncf %287 : vector<32x64xf32> to vector<32x64xbf16>
    %289 = tpu.concatenate %285, %285, %285, %285 in 0 : vector<8x64xf32>, vector<8x64xf32>, vector<8x64xf32>, vector<8x64xf32> -> vector<32x64xf32>
    %290 = arith.mulf %289, %33 : vector<32x64xf32>
    %291 = arith.truncf %290 : vector<32x64xf32> to vector<32x64xbf16>
    %292 = arith.truncf %283 : vector<8x64xf32> to vector<8x64xbf16>
    %cst_134 = arith.constant dense<0.000000e+00> : vector<8x32xf32>
    %293 = tpu.matmul %292, %288, %cst_134 {dimension_numbers = #tpu.dot_dimension_numbers<[1], [1], [0], [0], [0, 0, 1, 0], [], []>} : vector<8x64xbf16>, vector<32x64xbf16>, vector<8x32xf32> -> vector<8x32xf32>
    %cst_135 = arith.constant 0.353553385 : f32
    %294 = vector.broadcast %cst_135 : f32 to vector<8x32xf32>
    %295 = arith.mulf %293, %294 : vector<8x32xf32>
    %296 = arith.addf %295, %34 : vector<8x32xf32>
    %297 = math.exp %296 : vector<8x32xf32>
    %298 = arith.truncf %297 : vector<8x32xf32> to vector<8x32xbf16>
    %cst_136 = arith.constant dense<0.000000e+00> : vector<8x32xf32>
    %299 = tpu.matmul %298, %35, %cst_136 {dimension_numbers = #tpu.dot_dimension_numbers<[1], [0], [0], [1], [0, 0, 1, 1], [], []>} : vector<8x32xbf16>, vector<32x32xbf16>, vector<8x32xf32> -> vector<8x32xf32>
    %300 = tpu.reciprocal %299 {approx = true} : vector<8x32xf32> -> vector<8x32xf32>
    %301 = arith.mulf %297, %300 : vector<8x32xf32>
    %302 = arith.truncf %301 : vector<8x32xf32> to vector<8x32xbf16>
    %cst_137 = arith.constant dense<0.000000e+00> : vector<8x64xf32>
    %303 = tpu.matmul %302, %291, %cst_137 {dimension_numbers = #tpu.dot_dimension_numbers<[1], [0], [0], [1], [0, 0, 1, 1], [], []>} : vector<8x32xbf16>, vector<32x64xbf16>, vector<8x64xf32> -> vector<8x64xf32>
    %304 = arith.truncf %303 : vector<8x64xf32> to vector<8x64xbf16>
    %c4_138 = arith.constant 4 : index
    %c0_139 = arith.constant 0 : index
    %c0_140 = arith.constant 0 : index
    %305 = vector.load %arg9[%c4_138, %c0_139, %c0_140] : memref<5x64x64xbf16, #tpu.memory_space<vmem>>, vector<1x64x64xbf16>
    %306 = vector.shape_cast %305 : vector<1x64x64xbf16> to vector<64x64xbf16>
    %cst_141 = arith.constant dense<0.000000e+00> : vector<8x64xf32>
    %307 = tpu.matmul %304, %306, %cst_141 {dimension_numbers = #tpu.dot_dimension_numbers<[1], [0], [0], [1], [0, 0, 1, 1], [], []>} : vector<8x64xbf16>, vector<64x64xbf16>, vector<8x64xf32> -> vector<8x64xf32>
    %c4_142 = arith.constant 4 : index
    %c0_143 = arith.constant 0 : index
    %c0_144 = arith.constant 0 : index
    %308 = vector.load %arg10[%c4_142, %c0_143, %c0_144] : memref<5x1x64xf32, #tpu.memory_space<vmem>>, vector<1x1x64xf32>
    %309 = vector.shape_cast %308 : vector<1x1x64xf32> to vector<1x64xf32>
    %310 = vector.broadcast %309 : vector<1x64xf32> to vector<8x64xf32>
    %311 = arith.addf %307, %310 : vector<8x64xf32>
    %312 = arith.addf %260, %311 : vector<8x64xf32>
    %313 = arith.truncf %312 : vector<8x64xf32> to vector<8x64xbf16>
    %cst_145 = arith.constant dense<0.000000e+00> : vector<16x64xf32>
    %314 = tpu.matmul %141, %313, %cst_145 {dimension_numbers = #tpu.dot_dimension_numbers<[1], [0], [0], [1], [0, 0, 1, 1], [], []>} : vector<16x8xbf16>, vector<8x64xbf16>, vector<16x64xf32> -> vector<16x64xf32>
    %315 = arith.truncf %314 : vector<16x64xf32> to vector<16x64xbf16>
    %c1_146 = arith.constant 1 : index
    %c0_147 = arith.constant 0 : index
    %c0_148 = arith.constant 0 : index
    %316 = vector.load %arg11[%c1_146, %c0_147, %c0_148] : memref<2x64x64xbf16, #tpu.memory_space<vmem>>, vector<1x64x64xbf16>
    %317 = vector.shape_cast %316 : vector<1x64x64xbf16> to vector<64x64xbf16>
    %cst_149 = arith.constant dense<0.000000e+00> : vector<16x64xf32>
    %318 = tpu.matmul %315, %317, %cst_149 {dimension_numbers = #tpu.dot_dimension_numbers<[1], [0], [0], [1], [0, 0, 1, 1], [], []>} : vector<16x64xbf16>, vector<64x64xbf16>, vector<16x64xf32> -> vector<16x64xf32>
    %c1_150 = arith.constant 1 : index
    %c0_151 = arith.constant 0 : index
    %c0_152 = arith.constant 0 : index
    %319 = vector.load %arg12[%c1_150, %c0_151, %c0_152] : memref<2x1x64xf32, #tpu.memory_space<vmem>>, vector<1x1x64xf32>
    %320 = vector.shape_cast %319 : vector<1x1x64xf32> to vector<1x64xf32>
    %321 = vector.broadcast %320 : vector<1x64xf32> to vector<16x64xf32>
    %322 = arith.addf %318, %321 : vector<16x64xf32>
    %323 = arith.addf %258, %322 : vector<16x64xf32>
    %324 = arith.truncf %323 : vector<16x64xf32> to vector<16x64xbf16>
    %cst_153 = arith.constant dense<0.000000e+00> : vector<16x64xf32>
    %325 = tpu.matmul %324, %4, %cst_153 {dimension_numbers = #tpu.dot_dimension_numbers<[1], [0], [0], [1], [0, 0, 1, 1], [], []>} : vector<16x64xbf16>, vector<64x64xbf16>, vector<16x64xf32> -> vector<16x64xf32>
    %326 = arith.subf %323, %325 : vector<16x64xf32>
    %327 = arith.mulf %326, %326 : vector<16x64xf32>
    %328 = arith.truncf %327 : vector<16x64xf32> to vector<16x64xbf16>
    %cst_154 = arith.constant dense<0.000000e+00> : vector<16x64xf32>
    %329 = tpu.matmul %328, %4, %cst_154 {dimension_numbers = #tpu.dot_dimension_numbers<[1], [0], [0], [1], [0, 0, 1, 1], [], []>} : vector<16x64xbf16>, vector<64x64xbf16>, vector<16x64xf32> -> vector<16x64xf32>
    %cst_155 = arith.constant 9.99999974E-6 : f32
    %330 = vector.broadcast %cst_155 : f32 to vector<16x64xf32>
    %331 = arith.addf %329, %330 : vector<16x64xf32>
    %332 = math.rsqrt %331 : vector<16x64xf32>
    %333 = arith.mulf %326, %332 : vector<16x64xf32>
    %334 = vector.broadcast %2 : vector<1x64xf32> to vector<16x64xf32>
    %335 = arith.mulf %333, %334 : vector<16x64xf32>
    %336 = vector.broadcast %3 : vector<1x64xf32> to vector<16x64xf32>
    %337 = arith.addf %335, %336 : vector<16x64xf32>
    %338 = arith.truncf %337 : vector<16x64xf32> to vector<16x64xbf16>
    %c0_156 = arith.constant 0 : index
    %c0_157 = arith.constant 0 : index
    %339 = vector.load %arg22[%c0_156, %c0_157] : memref<64x32xbf16, #tpu.memory_space<vmem>>, vector<64x32xbf16>
    %cst_158 = arith.constant dense<0.000000e+00> : vector<16x32xf32>
    %340 = tpu.matmul %338, %339, %cst_158 {dimension_numbers = #tpu.dot_dimension_numbers<[1], [0], [0], [1], [0, 0, 1, 1], [], []>} : vector<16x64xbf16>, vector<64x32xbf16>, vector<16x32xf32> -> vector<16x32xf32>
    %341 = arith.mulf %337, %337 : vector<16x64xf32>
    %342 = arith.truncf %341 : vector<16x64xf32> to vector<16x64xbf16>
    %c0_159 = arith.constant 0 : index
    %c0_160 = arith.constant 0 : index
    %343 = vector.load %arg24[%c0_159, %c0_160] : memref<64x32xbf16, #tpu.memory_space<vmem>>, vector<64x32xbf16>
    %cst_161 = arith.constant dense<0.000000e+00> : vector<16x32xf32>
    %344 = tpu.matmul %342, %343, %cst_161 {dimension_numbers = #tpu.dot_dimension_numbers<[1], [0], [0], [1], [0, 0, 1, 1], [], []>} : vector<16x64xbf16>, vector<64x32xbf16>, vector<16x32xf32> -> vector<16x32xf32>
    %cst_162 = arith.constant 9.99999993E-9 : f32
    %345 = vector.broadcast %cst_162 : f32 to vector<16x32xf32>
    %346 = arith.addf %344, %345 : vector<16x32xf32>
    %347 = math.rsqrt %346 : vector<16x32xf32>
    %348 = arith.mulf %340, %347 : vector<16x32xf32>
    %cst_163 = arith.constant dense<0xFF800000> : vector<16xf32>
    %349 = vector.multi_reduction <maximumf>, %348, %cst_163 [1] : vector<16x32xf32> to vector<16xf32>
    %350 = vector.shape_cast %349 : vector<16xf32> to vector<16x1xf32>
    %351 = vector.broadcast %350 : vector<16x1xf32> to vector<16x32xf32>
    %352 = arith.subf %348, %351 : vector<16x32xf32>
    %353 = math.exp %352 : vector<16x32xf32>
    %cst_164 = arith.constant dense<0.000000e+00> : vector<16xf32>
    %354 = vector.multi_reduction <add>, %353, %cst_164 [1] : vector<16x32xf32> to vector<16xf32>
    %355 = vector.shape_cast %354 : vector<16xf32> to vector<16x1xf32>
    %356 = tpu.reciprocal %355 {approx = true} : vector<16x1xf32> -> vector<16x1xf32>
    %357 = vector.broadcast %356 : vector<16x1xf32> to vector<16x32xf32>
    %358 = arith.mulf %353, %357 : vector<16x32xf32>
    %359 = arith.truncf %358 : vector<16x32xf32> to vector<16x32xbf16>
    %c0_165 = arith.constant 0 : index
    %c0_166 = arith.constant 0 : index
    %360 = vector.load %arg23[%c0_165, %c0_166] : memref<32x64xbf16, #tpu.memory_space<vmem>>, vector<32x64xbf16>
    %cst_167 = arith.constant dense<0.000000e+00> : vector<16x64xf32>
    %361 = tpu.matmul %359, %360, %cst_167 {dimension_numbers = #tpu.dot_dimension_numbers<[1], [0], [0], [1], [0, 0, 1, 1], [], []>} : vector<16x32xbf16>, vector<32x64xbf16>, vector<16x64xf32> -> vector<16x64xf32>
    %362 = arith.truncf %361 : vector<16x64xf32> to vector<16x64xbf16>
    %c0_168 = arith.constant 0 : index
    %c0_169 = arith.constant 0 : index
    %363 = vector.load %arg25[%c0_168, %c0_169] : memref<64x64xbf16, #tpu.memory_space<vmem>>, vector<64x64xbf16>
    %cst_170 = arith.constant dense<0.000000e+00> : vector<16x64xf32>
    %364 = tpu.matmul %362, %363, %cst_170 {dimension_numbers = #tpu.dot_dimension_numbers<[1], [0], [0], [1], [0, 0, 1, 1], [], []>} : vector<16x64xbf16>, vector<64x64xbf16>, vector<16x64xf32> -> vector<16x64xf32>
    %c0_171 = arith.constant 0 : index
    %c0_172 = arith.constant 0 : index
    %365 = vector.load %arg26[%c0_171, %c0_172] : memref<1x64xf32, #tpu.memory_space<vmem>>, vector<1x64xf32>
    %366 = vector.broadcast %365 : vector<1x64xf32> to vector<16x64xf32>
    %367 = arith.addf %364, %366 : vector<16x64xf32>
    %368 = arith.addf %337, %367 : vector<16x64xf32>
    %369 = arith.truncf %368 : vector<16x64xf32> to vector<16x64xbf16>
    %cst_173 = arith.constant dense<0.000000e+00> : vector<16x64xf32>
    %370 = tpu.matmul %369, %4, %cst_173 {dimension_numbers = #tpu.dot_dimension_numbers<[1], [0], [0], [1], [0, 0, 1, 1], [], []>} : vector<16x64xbf16>, vector<64x64xbf16>, vector<16x64xf32> -> vector<16x64xf32>
    %371 = arith.subf %368, %370 : vector<16x64xf32>
    %372 = arith.mulf %371, %371 : vector<16x64xf32>
    %373 = arith.truncf %372 : vector<16x64xf32> to vector<16x64xbf16>
    %cst_174 = arith.constant dense<0.000000e+00> : vector<16x64xf32>
    %374 = tpu.matmul %373, %4, %cst_174 {dimension_numbers = #tpu.dot_dimension_numbers<[1], [0], [0], [1], [0, 0, 1, 1], [], []>} : vector<16x64xbf16>, vector<64x64xbf16>, vector<16x64xf32> -> vector<16x64xf32>
    %cst_175 = arith.constant 9.99999974E-6 : f32
    %375 = vector.broadcast %cst_175 : f32 to vector<16x64xf32>
    %376 = arith.addf %374, %375 : vector<16x64xf32>
    %377 = math.rsqrt %376 : vector<16x64xf32>
    %378 = arith.mulf %371, %377 : vector<16x64xf32>
    %379 = vector.broadcast %0 : vector<1x64xf32> to vector<16x64xf32>
    %380 = arith.mulf %378, %379 : vector<16x64xf32>
    %381 = vector.broadcast %1 : vector<1x64xf32> to vector<16x64xf32>
    %382 = arith.addf %380, %381 : vector<16x64xf32>
    %383 = arith.mulf %382, %382 : vector<16x64xf32>
    %384 = arith.truncf %383 : vector<16x64xf32> to vector<16x64xbf16>
    %c0_176 = arith.constant 0 : index
    %c0_177 = arith.constant 0 : index
    %385 = vector.load %arg27[%c0_176, %c0_177] : memref<64x128xbf16, #tpu.memory_space<vmem>>, vector<64x128xbf16>
    %cst_178 = arith.constant dense<0.000000e+00> : vector<16x128xf32>
    %386 = tpu.matmul %384, %385, %cst_178 {dimension_numbers = #tpu.dot_dimension_numbers<[1], [0], [0], [1], [0, 0, 1, 1], [], []>} : vector<16x64xbf16>, vector<64x128xbf16>, vector<16x128xf32> -> vector<16x128xf32>
    %c0_179 = arith.constant 0 : index
    %c0_180 = arith.constant 0 : index
    %387 = vector.load %arg28[%c0_179, %c0_180] : memref<1x128xf32, #tpu.memory_space<vmem>>, vector<1x128xf32>
    %388 = vector.broadcast %387 : vector<1x128xf32> to vector<16x128xf32>
    %389 = arith.addf %386, %388 : vector<16x128xf32>
    %cst_181 = arith.constant 0.000000e+00 : f32
    %390 = vector.broadcast %cst_181 : f32 to vector<16x128xf32>
    %391 = arith.maximumf %389, %390 : vector<16x128xf32>
    %cst_182 = arith.constant 1.000000e-10 : f32
    %392 = vector.broadcast %cst_182 : f32 to vector<16x128xf32>
    %393 = arith.addf %391, %392 : vector<16x128xf32>
    %c0_183 = arith.constant 0 : index
    %c0_184 = arith.constant 0 : index
    %394 = vector.load %arg29[%c0_183, %c0_184] : memref<16x128xf32, #tpu.memory_space<vmem>>, vector<16x128xf32>
    tpu.vector_store %arg29[%c0_183, %c0_184], %393 {strides = array<i32>} : memref<16x128xf32, #tpu.memory_space<vmem>>, vector<16x128xf32>,
    return
  }
}

</mosaic_0001>

<llo_original>
// kernel: forward.1
$region0: #{forward.1}
  #allocation0 [shape = 'u32[]', space=smem, size = 0x4, offset = 0x4, fixed_abs, tag = 'smem constant byte address 0x4 - core index']
  #allocation1 [shape = 'u32[144,128]{1,0:T(1,128)}', space=vmem, size = 0x12000, scoped, tag = 'internal scratch']
  %s0 = inlined_call_operand.smem [shape: u32[30], index: -1, kind: input, shape index: {}]
  %s1 = sld [smem:[%s0]]
  %s2 = scalar_lea.smem %s0, 1
  %s3 = sld [smem:[%s2]]
  %s4 = scalar_lea.smem %s0, 2
  %s5 = sld [smem:[%s4]]
  %s6 = scalar_lea.smem %s0, 3
  %s7 = sld [smem:[%s6]]
  %s8 = scalar_lea.smem %s0, 4
  %s9 = sld [smem:[%s8]]
  %s10 = scalar_lea.smem %s0, 5
  %s11 = sld [smem:[%s10]]
  %s12 = scalar_lea.smem %s0, 6
  %s13 = sld [smem:[%s12]]
  %s14 = scalar_lea.smem %s0, 7
  %s15 = sld [smem:[%s14]]
  %s16 = scalar_lea.smem %s0, 8
  %s17 = sld [smem:[%s16]]
  %s18 = scalar_lea.smem %s0, 9
  %s19 = sld [smem:[%s18]]
  %s20 = scalar_lea.smem %s0, 10
  %s21 = sld [smem:[%s20]]
  %s22 = scalar_lea.smem %s0, 11
  %s23 = sld [smem:[%s22]]
  %s24 = scalar_lea.smem %s0, 12
  %s25 = sld [smem:[%s24]]
  %s26 = scalar_lea.smem %s0, 13
  %s27 = sld [smem:[%s26]]
  %s28 = scalar_lea.smem %s0, 14
  %s29 = sld [smem:[%s28]]
  %s30 = scalar_lea.smem %s0, 15
  %s31 = sld [smem:[%s30]]
  %s32 = scalar_lea.smem %s0, 16
  %s33 = sld [smem:[%s32]]
  %s34 = scalar_lea.smem %s0, 17
  %s35 = sld [smem:[%s34]]
  %s36 = scalar_lea.smem %s0, 18
  %s37 = sld [smem:[%s36]]
  %s38 = scalar_lea.smem %s0, 19
  %s39 = sld [smem:[%s38]]
  %s40 = scalar_lea.smem %s0, 20
  %s41 = sld [smem:[%s40]]
  %s42 = scalar_lea.smem %s0, 21
  %s43 = sld [smem:[%s42]]
  %s44 = scalar_lea.smem %s0, 22
  %s45 = sld [smem:[%s44]]
  %s46 = scalar_lea.smem %s0, 23
  %s47 = sld [smem:[%s46]]
  %s48 = scalar_lea.smem %s0, 24
  %s49 = sld [smem:[%s48]]
  %s50 = scalar_lea.smem %s0, 25
  %s51 = sld [smem:[%s50]]
  %s52 = scalar_lea.smem %s0, 26
  %s53 = sld [smem:[%s52]]
  %s54 = scalar_lea.smem %s0, 27
  %s55 = sld [smem:[%s54]]
  %s56 = scalar_lea.smem %s0, 28
  %s57 = sld [smem:[%s56]]
  %s58 = scalar_lea.smem %s0, 29
  %s59 = sld [smem:[%s58]]
  %s60 = sld [smem:[#allocation0]]
  $region202: #{forward.1} parent=0
    _
  %s62 = ssub.s32 1, %s60
  %s63 = scalar_select 0, %s62, %s60
  $region1: #{forward.1} parent=0
    #allocation2 [shape = 'u8[512]{0}', space=vmem, size = 0x400, scoped, tag = 'input window, operand 3, single buffered']
    #allocation3 [shape = 's32[1]{0}', space=sflag, size = 0x4, scoped, tag = 'scoped memory for forward.1']
    #allocation4 [shape = 'u8[512]{0}', space=vmem, size = 0x400, scoped, tag = 'input window, operand 4, single buffered']
    #allocation5 [shape = 's32[1]{0}', space=sflag, size = 0x4, scoped, tag = 'scoped memory for forward.1']
    #allocation6 [shape = 'u8[512]{0}', space=vmem, size = 0x400, scoped, tag = 'input window, operand 5, single buffered']
    #allocation7 [shape = 'u8[163840]{0}', space=vmem, size = 0x28000, scoped, tag = 'input window, operand 7, single buffered']
    #allocation8 [shape = 's32[1]{0}', space=sflag, size = 0x4, scoped, tag = 'scoped memory for forward.1']
    #allocation9 [shape = 'u8[5120]{0}', space=vmem, size = 0x1400, scoped, tag = 'input window, operand 8, single buffered']
    #allocation10 [shape = 'u8[2560]{0}', space=vmem, size = 0xc00, scoped, tag = 'input window, operand 10, single buffered']
    #allocation11 [shape = 's32[1]{0}', space=sflag, size = 0x4, scoped, tag = 'scoped memory for forward.1']
    #allocation12 [shape = 'u8[1024]{0}', space=vmem, size = 0x400, scoped, tag = 'input window, operand 12, single buffered']
    #allocation13 [shape = 'u8[16384]{0}', space=vmem, size = 0x4000, scoped, tag = 'input window, operand 13, single buffered']
    #allocation14 [shape = 's32[1]{0}', space=sflag, size = 0x4, scoped, tag = 'scoped memory for forward.1']
    #allocation15 [shape = 'u8[2048]{0}', space=vmem, size = 0x800, scoped, tag = 'input window, operand 14, single buffered']
    #allocation16 [shape = 'u8[32768]{0}', space=vmem, size = 0x8000, scoped, tag = 'input window, operand 16, single buffered']
    #allocation17 [shape = 's32[1]{0}', space=sflag, size = 0x4, scoped, tag = 'scoped memory for forward.1']
    #allocation18 [shape = 'u8[16384]{0}', space=vmem, size = 0x4000, scoped, tag = 'input window, operand 17, single buffered']
    #allocation19 [shape = 'u8[8192]{0}', space=vmem, size = 0x2000, scoped, tag = 'input window, operand 18, single buffered']
    #allocation20 [shape = 's32[1]{0}', space=sflag, size = 0x4, scoped, tag = 'scoped memory for forward.1']
    #allocation21 [shape = 'u8[4096]{0}', space=vmem, size = 0x1000, scoped, tag = 'input window, operand 19, single buffered']
    #allocation22 [shape = 'u8[16384]{0}', space=vmem, size = 0x4000, scoped, tag = 'input window, operand 20, single buffered']
    #allocation23 [shape = 's32[1]{0}', space=sflag, size = 0x4, scoped, tag = 'scoped memory for forward.1']
    #allocation24 [shape = 'u8[8192]{0}', space=vmem, size = 0x2000, scoped, tag = 'input window, operand 21, single buffered']
    #allocation25 [shape = 'u8[8192]{0}', space=vmem, size = 0x2000, scoped, tag = 'input window, operand 23, single buffered']
    #allocation26 [shape = 's32[1]{0}', space=sflag, size = 0x4, scoped, tag = 'scoped memory for forward.1']
    #allocation27 [shape = 'u8[512]{0}', space=vmem, size = 0x400, scoped, tag = 'input window, operand 26, single buffered']
    #allocation28 [shape = 'u8[16384]{0}', space=vmem, size = 0x4000, scoped, tag = 'input window, operand 27, single buffered']
    #allocation29 [shape = 's32[1]{0}', space=sflag, size = 0x4, scoped, tag = 'scoped memory for forward.1']
    #allocation30 [shape = 'u8[512]{0}', space=vmem, size = 0x400, scoped, tag = 'input window, operand 28, single buffered']
    %64 = vsyncpa [#allocation3], 0
    %65 = vsyncpa [#allocation5], 0
    %66 = vsyncpa [#allocation8], 0
    %67 = vsyncpa [#allocation11], 0
    %68 = vsyncpa [#allocation14], 0
    %69 = vsyncpa [#allocation17], 0
    %70 = vsyncpa [#allocation20], 0
    %71 = vsyncpa [#allocation23], 0
    %72 = vsyncpa [#allocation26], 0
    %73 = vsyncpa [#allocation29], 0
    // Predicated region
    $region2: #{forward.1} parent=1 // pred_check
      _
    $region3: #{forward.1} parent=1 // pred_check_branch
      %75 = sbr.rel (0) target = $region5
    $region4: #{forward.1} parent=1 // pred_region
      _
    $region5: #{forward.1} parent=1 // pred_fallthru
      _
    // Predicated region
    $region6: #{forward.1} parent=1 // pred_check
      _
    $region7: #{forward.1} parent=1 // pred_check_branch
      %77 = sbr.rel (0) target = $region9
    $region8: #{forward.1} parent=1 // pred_region
      _
    $region9: #{forward.1} parent=1 // pred_fallthru
      _
    // Predicated region
    $region10: #{forward.1} parent=1 // pred_check
      _
    $region11: #{forward.1} parent=1 // pred_check_branch
      %79 = sbr.rel (0) target = $region13
    $region12: #{forward.1} parent=1 // pred_region
      _
    $region13: #{forward.1} parent=1 // pred_fallthru
      _
    // Predicated region
    $region14: #{forward.1} parent=1 // pred_check
      _
    $region15: #{forward.1} parent=1 // pred_check_branch
      %81 = sbr.rel (0) target = $region17
    $region16: #{forward.1} parent=1 // pred_region
      %s83 = ssub.s32 16, 16
      %84 = vsyncadd [#allocation3], %s83
      %s86 = sshll.u32 [#allocation2], 4
      %s87 = int_to_ptr.vmem [resolvable:$true] %s86
      %89 = dma.hbm_to_vmem [thread:$0]  %s7, 16, %s87, [#allocation3]
    $region17: #{forward.1} parent=1 // pred_fallthru
      _
    // Predicated region
    $region18: #{forward.1} parent=1 // pred_check
      _
    $region19: #{forward.1} parent=1 // pred_check_branch
      %91 = sbr.rel (0) target = $region21
    $region20: #{forward.1} parent=1 // pred_region
      %s93 = ssub.s32 16, 16
      %94 = vsyncadd [#allocation5], %s93
      %s96 = sshll.u32 [#allocation4], 4
      %s97 = int_to_ptr.vmem [resolvable:$true] %s96
      %99 = dma.hbm_to_vmem [thread:$0]  %s9, 16, %s97, [#allocation5]
    $region21: #{forward.1} parent=1 // pred_fallthru
      _
    // Predicated region
    $region22: #{forward.1} parent=1 // pred_check
      _
    $region23: #{forward.1} parent=1 // pred_check_branch
      %101 = sbr.rel (0) target = $region25
    $region24: #{forward.1} parent=1 // pred_region
      %s103 = ssub.s32 16, 16
      %104 = vsyncadd [#allocation5], %s103
      %s106 = sshll.u32 [#allocation6], 4
      %s107 = int_to_ptr.vmem [resolvable:$true] %s106
      %109 = dma.hbm_to_vmem [thread:$0]  %s11, 16, %s107, [#allocation5]
    $region25: #{forward.1} parent=1 // pred_fallthru
      _
    // Predicated region
    $region26: #{forward.1} parent=1 // pred_check
      _
    $region27: #{forward.1} parent=1 // pred_check_branch
      %111 = sbr.rel (0) target = $region29
    $region28: #{forward.1} parent=1 // pred_region
      _
    $region29: #{forward.1} parent=1 // pred_fallthru
      _
    // Predicated region
    $region30: #{forward.1} parent=1 // pred_check
      _
    $region31: #{forward.1} parent=1 // pred_check_branch
      %113 = sbr.rel (0) target = $region33
    $region32: #{forward.1} parent=1 // pred_region
      %s115 = ssub.s32 5120, 5120
      %116 = vsyncadd [#allocation8], %s115
      %s117 = sshll.u32 [#allocation7], 4
      %s118 = int_to_ptr.vmem [resolvable:$true] %s117
      %123 = dma.hbm_to_vmem [thread:$0]  %s15, 5120, %s118, [#allocation8], 128, 128, 8
    $region33: #{forward.1} parent=1 // pred_fallthru
      _
    // Predicated region
    $region34: #{forward.1} parent=1 // pred_check
      _
    $region35: #{forward.1} parent=1 // pred_check_branch
      %125 = sbr.rel (0) target = $region37
    $region36: #{forward.1} parent=1 // pred_region
      %s127 = ssub.s32 160, 160
      %128 = vsyncadd [#allocation8], %s127
      %s129 = sshll.u32 [#allocation9], 4
      %s130 = int_to_ptr.vmem [resolvable:$true] %s129
      %135 = dma.hbm_to_vmem [thread:$0]  %s17, 160, %s130, [#allocation8], 32, 32, 2
    $region37: #{forward.1} parent=1 // pred_fallthru
      _
    // Predicated region
    $region38: #{forward.1} parent=1 // pred_check
      _
    $region39: #{forward.1} parent=1 // pred_check_branch
      %137 = sbr.rel (0) target = $region41
    $region40: #{forward.1} parent=1 // pred_region
      _
    $region41: #{forward.1} parent=1 // pred_fallthru
      _
    // Predicated region
    $region42: #{forward.1} parent=1 // pred_check
      _
    $region43: #{forward.1} parent=1 // pred_check_branch
      %139 = sbr.rel (0) target = $region45
    $region44: #{forward.1} parent=1 // pred_region
      %s141 = ssub.s32 80, 80
      %142 = vsyncadd [#allocation11], %s141
      %s143 = sshll.u32 [#allocation10], 4
      %s144 = int_to_ptr.vmem [resolvable:$true] %s143
      %149 = dma.hbm_to_vmem [thread:$0]  %s21, 80, %s144, [#allocation11], 16, 16, 1
    $region45: #{forward.1} parent=1 // pred_fallthru
      _
    // Predicated region
    $region46: #{forward.1} parent=1 // pred_check
      _
    $region47: #{forward.1} parent=1 // pred_check_branch
      %151 = sbr.rel (0) target = $region49
    $region48: #{forward.1} parent=1 // pred_region
      _
    $region49: #{forward.1} parent=1 // pred_fallthru
      _
    // Predicated region
    $region50: #{forward.1} parent=1 // pred_check
      _
    $region51: #{forward.1} parent=1 // pred_check_branch
      %153 = sbr.rel (0) target = $region53
    $region52: #{forward.1} parent=1 // pred_region
      %s155 = ssub.s32 32, 32
      %156 = vsyncadd [#allocation11], %s155
      %s157 = sshll.u32 [#allocation12], 4
      %s158 = int_to_ptr.vmem [resolvable:$true] %s157
      %163 = dma.hbm_to_vmem [thread:$0]  %s25, 32, %s158, [#allocation11], 16, 16, 1
    $region53: #{forward.1} parent=1 // pred_fallthru
      _
    // Predicated region
    $region54: #{forward.1} parent=1 // pred_check
      _
    $region55: #{forward.1} parent=1 // pred_check_branch
      %165 = sbr.rel (0) target = $region57
    $region56: #{forward.1} parent=1 // pred_region
      %s167 = ssub.s32 512, 512
      %168 = vsyncadd [#allocation14], %s167
      %s169 = sshll.u32 [#allocation13], 4
      %s170 = int_to_ptr.vmem [resolvable:$true] %s169
      %175 = dma.hbm_to_vmem [thread:$0]  %s27, 512, %s170, [#allocation14], 64, 64, 4
    $region57: #{forward.1} parent=1 // pred_fallthru
      _
    // Predicated region
    $region58: #{forward.1} parent=1 // pred_check
      _
    $region59: #{forward.1} parent=1 // pred_check_branch
      %177 = sbr.rel (0) target = $region61
    $region60: #{forward.1} parent=1 // pred_region
      %s179 = ssub.s32 64, 64
      %180 = vsyncadd [#allocation14], %s179
      %s182 = sshll.u32 [#allocation15], 4
      %s183 = int_to_ptr.vmem [resolvable:$true] %s182
      %185 = dma.hbm_to_vmem [thread:$0]  %s29, 64, %s183, [#allocation14]
    $region61: #{forward.1} parent=1 // pred_fallthru
      _
    // Predicated region
    $region62: #{forward.1} parent=1 // pred_check
      _
    $region63: #{forward.1} parent=1 // pred_check_branch
      %187 = sbr.rel (0) target = $region65
    $region64: #{forward.1} parent=1 // pred_region
      _
    $region65: #{forward.1} parent=1 // pred_fallthru
      _
    // Predicated region
    $region66: #{forward.1} parent=1 // pred_check
      _
    $region67: #{forward.1} parent=1 // pred_check_branch
      %189 = sbr.rel (0) target = $region69
    $region68: #{forward.1} parent=1 // pred_region
      %s191 = ssub.s32 1024, 1024
      %192 = vsyncadd [#allocation17], %s191
      %s193 = sshll.u32 [#allocation16], 4
      %s194 = int_to_ptr.vmem [resolvable:$true] %s193
      %199 = dma.hbm_to_vmem [thread:$0]  %s33, 1024, %s194, [#allocation17], 128, 128, 8
    $region69: #{forward.1} parent=1 // pred_fallthru
      _
    // Predicated region
    $region70: #{forward.1} parent=1 // pred_check
      _
    $region71: #{forward.1} parent=1 // pred_check_branch
      %201 = sbr.rel (0) target = $region73
    $region72: #{forward.1} parent=1 // pred_region
      %s203 = ssub.s32 512, 512
      %204 = vsyncadd [#allocation17], %s203
      %s205 = sshll.u32 [#allocation18], 4
      %s206 = int_to_ptr.vmem [resolvable:$true] %s205
      %211 = dma.hbm_to_vmem [thread:$0]  %s35, 512, %s206, [#allocation17], 128, 128, 8
    $region73: #{forward.1} parent=1 // pred_fallthru
      _
    // Predicated region
    $region74: #{forward.1} parent=1 // pred_check
      _
    $region75: #{forward.1} parent=1 // pred_check_branch
      %213 = sbr.rel (0) target = $region77
    $region76: #{forward.1} parent=1 // pred_region
      %s215 = ssub.s32 256, 256
      %216 = vsyncadd [#allocation20], %s215
      %s217 = sshll.u32 [#allocation19], 4
      %s218 = int_to_ptr.vmem [resolvable:$true] %s217
      %223 = dma.hbm_to_vmem [thread:$0]  %s37, 256, %s218, [#allocation20], 128, 128, 8
    $region77: #{forward.1} parent=1 // pred_fallthru
      _
    // Predicated region
    $region78: #{forward.1} parent=1 // pred_check
      _
    $region79: #{forward.1} parent=1 // pred_check_branch
      %225 = sbr.rel (0) target = $region81
    $region80: #{forward.1} parent=1 // pred_region
      %s227 = ssub.s32 128, 128
      %228 = vsyncadd [#allocation20], %s227
      %s230 = sshll.u32 [#allocation21], 4
      %s231 = int_to_ptr.vmem [resolvable:$true] %s230
      %233 = dma.hbm_to_vmem [thread:$0]  %s39, 128, %s231, [#allocation20]
    $region81: #{forward.1} parent=1 // pred_fallthru
      _
    // Predicated region
    $region82: #{forward.1} parent=1 // pred_check
      _
    $region83: #{forward.1} parent=1 // pred_check_branch
      %235 = sbr.rel (0) target = $region85
    $region84: #{forward.1} parent=1 // pred_region
      %s237 = ssub.s32 512, 512
      %238 = vsyncadd [#allocation23], %s237
      %s239 = sshll.u32 [#allocation22], 4
      %s240 = int_to_ptr.vmem [resolvable:$true] %s239
      %245 = dma.hbm_to_vmem [thread:$0]  %s41, 512, %s240, [#allocation23], 64, 64, 4
    $region85: #{forward.1} parent=1 // pred_fallthru
      _
    // Predicated region
    $region86: #{forward.1} parent=1 // pred_check
      _
    $region87: #{forward.1} parent=1 // pred_check_branch
      %247 = sbr.rel (0) target = $region89
    $region88: #{forward.1} parent=1 // pred_region
      %s249 = ssub.s32 256, 256
      %250 = vsyncadd [#allocation23], %s249
      %s251 = sshll.u32 [#allocation24], 4
      %s252 = int_to_ptr.vmem [resolvable:$true] %s251
      %257 = dma.hbm_to_vmem [thread:$0]  %s43, 256, %s252, [#allocation23], 64, 64, 4
    $region89: #{forward.1} parent=1 // pred_fallthru
      _
    // Predicated region
    $region90: #{forward.1} parent=1 // pred_check
      _
    $region91: #{forward.1} parent=1 // pred_check_branch
      %259 = sbr.rel (0) target = $region93
    $region92: #{forward.1} parent=1 // pred_region
      _
    $region93: #{forward.1} parent=1 // pred_fallthru
      _
    // Predicated region
    $region94: #{forward.1} parent=1 // pred_check
      _
    $region95: #{forward.1} parent=1 // pred_check_branch
      %261 = sbr.rel (0) target = $region97
    $region96: #{forward.1} parent=1 // pred_region
      %s263 = ssub.s32 256, 256
      %264 = vsyncadd [#allocation26], %s263
      %s265 = sshll.u32 [#allocation25], 4
      %s266 = int_to_ptr.vmem [resolvable:$true] %s265
      %271 = dma.hbm_to_vmem [thread:$0]  %s47, 256, %s266, [#allocation26], 64, 64, 4
    $region97: #{forward.1} parent=1 // pred_fallthru
      _
    // Predicated region
    $region98: #{forward.1} parent=1 // pred_check
      _
    $region99: #{forward.1} parent=1 // pred_check_branch
      %273 = sbr.rel (0) target = $region101
    $region100: #{forward.1} parent=1 // pred_region
      _
    $region101: #{forward.1} parent=1 // pred_fallthru
      _
    // Predicated region
    $region102: #{forward.1} parent=1 // pred_check
      _
    $region103: #{forward.1} parent=1 // pred_check_branch
      %275 = sbr.rel (0) target = $region105
    $region104: #{forward.1} parent=1 // pred_region
      _
    $region105: #{forward.1} parent=1 // pred_fallthru
      _
    // Predicated region
    $region106: #{forward.1} parent=1 // pred_check
      _
    $region107: #{forward.1} parent=1 // pred_check_branch
      %277 = sbr.rel (0) target = $region109
    $region108: #{forward.1} parent=1 // pred_region
      %s279 = ssub.s32 16, 16
      %280 = vsyncadd [#allocation26], %s279
      %s282 = sshll.u32 [#allocation27], 4
      %s283 = int_to_ptr.vmem [resolvable:$true] %s282
      %285 = dma.hbm_to_vmem [thread:$0]  %s53, 16, %s283, [#allocation26]
    $region109: #{forward.1} parent=1 // pred_fallthru
      _
    // Predicated region
    $region110: #{forward.1} parent=1 // pred_check
      _
    $region111: #{forward.1} parent=1 // pred_check_branch
      %287 = sbr.rel (0) target = $region113
    $region112: #{forward.1} parent=1 // pred_region
      %s289 = ssub.s32 512, 512
      %290 = vsyncadd [#allocation29], %s289
      %s291 = sshll.u32 [#allocation28], 4
      %s292 = int_to_ptr.vmem [resolvable:$true] %s291
      %297 = dma.hbm_to_vmem [thread:$0]  %s55, 512, %s292, [#allocation29], 64, 64, 4
    $region113: #{forward.1} parent=1 // pred_fallthru
      _
    // Predicated region
    $region114: #{forward.1} parent=1 // pred_check
      _
    $region115: #{forward.1} parent=1 // pred_check_branch
      %299 = sbr.rel (0) target = $region117
    $region116: #{forward.1} parent=1 // pred_region
      %s301 = ssub.s32 16, 16
      %302 = vsyncadd [#allocation29], %s301
      %s304 = sshll.u32 [#allocation30], 4
      %s305 = int_to_ptr.vmem [resolvable:$true] %s304
      %307 = dma.hbm_to_vmem [thread:$0]  %s57, 16, %s305, [#allocation29]
    $region117: #{forward.1} parent=1 // pred_fallthru
      _
    // Predicated region
    $region118: #{forward.1} parent=1 // pred_check
      _
    $region119: #{forward.1} parent=1 // pred_check_branch
      %309 = sbr.rel (0) target = $region121
    $region120: #{forward.1} parent=1 // pred_region
      %310 = dma.done [#allocation3], 16
    $region121: #{forward.1} parent=1 // pred_fallthru
      _
    // Predicated region
    $region122: #{forward.1} parent=1 // pred_check
      _
    $region123: #{forward.1} parent=1 // pred_check_branch
      %312 = sbr.rel (0) target = $region125
    $region124: #{forward.1} parent=1 // pred_region
      %313 = dma.done [#allocation5], 16
    $region125: #{forward.1} parent=1 // pred_fallthru
      _
    // Predicated region
    $region126: #{forward.1} parent=1 // pred_check
      _
    $region127: #{forward.1} parent=1 // pred_check_branch
      %315 = sbr.rel (0) target = $region129
    $region128: #{forward.1} parent=1 // pred_region
      %316 = dma.done [#allocation5], 16
    $region129: #{forward.1} parent=1 // pred_fallthru
      _
    // Predicated region
    $region130: #{forward.1} parent=1 // pred_check
      _
    $region131: #{forward.1} parent=1 // pred_check_branch
      %318 = sbr.rel (0) target = $region133
    $region132: #{forward.1} parent=1 // pred_region
      %319 = dma.done [#allocation8], 5120
    $region133: #{forward.1} parent=1 // pred_fallthru
      _
    // Predicated region
    $region134: #{forward.1} parent=1 // pred_check
      _
    $region135: #{forward.1} parent=1 // pred_check_branch
      %321 = sbr.rel (0) target = $region137
    $region136: #{forward.1} parent=1 // pred_region
      %322 = dma.done [#allocation8], 160
    $region137: #{forward.1} parent=1 // pred_fallthru
      _
    // Predicated region
    $region138: #{forward.1} parent=1 // pred_check
      _
    $region139: #{forward.1} parent=1 // pred_check_branch
      %324 = sbr.rel (0) target = $region141
    $region140: #{forward.1} parent=1 // pred_region
      %325 = dma.done [#allocation11], 80
    $region141: #{forward.1} parent=1 // pred_fallthru
      _
    // Predicated region
    $region142: #{forward.1} parent=1 // pred_check
      _
    $region143: #{forward.1} parent=1 // pred_check_branch
      %327 = sbr.rel (0) target = $region145
    $region144: #{forward.1} parent=1 // pred_region
      %328 = dma.done [#allocation11], 32
    $region145: #{forward.1} parent=1 // pred_fallthru
      _
    // Predicated region
    $region146: #{forward.1} parent=1 // pred_check
      _
    $region147: #{forward.1} parent=1 // pred_check_branch
      %330 = sbr.rel (0) target = $region149
    $region148: #{forward.1} parent=1 // pred_region
      %331 = dma.done [#allocation14], 512
    $region149: #{forward.1} parent=1 // pred_fallthru
      _
    // Predicated region
    $region150: #{forward.1} parent=1 // pred_check
      _
    $region151: #{forward.1} parent=1 // pred_check_branch
      %333 = sbr.rel (0) target = $region153
    $region152: #{forward.1} parent=1 // pred_region
      %334 = dma.done [#allocation14], 64
    $region153: #{forward.1} parent=1 // pred_fallthru
      _
    // Predicated region
    $region154: #{forward.1} parent=1 // pred_check
      _
    $region155: #{forward.1} parent=1 // pred_check_branch
      %336 = sbr.rel (0) target = $region157
    $region156: #{forward.1} parent=1 // pred_region
      %337 = dma.done [#allocation17], 1024
    $region157: #{forward.1} parent=1 // pred_fallthru
      _
    // Predicated region
    $region158: #{forward.1} parent=1 // pred_check
      _
    $region159: #{forward.1} parent=1 // pred_check_branch
      %339 = sbr.rel (0) target = $region161
    $region160: #{forward.1} parent=1 // pred_region
      %340 = dma.done [#allocation17], 512
    $region161: #{forward.1} parent=1 // pred_fallthru
      _
    // Predicated region
    $region162: #{forward.1} parent=1 // pred_check
      _
    $region163: #{forward.1} parent=1 // pred_check_branch
      %342 = sbr.rel (0) target = $region165
    $region164: #{forward.1} parent=1 // pred_region
      %343 = dma.done [#allocation20], 256
    $region165: #{forward.1} parent=1 // pred_fallthru
      _
    // Predicated region
    $region166: #{forward.1} parent=1 // pred_check
      _
    $region167: #{forward.1} parent=1 // pred_check_branch
      %345 = sbr.rel (0) target = $region169
    $region168: #{forward.1} parent=1 // pred_region
      %346 = dma.done [#allocation20], 128
    $region169: #{forward.1} parent=1 // pred_fallthru
      _
    // Predicated region
    $region170: #{forward.1} parent=1 // pred_check
      _
    $region171: #{forward.1} parent=1 // pred_check_branch
      %348 = sbr.rel (0) target = $region173
    $region172: #{forward.1} parent=1 // pred_region
      %349 = dma.done [#allocation23], 512
    $region173: #{forward.1} parent=1 // pred_fallthru
      _
    // Predicated region
    $region174: #{forward.1} parent=1 // pred_check
      _
    $region175: #{forward.1} parent=1 // pred_check_branch
      %351 = sbr.rel (0) target = $region177
    $region176: #{forward.1} parent=1 // pred_region
      %352 = dma.done [#allocation23], 256
    $region177: #{forward.1} parent=1 // pred_fallthru
      _
    // Predicated region
    $region178: #{forward.1} parent=1 // pred_check
      _
    $region179: #{forward.1} parent=1 // pred_check_branch
      %354 = sbr.rel (0) target = $region181
    $region180: #{forward.1} parent=1 // pred_region
      %355 = dma.done [#allocation26], 256
    $region181: #{forward.1} parent=1 // pred_fallthru
      _
    // Predicated region
    $region182: #{forward.1} parent=1 // pred_check
      _
    $region183: #{forward.1} parent=1 // pred_check_branch
      %357 = sbr.rel (0) target = $region185
    $region184: #{forward.1} parent=1 // pred_region
      %358 = dma.done [#allocation26], 16
    $region185: #{forward.1} parent=1 // pred_fallthru
      _
    // Predicated region
    $region186: #{forward.1} parent=1 // pred_check
      _
    $region187: #{forward.1} parent=1 // pred_check_branch
      %360 = sbr.rel (0) target = $region189
    $region188: #{forward.1} parent=1 // pred_region
      %361 = dma.done [#allocation29], 512
    $region189: #{forward.1} parent=1 // pred_fallthru
      _
    // Predicated region
    $region190: #{forward.1} parent=1 // pred_check
      _
    $region191: #{forward.1} parent=1 // pred_check_branch
      %363 = sbr.rel (0) target = $region193
    $region192: #{forward.1} parent=1 // pred_region
      %364 = dma.done [#allocation29], 16
    $region193: #{forward.1} parent=1 // pred_fallthru
      _
    %v366 = vld [vmem:[%s5] sm:$0x1]
    %v367 = vld [vmem:[#allocation2] sm:$0x1]
    %v368 = vld [vmem:[#allocation4] sm:$0x1]
    %v369 = vld [vmem:[#allocation6] sm:$0x1]
    %v370 = vld [vmem:[#allocation13] sm:$0xf]
    %v371 = vld [vmem:[#allocation13 + $0x4] sm:$0xf]
    %v372 = vld [vmem:[#allocation13 + $0x8] sm:$0xf]
    %v373 = vld [vmem:[#allocation13 + $0xc] sm:$0xf]
    %v374 = vld [vmem:[#allocation13 + $0x10] sm:$0xf]
    %v375 = vld [vmem:[#allocation13 + $0x14] sm:$0xf]
    %v376 = vld [vmem:[#allocation13 + $0x18] sm:$0xf]
    %v377 = vld [vmem:[#allocation13 + $0x1c] sm:$0xf]
    %v378 = vld [vmem:[%s1] sm:$0xff]
    %v379 = vld [vmem:[%s1 + $0x8] sm:$0xff]
    %v380 = vlaneseq
    %v381 = vand.u32 %v380, 127
    %382 = vset.pattern.permute.xlu0 0
    %383 = vperm.xlu0 %382, %v378
    %v384 = vpop.permute.xlu0 %383
    %385 = vset.pattern.permute.xlu0 0
    %386 = vperm.xlu0 %385, %v379
    %v387 = vpop.permute.xlu0 %386
    %vm388 = vcmp.eq.s32.totalorder %v384, %v381
    %vm389 = vcmp.eq.s32.totalorder %v387, %v381
    %v390 = vsel %vm388, 1, 0
    %v391 = vsel %vm389, 1, 0
    %v392 = vcvt.s32.f32 %v390
    %v393 = vcvt.s32.f32 %v391
    %v394 = vpack.c.bf16 %v393, %v392
    %v395 = vld [vmem:[%s13] sm:$0xf]
    %v396 = vld [vmem:[%s13 + $0x4] sm:$0xf]
    %v397 = vld [vmem:[%s13 + $0x8] sm:$0xf]
    %v398 = vld [vmem:[%s13 + $0xc] sm:$0xf]
    %v399 = vld [vmem:[%s13 + $0x10] sm:$0xf]
    %v400 = vld [vmem:[%s13 + $0x14] sm:$0xf]
    %v401 = vld [vmem:[%s13 + $0x18] sm:$0xf]
    %v402 = vld [vmem:[%s13 + $0x1c] sm:$0xf]
    %v403 = vld [vmem:[%s3] sm:$0xff]
    %v404 = vld [vmem:[%s3 + $0x8] sm:$0xff]
    %v413 = vunpack.c.l.b16 %v395
    %v414 = vunpack.c.l.b16 %v396
    %v415 = vunpack.c.l.b16 %v397
    %v416 = vunpack.c.l.b16 %v398
    %v417 = vunpack.c.l.b16 %v399
    %v418 = vunpack.c.l.b16 %v400
    %v419 = vunpack.c.l.b16 %v401
    %v420 = vunpack.c.l.b16 %v402
    %v421 = vpack.c.b16 %v414, %v413
    %v422 = vpack.c.b16 %v416, %v415
    %v423 = vpack.c.b16 %v418, %v417
    %v424 = vpack.c.b16 %v420, %v419
    %vm429 = vcmask 523264
    %v431 = vsel %vm429, %v394, 0
    %433 = vmatprep.subr.bf16.mxu0 0
    %434 = vmatpush1.bf16.msra.mxu0 %v421
    %435 = vmatprep.subr.bf16.mxu0 0
    %436 = vmatpush1.bf16.msra.mxu0 %v422
    %437 = vmatprep.subr.bf16.mxu0 0
    %438 = vmatpush1.bf16.msra.mxu0 %v423
    %439 = vmatprep.subr.bf16.mxu0 0
    %440 = vmatpush1.bf16.msra.mxu0 %v424
    %441 = vmatprep.subr.bf16.mxu0 0
    %442 = vmatpush1.bf16.msra.mxu0 0
    %443 = vmatprep.subr.bf16.mxu0 0
    %444 = vmatpush1.bf16.msra.mxu0 0
    %445 = vmatprep.subr.bf16.mxu0 0
    %446 = vmatpush1.bf16.msra.mxu0 0
    %447 = vmatprep.subr.bf16.mxu0 0
    %448 = vmatpush1.bf16.msra.mxu0 0
    %449 = vmatprep.subr.bf16.mxu0 0
    %450 = vmatpush1.bf16.msra.mxu0 0
    %451 = vmatprep.subr.bf16.mxu0 0
    %452 = vmatpush1.bf16.msra.mxu0 0
    %453 = vmatprep.subr.bf16.mxu0 0
    %454 = vmatpush1.bf16.msra.mxu0 0
    %455 = vmatprep.subr.bf16.mxu0 0
    %456 = vmatpush1.bf16.msra.mxu0 0
    %457 = vmatprep.subr.bf16.mxu0 0
    %458 = vmatpush1.bf16.msra.mxu0 0
    %459 = vmatprep.subr.bf16.mxu0 0
    %460 = vmatpush1.bf16.msra.mxu0 0
    %461 = vmatprep.subr.bf16.mxu0 0
    %462 = vmatpush1.bf16.msra.mxu0 0
    %463 = vmatprep.subr.bf16.mxu0 0
    %464 = vmatpush1.bf16.msra.mxu0 0
    %465 = vmatprep.mubr.bf16.mxu0 0
    %466 = vmatmul.mubr.bf16.gmra.mrb[0].mxu0 %v431
    %v467 = vpop.f32.mrb[0].mxu0
    %v468 = vadd.f32 %v403, %v467
    %v469 = vpop.f32.mrb[0].mxu0
    %v470 = vpop.f32.mrb[0].mxu0
    %v471 = vadd.f32 %v404, %v470
    %v472 = vpop.f32.mrb[0].mxu0
    %473 = vdwg.mxu0
    %v474 = vpack.c.bf16 %v471, %v468
    %v483 = vunpack.c.l.b16 %v370
    %v484 = vunpack.c.l.b16 %v371
    %v485 = vunpack.c.l.b16 %v372
    %v486 = vunpack.c.l.b16 %v373
    %v487 = vunpack.c.l.b16 %v374
    %v488 = vunpack.c.l.b16 %v375
    %v489 = vunpack.c.l.b16 %v376
    %v490 = vunpack.c.l.b16 %v377
    %v491 = vpack.c.b16 %v484, %v483
    %v492 = vpack.c.b16 %v486, %v485
    %v493 = vpack.c.b16 %v488, %v487
    %v494 = vpack.c.b16 %v490, %v489
    %v500 = vsel %vm429, %v474, 0
    %502 = vmatprep.subr.bf16.mxu0 0
    %503 = vmatpush1.bf16.msra.mxu0 %v491
    %504 = vmatprep.subr.bf16.mxu0 0
    %505 = vmatpush1.bf16.msra.mxu0 %v492
    %506 = vmatprep.subr.bf16.mxu0 0
    %507 = vmatpush1.bf16.msra.mxu0 %v493
    %508 = vmatprep.subr.bf16.mxu0 0
    %509 = vmatpush1.bf16.msra.mxu0 %v494
    %510 = vmatprep.subr.bf16.mxu0 0
    %511 = vmatpush1.bf16.msra.mxu0 0
    %512 = vmatprep.subr.bf16.mxu0 0
    %513 = vmatpush1.bf16.msra.mxu0 0
    %514 = vmatprep.subr.bf16.mxu0 0
    %515 = vmatpush1.bf16.msra.mxu0 0
    %516 = vmatprep.subr.bf16.mxu0 0
    %517 = vmatpush1.bf16.msra.mxu0 0
    %518 = vmatprep.subr.bf16.mxu0 0
    %519 = vmatpush1.bf16.msra.mxu0 0
    %520 = vmatprep.subr.bf16.mxu0 0
    %521 = vmatpush1.bf16.msra.mxu0 0
    %522 = vmatprep.subr.bf16.mxu0 0
    %523 = vmatpush1.bf16.msra.mxu0 0
    %524 = vmatprep.subr.bf16.mxu0 0
    %525 = vmatpush1.bf16.msra.mxu0 0
    %526 = vmatprep.subr.bf16.mxu0 0
    %527 = vmatpush1.bf16.msra.mxu0 0
    %528 = vmatprep.subr.bf16.mxu0 0
    %529 = vmatpush1.bf16.msra.mxu0 0
    %530 = vmatprep.subr.bf16.mxu0 0
    %531 = vmatpush1.bf16.msra.mxu0 0
    %532 = vmatprep.subr.bf16.mxu0 0
    %533 = vmatpush1.bf16.msra.mxu0 0
    %534 = vmatprep.mubr.bf16.mxu0 0
    %535 = vmatmul.mubr.bf16.gmra.mrb[0].mxu0 %v500
    %v536 = vpop.f32.mrb[0].mxu0
    %v537 = vadd.f32 0.0, %v536
    %v538 = vpop.f32.mrb[0].mxu0
    %v539 = vpop.f32.mrb[0].mxu0
    %v540 = vadd.f32 0.0, %v539
    %v541 = vpop.f32.mrb[0].mxu0
    %542 = vdwg.mxu0
    %v543 = vsub.f32 %v468, %v537
    %v544 = vsub.f32 %v471, %v540
    %v545 = vmul.f32 %v543, %v543
    %v546 = vmul.f32 %v544, %v544
    %v547 = vpack.c.bf16 %v546, %v545
    %v549 = vsel %vm429, %v547, 0
    %551 = vmatprep.subr.bf16.mxu0 0
    %552 = vmatpush1.bf16.msra.mxu0 %v491
    %553 = vmatprep.subr.bf16.mxu0 0
    %554 = vmatpush1.bf16.msra.mxu0 %v492
    %555 = vmatprep.subr.bf16.mxu0 0
    %556 = vmatpush1.bf16.msra.mxu0 %v493
    %557 = vmatprep.subr.bf16.mxu0 0
    %558 = vmatpush1.bf16.msra.mxu0 %v494
    %559 = vmatprep.subr.bf16.mxu0 0
    %560 = vmatpush1.bf16.msra.mxu0 0
    %561 = vmatprep.subr.bf16.mxu0 0
    %562 = vmatpush1.bf16.msra.mxu0 0
    %563 = vmatprep.subr.bf16.mxu0 0
    %564 = vmatpush1.bf16.msra.mxu0 0
    %565 = vmatprep.subr.bf16.mxu0 0
    %566 = vmatpush1.bf16.msra.mxu0 0
    %567 = vmatprep.subr.bf16.mxu0 0
    %568 = vmatpush1.bf16.msra.mxu0 0
    %569 = vmatprep.subr.bf16.mxu0 0
    %570 = vmatpush1.bf16.msra.mxu0 0
    %571 = vmatprep.subr.bf16.mxu0 0
    %572 = vmatpush1.bf16.msra.mxu0 0
    %573 = vmatprep.subr.bf16.mxu0 0
    %574 = vmatpush1.bf16.msra.mxu0 0
    %575 = vmatprep.subr.bf16.mxu0 0
    %576 = vmatpush1.bf16.msra.mxu0 0
    %577 = vmatprep.subr.bf16.mxu0 0
    %578 = vmatpush1.bf16.msra.mxu0 0
    %579 = vmatprep.subr.bf16.mxu0 0
    %580 = vmatpush1.bf16.msra.mxu0 0
    %581 = vmatprep.subr.bf16.mxu0 0
    %582 = vmatpush1.bf16.msra.mxu0 0
    %583 = vmatprep.mubr.bf16.mxu0 0
    %584 = vmatmul.mubr.bf16.gmra.mrb[0].mxu0 %v549
    %v585 = vpop.f32.mrb[0].mxu0
    %v586 = vadd.f32 1e-05, %v585
    %v587 = vpop.f32.mrb[0].mxu0
    %v588 = vpop.f32.mrb[0].mxu0
    %v589 = vadd.f32 1e-05, %v588
    %v590 = vpop.f32.mrb[0].mxu0
    %591 = vdwg.mxu0
    %v592 = vrsqrt.pop %v586
    %v593 = vrsqrt.pop %v589
    %v594 = vmul.f32 %v543, %v592
    %v595 = vmul.f32 %v544, %v593
    %v597 = vlaneseq
    %v598 = vshrl.u32 %v597, 7
    %v599 = vsub.s32 0, %v598
    %v600 = vrot.slane %v366, %v599
    %v602 = vmul.f32 %v594, %v600
    %v603 = vmul.f32 %v595, %v600
    %v605 = vlaneseq
    %v606 = vshrl.u32 %v605, 7
    %v607 = vsub.s32 0, %v606
    %v608 = vrot.slane %v367, %v607
    %v610 = vadd.f32 %v602, %v608
    %v611 = vadd.f32 %v603, %v608
    %v612 = vld [vmem:[#allocation16] sm:$0xff]
    %v613 = vld [vmem:[#allocation16 + $0x8] sm:$0xff]
    %v614 = vld [vmem:[#allocation16 + $0x10] sm:$0xff]
    %v615 = vld [vmem:[#allocation16 + $0x18] sm:$0xff]
    %v616 = vld [vmem:[#allocation16 + $0x20] sm:$0xff]
    %v617 = vld [vmem:[#allocation16 + $0x28] sm:$0xff]
    %v618 = vld [vmem:[#allocation16 + $0x30] sm:$0xff]
    %v619 = vld [vmem:[#allocation16 + $0x38] sm:$0xff]
    %v620 = vld [vmem:[#allocation19] sm:$0xff]
    %v621 = vld [vmem:[#allocation19 + $0x8] sm:$0xff]
    %v622 = vld [vmem:[#allocation22] sm:$0xf]
    %v623 = vld [vmem:[#allocation22 + $0x4] sm:$0xf]
    %v624 = vld [vmem:[#allocation22 + $0x8] sm:$0xf]
    %v625 = vld [vmem:[#allocation22 + $0xc] sm:$0xf]
    %v626 = vld [vmem:[#allocation22 + $0x10] sm:$0xf]
    %v627 = vld [vmem:[#allocation22 + $0x14] sm:$0xf]
    %v628 = vld [vmem:[#allocation22 + $0x18] sm:$0xf]
    %v629 = vld [vmem:[#allocation22 + $0x1c] sm:$0xf]
    %v630 = vld [vmem:[#allocation18] sm:$0xff]
    %v631 = vld [vmem:[#allocation18 + $0x8] sm:$0xff]
    %v632 = vld [vmem:[#allocation18 + $0x10] sm:$0xff]
    %v633 = vld [vmem:[#allocation18 + $0x18] sm:$0xff]
    %v634 = vld [vmem:[#allocation21] sm:$0xff]
    %v635 = vld [vmem:[#allocation24] sm:$0xf]
    %v636 = vld [vmem:[#allocation24 + $0x4] sm:$0xf]
    %v637 = vld [vmem:[#allocation24 + $0x8] sm:$0xf]
    %v638 = vld [vmem:[#allocation24 + $0xc] sm:$0xf]
    %v639 = vpack.c.bf16 %v611, %v610
    %v641 = vsel %vm429, %v639, 0
    %643 = vmatprep.subr.bf16.mxu0 0
    %644 = vmatpush1.bf16.msra.mxu0 %v491
    %645 = vmatprep.subr.bf16.mxu0 0
    %646 = vmatpush1.bf16.msra.mxu0 %v492
    %647 = vmatprep.subr.bf16.mxu0 0
    %648 = vmatpush1.bf16.msra.mxu0 %v493
    %649 = vmatprep.subr.bf16.mxu0 0
    %650 = vmatpush1.bf16.msra.mxu0 %v494
    %651 = vmatprep.subr.bf16.mxu0 0
    %652 = vmatpush1.bf16.msra.mxu0 0
    %653 = vmatprep.subr.bf16.mxu0 0
    %654 = vmatpush1.bf16.msra.mxu0 0
    %655 = vmatprep.subr.bf16.mxu0 0
    %656 = vmatpush1.bf16.msra.mxu0 0
    %657 = vmatprep.subr.bf16.mxu0 0
    %658 = vmatpush1.bf16.msra.mxu0 0
    %659 = vmatprep.subr.bf16.mxu0 0
    %660 = vmatpush1.bf16.msra.mxu0 0
    %661 = vmatprep.subr.bf16.mxu0 0
    %662 = vmatpush1.bf16.msra.mxu0 0
    %663 = vmatprep.subr.bf16.mxu0 0
    %664 = vmatpush1.bf16.msra.mxu0 0
    %665 = vmatprep.subr.bf16.mxu0 0
    %666 = vmatpush1.bf16.msra.mxu0 0
    %667 = vmatprep.subr.bf16.mxu0 0
    %668 = vmatpush1.bf16.msra.mxu0 0
    %669 = vmatprep.subr.bf16.mxu0 0
    %670 = vmatpush1.bf16.msra.mxu0 0
    %671 = vmatprep.subr.bf16.mxu0 0
    %672 = vmatpush1.bf16.msra.mxu0 0
    %673 = vmatprep.subr.bf16.mxu0 0
    %674 = vmatpush1.bf16.msra.mxu0 0
    %675 = vmatprep.mubr.bf16.mxu0 0
    %676 = vmatmul.mubr.bf16.gmra.mrb[0].mxu0 %v641
    %v677 = vpop.f32.mrb[0].mxu0
    %v678 = vadd.f32 0.0, %v677
    %v679 = vpop.f32.mrb[0].mxu0
    %v680 = vpop.f32.mrb[0].mxu0
    %v681 = vadd.f32 0.0, %v680
    %v682 = vpop.f32.mrb[0].mxu0
    %683 = vdwg.mxu0
    %v684 = vsub.f32 %v610, %v678
    %v685 = vsub.f32 %v611, %v681
    %v686 = vmul.f32 %v684, %v684
    %v687 = vmul.f32 %v685, %v685
    %v688 = vpack.c.bf16 %v687, %v686
    %v690 = vsel %vm429, %v688, 0
    %692 = vmatprep.subr.bf16.mxu0 0
    %693 = vmatpush1.bf16.msra.mxu0 %v491
    %694 = vmatprep.subr.bf16.mxu0 0
    %695 = vmatpush1.bf16.msra.mxu0 %v492
    %696 = vmatprep.subr.bf16.mxu0 0
    %697 = vmatpush1.bf16.msra.mxu0 %v493
    %698 = vmatprep.subr.bf16.mxu0 0
    %699 = vmatpush1.bf16.msra.mxu0 %v494
    %700 = vmatprep.subr.bf16.mxu0 0
    %701 = vmatpush1.bf16.msra.mxu0 0
    %702 = vmatprep.subr.bf16.mxu0 0
    %703 = vmatpush1.bf16.msra.mxu0 0
    %704 = vmatprep.subr.bf16.mxu0 0
    %705 = vmatpush1.bf16.msra.mxu0 0
    %706 = vmatprep.subr.bf16.mxu0 0
    %707 = vmatpush1.bf16.msra.mxu0 0
    %708 = vmatprep.subr.bf16.mxu0 0
    %709 = vmatpush1.bf16.msra.mxu0 0
    %710 = vmatprep.subr.bf16.mxu0 0
    %711 = vmatpush1.bf16.msra.mxu0 0
    %712 = vmatprep.subr.bf16.mxu0 0
    %713 = vmatpush1.bf16.msra.mxu0 0
    %714 = vmatprep.subr.bf16.mxu0 0
    %715 = vmatpush1.bf16.msra.mxu0 0
    %716 = vmatprep.subr.bf16.mxu0 0
    %717 = vmatpush1.bf16.msra.mxu0 0
    %718 = vmatprep.subr.bf16.mxu0 0
    %719 = vmatpush1.bf16.msra.mxu0 0
    %720 = vmatprep.subr.bf16.mxu0 0
    %721 = vmatpush1.bf16.msra.mxu0 0
    %722 = vmatprep.subr.bf16.mxu0 0
    %723 = vmatpush1.bf16.msra.mxu0 0
    %724 = vmatprep.mubr.bf16.mxu0 0
    %725 = vmatmul.mubr.bf16.gmra.mrb[0].mxu0 %v690
    %v726 = vpop.f32.mrb[0].mxu0
    %v727 = vadd.f32 1e-05, %v726
    %v728 = vpop.f32.mrb[0].mxu0
    %v729 = vpop.f32.mrb[0].mxu0
    %v730 = vadd.f32 1e-05, %v729
    %v731 = vpop.f32.mrb[0].mxu0
    %732 = vdwg.mxu0
    %v733 = vrsqrt.pop %v727
    %v734 = vrsqrt.pop %v730
    %v735 = vmul.f32 %v684, %v733
    %v736 = vmul.f32 %v685, %v734
    %v738 = vlaneseq
    %v739 = vshrl.u32 %v738, 7
    %v740 = vsub.s32 0, %v739
    %v741 = vrot.slane %v368, %v740
    %v743 = vmul.f32 %v735, %v741
    %v744 = vmul.f32 %v736, %v741
    %v746 = vlaneseq
    %v747 = vshrl.u32 %v746, 7
    %v748 = vsub.s32 0, %v747
    %v749 = vrot.slane %v369, %v748
    %v751 = vadd.f32 %v743, %v749
    %v752 = vadd.f32 %v744, %v749
    %v753 = vpack.c.bf16 %v752, %v751
    %v754 = vld [vmem:[#allocation7] sm:$0xff]
    %v755 = vld [vmem:[#allocation7 + $0x8] sm:$0xff]
    %v756 = vld [vmem:[#allocation7 + $0x10] sm:$0xff]
    %v757 = vld [vmem:[#allocation7 + $0x18] sm:$0xff]
    %v758 = vld [vmem:[#allocation7 + $0x20] sm:$0xff]
    %v759 = vld [vmem:[#allocation7 + $0x28] sm:$0xff]
    %v760 = vld [vmem:[#allocation7 + $0x30] sm:$0xff]
    %v761 = vld [vmem:[#allocation7 + $0x38] sm:$0xff]
    %v762 = vld [vmem:[#allocation9] sm:$0x3]
    %v764 = vlaneseq
    %v765 = vshrl.u32 %v764, 7
    %v766 = vsub.s32 0, %v765
    %v767 = vrot.slane %v762, %v766
    %v768 = vlaneseq
    %v769 = vshrl.u32 %v768, 7
    %v770 = vsub.s32 1, %v769
    %v771 = vrot.slane %v762, %v770
    %v782 = vunpack.c.l.b16 %v754
    %v783 = vunpack.c.h.b16 %v754
    %v784 = vunpack.c.l.b16 %v755
    %v785 = vunpack.c.h.b16 %v755
    %v786 = vunpack.c.l.b16 %v756
    %v787 = vunpack.c.h.b16 %v756
    %v788 = vunpack.c.l.b16 %v757
    %v789 = vunpack.c.h.b16 %v757
    %v790 = vunpack.c.l.b16 %v758
    %v791 = vunpack.c.h.b16 %v758
    %v792 = vunpack.c.l.b16 %v759
    %v793 = vunpack.c.h.b16 %v759
    %v794 = vunpack.c.l.b16 %v760
    %v795 = vunpack.c.h.b16 %v760
    %v796 = vunpack.c.l.b16 %v761
    %v797 = vunpack.c.h.b16 %v761
    %v798 = vpack.c.b16 %v784, %v782
    %v799 = vpack.c.b16 %v785, %v783
    %v800 = vpack.c.b16 %v788, %v786
    %v801 = vpack.c.b16 %v789, %v787
    %v802 = vpack.c.b16 %v792, %v790
    %v803 = vpack.c.b16 %v793, %v791
    %v804 = vpack.c.b16 %v796, %v794
    %v805 = vpack.c.b16 %v797, %v795
    %v815 = vsel %vm429, %v753, 0
    %817 = vmatprep.subr.bf16.mxu0 %v799
    %818 = vmatpush1.bf16.msra.mxu0 %v798
    %819 = vmatprep.subr.bf16.mxu0 %v801
    %820 = vmatpush1.bf16.msra.mxu0 %v800
    %821 = vmatprep.subr.bf16.mxu0 %v803
    %822 = vmatpush1.bf16.msra.mxu0 %v802
    %823 = vmatprep.subr.bf16.mxu0 %v805
    %824 = vmatpush1.bf16.msra.mxu0 %v804
    %825 = vmatprep.subr.bf16.mxu0 0
    %826 = vmatpush1.bf16.msra.mxu0 0
    %827 = vmatprep.subr.bf16.mxu0 0
    %828 = vmatpush1.bf16.msra.mxu0 0
    %829 = vmatprep.subr.bf16.mxu0 0
    %830 = vmatpush1.bf16.msra.mxu0 0
    %831 = vmatprep.subr.bf16.mxu0 0
    %832 = vmatpush1.bf16.msra.mxu0 0
    %833 = vmatprep.subr.bf16.mxu0 0
    %834 = vmatpush1.bf16.msra.mxu0 0
    %835 = vmatprep.subr.bf16.mxu0 0
    %836 = vmatpush1.bf16.msra.mxu0 0
    %837 = vmatprep.subr.bf16.mxu0 0
    %838 = vmatpush1.bf16.msra.mxu0 0
    %839 = vmatprep.subr.bf16.mxu0 0
    %840 = vmatpush1.bf16.msra.mxu0 0
    %841 = vmatprep.subr.bf16.mxu0 0
    %842 = vmatpush1.bf16.msra.mxu0 0
    %843 = vmatprep.subr.bf16.mxu0 0
    %844 = vmatpush1.bf16.msra.mxu0 0
    %845 = vmatprep.subr.bf16.mxu0 0
    %846 = vmatpush1.bf16.msra.mxu0 0
    %847 = vmatprep.subr.bf16.mxu0 0
    %848 = vmatpush1.bf16.msra.mxu0 0
    %849 = vmatprep.mubr.bf16.mxu0 0
    %850 = vmatmul.mubr.bf16.gmra.mrb[0].mxu0 %v815
    %v851 = vpop.f32.mrb[0].mxu0
    %v852 = vadd.f32 %v767, %v851
    %v853 = vpop.f32.mrb[0].mxu0
    %v854 = vadd.f32 %v771, %v853
    %v855 = vpop.f32.mrb[0].mxu0
    %v856 = vadd.f32 %v767, %v855
    %v857 = vpop.f32.mrb[0].mxu0
    %v858 = vadd.f32 %v771, %v857
    %859 = vdwg.mxu0
    %868 = vrot.lane.b32.xlu0 %v612, 64
    %v869 = vpop.permute.xlu0 %868
    %870 = vrot.lane.b32.xlu0 %v613, 64
    %v871 = vpop.permute.xlu0 %870
    %872 = vrot.lane.b32.xlu0 %v614, 64
    %v873 = vpop.permute.xlu0 %872
    %874 = vrot.lane.b32.xlu0 %v615, 64
    %v875 = vpop.permute.xlu0 %874
    %876 = vrot.lane.b32.xlu0 %v616, 64
    %v877 = vpop.permute.xlu0 %876
    %878 = vrot.lane.b32.xlu0 %v617, 64
    %v879 = vpop.permute.xlu0 %878
    %880 = vrot.lane.b32.xlu0 %v618, 64
    %v881 = vpop.permute.xlu0 %880
    %882 = vrot.lane.b32.xlu0 %v619, 64
    %v883 = vpop.permute.xlu0 %882
    %v892 = vmul.f32 %v852, %v869
    %v893 = vmul.f32 %v856, %v871
    %v894 = vmul.f32 %v852, %v873
    %v895 = vmul.f32 %v856, %v875
    %v896 = vmul.f32 %v852, %v877
    %v897 = vmul.f32 %v856, %v879
    %v898 = vmul.f32 %v852, %v881
    %v899 = vmul.f32 %v856, %v883
    %v900 = vpack.c.bf16 %v893, %v892
    %v901 = vpack.c.bf16 %v895, %v894
    %v902 = vpack.c.bf16 %v897, %v896
    %v903 = vpack.c.bf16 %v899, %v898
    %v904 = vmul.f32 %v854, %v612
    %v905 = vmul.f32 %v858, %v613
    %v906 = vmul.f32 %v854, %v614
    %v907 = vmul.f32 %v858, %v615
    %v908 = vmul.f32 %v854, %v616
    %v909 = vmul.f32 %v858, %v617
    %v910 = vmul.f32 %v854, %v618
    %v911 = vmul.f32 %v858, %v619
    %v912 = vpack.c.bf16 %v905, %v904
    %v913 = vpack.c.bf16 %v907, %v906
    %v914 = vpack.c.bf16 %v909, %v908
    %v915 = vpack.c.bf16 %v911, %v910
    %v916 = vpack.c.bf16 %v856, %v852
    %921 = vrot.lane.b32.xlu0 %v900, 64
    %v922 = vpop.permute.xlu0 %921
    %923 = vrot.lane.b32.xlu0 %v901, 64
    %v924 = vpop.permute.xlu0 %923
    %925 = vrot.lane.b32.xlu0 %v902, 64
    %v926 = vpop.permute.xlu0 %925
    %927 = vrot.lane.b32.xlu0 %v903, 64
    %v928 = vpop.permute.xlu0 %927
    %v930 = vsel %vm429, %v916, 0
    %v933 = vsel %vm429, %v922, 0
    %v936 = vsel %vm429, %v924, 0
    %v939 = vsel %vm429, %v926, 0
    %v942 = vsel %vm429, %v928, 0
    %944 = vmatprep.subr.bf16.mxu0 0
    %945 = vmatpush1.bf16.xpose.msra.mxu0 %v933
    %946 = vmatprep.subr.bf16.mxu0 0
    %947 = vmatpush1.bf16.xpose.msra.mxu0 %v936
    %948 = vmatprep.subr.bf16.mxu0 0
    %949 = vmatpush1.bf16.xpose.msra.mxu0 %v939
    %950 = vmatprep.subr.bf16.mxu0 0
    %951 = vmatpush1.bf16.xpose.msra.mxu0 %v942
    %952 = vmatprep.subr.bf16.mxu0 0
    %953 = vmatpush1.bf16.xpose.msra.mxu0 0
    %954 = vmatprep.subr.bf16.mxu0 0
    %955 = vmatpush1.bf16.xpose.msra.mxu0 0
    %956 = vmatprep.subr.bf16.mxu0 0
    %957 = vmatpush1.bf16.xpose.msra.mxu0 0
    %958 = vmatprep.subr.bf16.mxu0 0
    %959 = vmatpush1.bf16.xpose.msra.mxu0 0
    %960 = vmatprep.subr.bf16.mxu0 0
    %961 = vmatpush1.bf16.xpose.msra.mxu0 0
    %962 = vmatprep.subr.bf16.mxu0 0
    %963 = vmatpush1.bf16.xpose.msra.mxu0 0
    %964 = vmatprep.subr.bf16.mxu0 0
    %965 = vmatpush1.bf16.xpose.msra.mxu0 0
    %966 = vmatprep.subr.bf16.mxu0 0
    %967 = vmatpush1.bf16.xpose.msra.mxu0 0
    %968 = vmatprep.subr.bf16.mxu0 0
    %969 = vmatpush1.bf16.xpose.msra.mxu0 0
    %970 = vmatprep.subr.bf16.mxu0 0
    %971 = vmatpush1.bf16.xpose.msra.mxu0 0
    %972 = vmatprep.subr.bf16.mxu0 0
    %973 = vmatpush1.bf16.xpose.msra.mxu0 0
    %974 = vmatprep.subr.bf16.mxu0 0
    %975 = vmatpush1.bf16.xpose.msra.mxu0 0
    %976 = vmatprep.mubr.bf16.mxu0 0
    %977 = vmatmul.mubr.bf16.gmra.mrb[0].mxu0 %v930
    %v978 = vpop.f32.mrb[0].mxu0
    %v979 = vadd.f32 0.0, %v978
    %v980 = vpop.f32.mrb[0].mxu0
    %v981 = vpop.f32.mrb[0].mxu0
    %v982 = vadd.f32 0.0, %v981
    %v983 = vpop.f32.mrb[0].mxu0
    %984 = vdwg.mxu0
    %v985 = vmul.f32 %v979, 0.35355338
    %v986 = vmul.f32 %v982, 0.35355338
    %v987 = vadd.f32 %v985, %v620
    %v988 = vadd.f32 %v986, %v621
    %v989 = vmul.f32 %v987, 1.442695
    %v990 = vpow.pop %v989
    %v991 = vmul.f32 %v988, 1.442695
    %v992 = vpow.pop %v991
    %v993 = vpack.c.bf16 %v992, %v990
    %v1002 = vunpack.c.l.b16 %v622
    %v1003 = vunpack.c.l.b16 %v623
    %v1004 = vunpack.c.l.b16 %v624
    %v1005 = vunpack.c.l.b16 %v625
    %v1006 = vunpack.c.l.b16 %v626
    %v1007 = vunpack.c.l.b16 %v627
    %v1008 = vunpack.c.l.b16 %v628
    %v1009 = vunpack.c.l.b16 %v629
    %v1010 = vpack.c.b16 %v1003, %v1002
    %v1011 = vpack.c.b16 %v1005, %v1004
    %v1012 = vpack.c.b16 %v1007, %v1006
    %v1013 = vpack.c.b16 %v1009, %v1008
    %v1019 = vsel %vm429, %v993, 0
    %1021 = vmatprep.subr.bf16.mxu0 0
    %1022 = vmatpush1.bf16.msra.mxu0 %v1010
    %1023 = vmatprep.subr.bf16.mxu0 0
    %1024 = vmatpush1.bf16.msra.mxu0 %v1011
    %1025 = vmatprep.subr.bf16.mxu0 0
    %1026 = vmatpush1.bf16.msra.mxu0 %v1012
    %1027 = vmatprep.subr.bf16.mxu0 0
    %1028 = vmatpush1.bf16.msra.mxu0 %v1013
    %1029 = vmatprep.subr.bf16.mxu0 0
    %1030 = vmatpush1.bf16.msra.mxu0 0
    %1031 = vmatprep.subr.bf16.mxu0 0
    %1032 = vmatpush1.bf16.msra.mxu0 0
    %1033 = vmatprep.subr.bf16.mxu0 0
    %1034 = vmatpush1.bf16.msra.mxu0 0
    %1035 = vmatprep.subr.bf16.mxu0 0
    %1036 = vmatpush1.bf16.msra.mxu0 0
    %1037 = vmatprep.subr.bf16.mxu0 0
    %1038 = vmatpush1.bf16.msra.mxu0 0
    %1039 = vmatprep.subr.bf16.mxu0 0
    %1040 = vmatpush1.bf16.msra.mxu0 0
    %1041 = vmatprep.subr.bf16.mxu0 0
    %1042 = vmatpush1.bf16.msra.mxu0 0
    %1043 = vmatprep.subr.bf16.mxu0 0
    %1044 = vmatpush1.bf16.msra.mxu0 0
    %1045 = vmatprep.subr.bf16.mxu0 0
    %1046 = vmatpush1.bf16.msra.mxu0 0
    %1047 = vmatprep.subr.bf16.mxu0 0
    %1048 = vmatpush1.bf16.msra.mxu0 0
    %1049 = vmatprep.subr.bf16.mxu0 0
    %1050 = vmatpush1.bf16.msra.mxu0 0
    %1051 = vmatprep.subr.bf16.mxu0 0
    %1052 = vmatpush1.bf16.msra.mxu0 0
    %1053 = vmatprep.mubr.bf16.mxu0 0
    %1054 = vmatmul.mubr.bf16.gmra.mrb[0].mxu0 %v1019
    %v1055 = vpop.f32.mrb[0].mxu0
    %v1056 = vadd.f32 0.0, %v1055
    %v1057 = vpop.f32.mrb[0].mxu0
    %v1058 = vpop.f32.mrb[0].mxu0
    %v1059 = vadd.f32 0.0, %v1058
    %v1060 = vpop.f32.mrb[0].mxu0
    %1061 = vdwg.mxu0
    %v1062 = vrcp.pop %v1056
    %v1063 = vrcp.pop %v1059
    %v1064 = vmul.f32 %v990, %v1062
    %v1065 = vmul.f32 %v992, %v1063
    %v1066 = vpack.c.bf16 %v1065, %v1064
    %v1068 = vsel %vm429, %v1066, 0
    %1070 = vmatprep.subr.bf16.mxu0 0
    %1071 = vmatpush1.bf16.msra.mxu0 %v912
    %1072 = vmatprep.subr.bf16.mxu0 0
    %1073 = vmatpush1.bf16.msra.mxu0 %v913
    %1074 = vmatprep.subr.bf16.mxu0 0
    %1075 = vmatpush1.bf16.msra.mxu0 %v914
    %1076 = vmatprep.subr.bf16.mxu0 0
    %1077 = vmatpush1.bf16.msra.mxu0 %v915
    %1078 = vmatprep.subr.bf16.mxu0 0
    %1079 = vmatpush1.bf16.msra.mxu0 0
    %1080 = vmatprep.subr.bf16.mxu0 0
    %1081 = vmatpush1.bf16.msra.mxu0 0
    %1082 = vmatprep.subr.bf16.mxu0 0
    %1083 = vmatpush1.bf16.msra.mxu0 0
    %1084 = vmatprep.subr.bf16.mxu0 0
    %1085 = vmatpush1.bf16.msra.mxu0 0
    %1086 = vmatprep.subr.bf16.mxu0 0
    %1087 = vmatpush1.bf16.msra.mxu0 0
    %1088 = vmatprep.subr.bf16.mxu0 0
    %1089 = vmatpush1.bf16.msra.mxu0 0
    %1090 = vmatprep.subr.bf16.mxu0 0
    %1091 = vmatpush1.bf16.msra.mxu0 0
    %1092 = vmatprep.subr.bf16.mxu0 0
    %1093 = vmatpush1.bf16.msra.mxu0 0
    %1094 = vmatprep.subr.bf16.mxu0 0
    %1095 = vmatpush1.bf16.msra.mxu0 0
    %1096 = vmatprep.subr.bf16.mxu0 0
    %1097 = vmatpush1.bf16.msra.mxu0 0
    %1098 = vmatprep.subr.bf16.mxu0 0
    %1099 = vmatpush1.bf16.msra.mxu0 0
    %1100 = vmatprep.subr.bf16.mxu0 0
    %1101 = vmatpush1.bf16.msra.mxu0 0
    %1102 = vmatprep.mubr.bf16.mxu0 0
    %1103 = vmatmul.mubr.bf16.gmra.mrb[0].mxu0 %v1068
    %v1104 = vpop.f32.mrb[0].mxu0
    %v1105 = vadd.f32 0.0, %v1104
    %v1106 = vpop.f32.mrb[0].mxu0
    %v1107 = vpop.f32.mrb[0].mxu0
    %v1108 = vadd.f32 0.0, %v1107
    %v1109 = vpop.f32.mrb[0].mxu0
    %1110 = vdwg.mxu0
    %v1111 = vpack.c.bf16 %v1108, %v1105
    %v1112 = vld [vmem:[%s19] sm:$0xf]
    %v1113 = vld [vmem:[%s19 + $0x4] sm:$0xf]
    %v1114 = vld [vmem:[%s19 + $0x8] sm:$0xf]
    %v1115 = vld [vmem:[%s19 + $0xc] sm:$0xf]
    %v1116 = vld [vmem:[%s19 + $0x10] sm:$0xf]
    %v1117 = vld [vmem:[%s19 + $0x14] sm:$0xf]
    %v1118 = vld [vmem:[%s19 + $0x18] sm:$0xf]
    %v1119 = vld [vmem:[%s19 + $0x1c] sm:$0xf]
    %v1120 = vld [vmem:[#allocation10] sm:$0x1]
    %v1122 = vlaneseq
    %v1123 = vshrl.u32 %v1122, 7
    %v1124 = vsub.s32 0, %v1123
    %v1125 = vrot.slane %v1120, %v1124
    %v1135 = vunpack.c.l.b16 %v1112
    %v1136 = vunpack.c.l.b16 %v1113
    %v1137 = vunpack.c.l.b16 %v1114
    %v1138 = vunpack.c.l.b16 %v1115
    %v1139 = vunpack.c.l.b16 %v1116
    %v1140 = vunpack.c.l.b16 %v1117
    %v1141 = vunpack.c.l.b16 %v1118
    %v1142 = vunpack.c.l.b16 %v1119
    %v1143 = vpack.c.b16 %v1136, %v1135
    %v1144 = vpack.c.b16 %v1138, %v1137
    %v1145 = vpack.c.b16 %v1140, %v1139
    %v1146 = vpack.c.b16 %v1142, %v1141
    %v1152 = vsel %vm429, %v1111, 0
    %1154 = vmatprep.subr.bf16.mxu0 0
    %1155 = vmatpush1.bf16.msra.mxu0 %v1143
    %1156 = vmatprep.subr.bf16.mxu0 0
    %1157 = vmatpush1.bf16.msra.mxu0 %v1144
    %1158 = vmatprep.subr.bf16.mxu0 0
    %1159 = vmatpush1.bf16.msra.mxu0 %v1145
    %1160 = vmatprep.subr.bf16.mxu0 0
    %1161 = vmatpush1.bf16.msra.mxu0 %v1146
    %1162 = vmatprep.subr.bf16.mxu0 0
    %1163 = vmatpush1.bf16.msra.mxu0 0
    %1164 = vmatprep.subr.bf16.mxu0 0
    %1165 = vmatpush1.bf16.msra.mxu0 0
    %1166 = vmatprep.subr.bf16.mxu0 0
    %1167 = vmatpush1.bf16.msra.mxu0 0
    %1168 = vmatprep.subr.bf16.mxu0 0
    %1169 = vmatpush1.bf16.msra.mxu0 0
    %1170 = vmatprep.subr.bf16.mxu0 0
    %1171 = vmatpush1.bf16.msra.mxu0 0
    %1172 = vmatprep.subr.bf16.mxu0 0
    %1173 = vmatpush1.bf16.msra.mxu0 0
    %1174 = vmatprep.subr.bf16.mxu0 0
    %1175 = vmatpush1.bf16.msra.mxu0 0
    %1176 = vmatprep.subr.bf16.mxu0 0
    %1177 = vmatpush1.bf16.msra.mxu0 0
    %1178 = vmatprep.subr.bf16.mxu0 0
    %1179 = vmatpush1.bf16.msra.mxu0 0
    %1180 = vmatprep.subr.bf16.mxu0 0
    %1181 = vmatpush1.bf16.msra.mxu0 0
    %1182 = vmatprep.subr.bf16.mxu0 0
    %1183 = vmatpush1.bf16.msra.mxu0 0
    %1184 = vmatprep.subr.bf16.mxu0 0
    %1185 = vmatpush1.bf16.msra.mxu0 0
    %1186 = vmatprep.mubr.bf16.mxu0 0
    %1187 = vmatmul.mubr.bf16.gmra.mrb[0].mxu0 %v1152
    %v1188 = vpop.f32.mrb[0].mxu0
    %v1189 = vadd.f32 %v1125, %v1188
    %v1190 = vpop.f32.mrb[0].mxu0
    %v1191 = vpop.f32.mrb[0].mxu0
    %v1192 = vadd.f32 %v1125, %v1191
    %v1193 = vpop.f32.mrb[0].mxu0
    %1194 = vdwg.mxu0
    %v1195 = vadd.f32 %v610, %v1189
    %v1196 = vadd.f32 %v611, %v1192
    %v1197 = vpack.c.bf16 %v1196, %v1195
    %v1199 = vsel %vm429, %v1197, 0
    %1201 = vmatprep.subr.bf16.mxu0 0
    %1202 = vmatpush1.bf16.msra.mxu0 %v491
    %1203 = vmatprep.subr.bf16.mxu0 0
    %1204 = vmatpush1.bf16.msra.mxu0 %v492
    %1205 = vmatprep.subr.bf16.mxu0 0
    %1206 = vmatpush1.bf16.msra.mxu0 %v493
    %1207 = vmatprep.subr.bf16.mxu0 0
    %1208 = vmatpush1.bf16.msra.mxu0 %v494
    %1209 = vmatprep.subr.bf16.mxu0 0
    %1210 = vmatpush1.bf16.msra.mxu0 0
    %1211 = vmatprep.subr.bf16.mxu0 0
    %1212 = vmatpush1.bf16.msra.mxu0 0
    %1213 = vmatprep.subr.bf16.mxu0 0
    %1214 = vmatpush1.bf16.msra.mxu0 0
    %1215 = vmatprep.subr.bf16.mxu0 0
    %1216 = vmatpush1.bf16.msra.mxu0 0
    %1217 = vmatprep.subr.bf16.mxu0 0
    %1218 = vmatpush1.bf16.msra.mxu0 0
    %1219 = vmatprep.subr.bf16.mxu0 0
    %1220 = vmatpush1.bf16.msra.mxu0 0
    %1221 = vmatprep.subr.bf16.mxu0 0
    %1222 = vmatpush1.bf16.msra.mxu0 0
    %1223 = vmatprep.subr.bf16.mxu0 0
    %1224 = vmatpush1.bf16.msra.mxu0 0
    %1225 = vmatprep.subr.bf16.mxu0 0
    %1226 = vmatpush1.bf16.msra.mxu0 0
    %1227 = vmatprep.subr.bf16.mxu0 0
    %1228 = vmatpush1.bf16.msra.mxu0 0
    %1229 = vmatprep.subr.bf16.mxu0 0
    %1230 = vmatpush1.bf16.msra.mxu0 0
    %1231 = vmatprep.subr.bf16.mxu0 0
    %1232 = vmatpush1.bf16.msra.mxu0 0
    %1233 = vmatprep.mubr.bf16.mxu0 0
    %1234 = vmatmul.mubr.bf16.gmra.mrb[0].mxu0 %v1199
    %v1235 = vpop.f32.mrb[0].mxu0
    %v1236 = vadd.f32 0.0, %v1235
    %v1237 = vpop.f32.mrb[0].mxu0
    %v1238 = vpop.f32.mrb[0].mxu0
    %v1239 = vadd.f32 0.0, %v1238
    %v1240 = vpop.f32.mrb[0].mxu0
    %1241 = vdwg.mxu0
    %v1242 = vsub.f32 %v1195, %v1236
    %v1243 = vsub.f32 %v1196, %v1239
    %v1244 = vmul.f32 %v1242, %v1242
    %v1245 = vmul.f32 %v1243, %v1243
    %v1246 = vpack.c.bf16 %v1245, %v1244
    %v1248 = vsel %vm429, %v1246, 0
    %1250 = vmatprep.subr.bf16.mxu0 0
    %1251 = vmatpush1.bf16.msra.mxu0 %v491
    %1252 = vmatprep.subr.bf16.mxu0 0
    %1253 = vmatpush1.bf16.msra.mxu0 %v492
    %1254 = vmatprep.subr.bf16.mxu0 0
    %1255 = vmatpush1.bf16.msra.mxu0 %v493
    %1256 = vmatprep.subr.bf16.mxu0 0
    %1257 = vmatpush1.bf16.msra.mxu0 %v494
    %1258 = vmatprep.subr.bf16.mxu0 0
    %1259 = vmatpush1.bf16.msra.mxu0 0
    %1260 = vmatprep.subr.bf16.mxu0 0
    %1261 = vmatpush1.bf16.msra.mxu0 0
    %1262 = vmatprep.subr.bf16.mxu0 0
    %1263 = vmatpush1.bf16.msra.mxu0 0
    %1264 = vmatprep.subr.bf16.mxu0 0
    %1265 = vmatpush1.bf16.msra.mxu0 0
    %1266 = vmatprep.subr.bf16.mxu0 0
    %1267 = vmatpush1.bf16.msra.mxu0 0
    %1268 = vmatprep.subr.bf16.mxu0 0
    %1269 = vmatpush1.bf16.msra.mxu0 0
    %1270 = vmatprep.subr.bf16.mxu0 0
    %1271 = vmatpush1.bf16.msra.mxu0 0
    %1272 = vmatprep.subr.bf16.mxu0 0
    %1273 = vmatpush1.bf16.msra.mxu0 0
    %1274 = vmatprep.subr.bf16.mxu0 0
    %1275 = vmatpush1.bf16.msra.mxu0 0
    %1276 = vmatprep.subr.bf16.mxu0 0
    %1277 = vmatpush1.bf16.msra.mxu0 0
    %1278 = vmatprep.subr.bf16.mxu0 0
    %1279 = vmatpush1.bf16.msra.mxu0 0
    %1280 = vmatprep.subr.bf16.mxu0 0
    %1281 = vmatpush1.bf16.msra.mxu0 0
    %1282 = vmatprep.mubr.bf16.mxu0 0
    %1283 = vmatmul.mubr.bf16.gmra.mrb[0].mxu0 %v1248
    %v1284 = vpop.f32.mrb[0].mxu0
    %v1285 = vadd.f32 1e-05, %v1284
    %v1286 = vpop.f32.mrb[0].mxu0
    %v1287 = vpop.f32.mrb[0].mxu0
    %v1288 = vadd.f32 1e-05, %v1287
    %v1289 = vpop.f32.mrb[0].mxu0
    %1290 = vdwg.mxu0
    %v1291 = vrsqrt.pop %v1285
    %v1292 = vrsqrt.pop %v1288
    %v1293 = vmul.f32 %v1242, %v1291
    %v1294 = vmul.f32 %v1243, %v1292
    %v1295 = vmul.f32 %v1293, %v741
    %v1296 = vmul.f32 %v1294, %v741
    %v1297 = vadd.f32 %v1295, %v749
    %v1298 = vadd.f32 %v1296, %v749
    %v1299 = vpack.c.bf16 %v1298, %v1297
    %s1300 = scalar_lea.vmem [#allocation7], 64
    %v1301 = vld [vmem:[%s1300] sm:$0xff]
    %v1302 = vld [vmem:[%s1300 + $0x8] sm:$0xff]
    %v1303 = vld [vmem:[%s1300 + $0x10] sm:$0xff]
    %v1304 = vld [vmem:[%s1300 + $0x18] sm:$0xff]
    %v1305 = vld [vmem:[%s1300 + $0x20] sm:$0xff]
    %v1306 = vld [vmem:[%s1300 + $0x28] sm:$0xff]
    %v1307 = vld [vmem:[%s1300 + $0x30] sm:$0xff]
    %v1308 = vld [vmem:[%s1300 + $0x38] sm:$0xff]
    %s1309 = scalar_lea.vmem [#allocation9], 2
    %v1310 = vld [vmem:[%s1309] sm:$0x3]
    %v1312 = vlaneseq
    %v1313 = vshrl.u32 %v1312, 7
    %v1314 = vsub.s32 0, %v1313
    %v1315 = vrot.slane %v1310, %v1314
    %v1316 = vlaneseq
    %v1317 = vshrl.u32 %v1316, 7
    %v1318 = vsub.s32 1, %v1317
    %v1319 = vrot.slane %v1310, %v1318
    %v1330 = vunpack.c.l.b16 %v1301
    %v1331 = vunpack.c.h.b16 %v1301
    %v1332 = vunpack.c.l.b16 %v1302
    %v1333 = vunpack.c.h.b16 %v1302
    %v1334 = vunpack.c.l.b16 %v1303
    %v1335 = vunpack.c.h.b16 %v1303
    %v1336 = vunpack.c.l.b16 %v1304
    %v1337 = vunpack.c.h.b16 %v1304
    %v1338 = vunpack.c.l.b16 %v1305
    %v1339 = vunpack.c.h.b16 %v1305
    %v1340 = vunpack.c.l.b16 %v1306
    %v1341 = vunpack.c.h.b16 %v1306
    %v1342 = vunpack.c.l.b16 %v1307
    %v1343 = vunpack.c.h.b16 %v1307
    %v1344 = vunpack.c.l.b16 %v1308
    %v1345 = vunpack.c.h.b16 %v1308
    %v1346 = vpack.c.b16 %v1332, %v1330
    %v1347 = vpack.c.b16 %v1333, %v1331
    %v1348 = vpack.c.b16 %v1336, %v1334
    %v1349 = vpack.c.b16 %v1337, %v1335
    %v1350 = vpack.c.b16 %v1340, %v1338
    %v1351 = vpack.c.b16 %v1341, %v1339
    %v1352 = vpack.c.b16 %v1344, %v1342
    %v1353 = vpack.c.b16 %v1345, %v1343
    %v1363 = vsel %vm429, %v1299, 0
    %1365 = vmatprep.subr.bf16.mxu0 %v1347
    %1366 = vmatpush1.bf16.msra.mxu0 %v1346
    %1367 = vmatprep.subr.bf16.mxu0 %v1349
    %1368 = vmatpush1.bf16.msra.mxu0 %v1348
    %1369 = vmatprep.subr.bf16.mxu0 %v1351
    %1370 = vmatpush1.bf16.msra.mxu0 %v1350
    %1371 = vmatprep.subr.bf16.mxu0 %v1353
    %1372 = vmatpush1.bf16.msra.mxu0 %v1352
    %1373 = vmatprep.subr.bf16.mxu0 0
    %1374 = vmatpush1.bf16.msra.mxu0 0
    %1375 = vmatprep.subr.bf16.mxu0 0
    %1376 = vmatpush1.bf16.msra.mxu0 0
    %1377 = vmatprep.subr.bf16.mxu0 0
    %1378 = vmatpush1.bf16.msra.mxu0 0
    %1379 = vmatprep.subr.bf16.mxu0 0
    %1380 = vmatpush1.bf16.msra.mxu0 0
    %1381 = vmatprep.subr.bf16.mxu0 0
    %1382 = vmatpush1.bf16.msra.mxu0 0
    %1383 = vmatprep.subr.bf16.mxu0 0
    %1384 = vmatpush1.bf16.msra.mxu0 0
    %1385 = vmatprep.subr.bf16.mxu0 0
    %1386 = vmatpush1.bf16.msra.mxu0 0
    %1387 = vmatprep.subr.bf16.mxu0 0
    %1388 = vmatpush1.bf16.msra.mxu0 0
    %1389 = vmatprep.subr.bf16.mxu0 0
    %1390 = vmatpush1.bf16.msra.mxu0 0
    %1391 = vmatprep.subr.bf16.mxu0 0
    %1392 = vmatpush1.bf16.msra.mxu0 0
    %1393 = vmatprep.subr.bf16.mxu0 0
    %1394 = vmatpush1.bf16.msra.mxu0 0
    %1395 = vmatprep.subr.bf16.mxu0 0
    %1396 = vmatpush1.bf16.msra.mxu0 0
    %1397 = vmatprep.mubr.bf16.mxu0 0
    %1398 = vmatmul.mubr.bf16.gmra.mrb[0].mxu0 %v1363
    %v1399 = vpop.f32.mrb[0].mxu0
    %v1400 = vadd.f32 %v1315, %v1399
    %v1401 = vpop.f32.mrb[0].mxu0
    %v1402 = vadd.f32 %v1319, %v1401
    %v1403 = vpop.f32.mrb[0].mxu0
    %v1404 = vadd.f32 %v1315, %v1403
    %v1405 = vpop.f32.mrb[0].mxu0
    %v1406 = vadd.f32 %v1319, %v1405
    %1407 = vdwg.mxu0
    %v1408 = vmul.f32 %v1400, %v869
    %v1409 = vmul.f32 %v1404, %v871
    %v1410 = vmul.f32 %v1400, %v873
    %v1411 = vmul.f32 %v1404, %v875
    %v1412 = vmul.f32 %v1400, %v877
    %v1413 = vmul.f32 %v1404, %v879
    %v1414 = vmul.f32 %v1400, %v881
    %v1415 = vmul.f32 %v1404, %v883
    %v1416 = vpack.c.bf16 %v1409, %v1408
    %v1417 = vpack.c.bf16 %v1411, %v1410
    %v1418 = vpack.c.bf16 %v1413, %v1412
    %v1419 = vpack.c.bf16 %v1415, %v1414
    %v1420 = vmul.f32 %v1402, %v612
    %v1421 = vmul.f32 %v1406, %v613
    %v1422 = vmul.f32 %v1402, %v614
    %v1423 = vmul.f32 %v1406, %v615
    %v1424 = vmul.f32 %v1402, %v616
    %v1425 = vmul.f32 %v1406, %v617
    %v1426 = vmul.f32 %v1402, %v618
    %v1427 = vmul.f32 %v1406, %v619
    %v1428 = vpack.c.bf16 %v1421, %v1420
    %v1429 = vpack.c.bf16 %v1423, %v1422
    %v1430 = vpack.c.bf16 %v1425, %v1424
    %v1431 = vpack.c.bf16 %v1427, %v1426
    %v1432 = vpack.c.bf16 %v1404, %v1400
    %1437 = vrot.lane.b32.xlu0 %v1416, 64
    %v1438 = vpop.permute.xlu0 %1437
    %1439 = vrot.lane.b32.xlu0 %v1417, 64
    %v1440 = vpop.permute.xlu0 %1439
    %1441 = vrot.lane.b32.xlu0 %v1418, 64
    %v1442 = vpop.permute.xlu0 %1441
    %1443 = vrot.lane.b32.xlu0 %v1419, 64
    %v1444 = vpop.permute.xlu0 %1443
    %v1446 = vsel %vm429, %v1432, 0
    %v1449 = vsel %vm429, %v1438, 0
    %v1452 = vsel %vm429, %v1440, 0
    %v1455 = vsel %vm429, %v1442, 0
    %v1458 = vsel %vm429, %v1444, 0
    %1460 = vmatprep.subr.bf16.mxu0 0
    %1461 = vmatpush1.bf16.xpose.msra.mxu0 %v1449
    %1462 = vmatprep.subr.bf16.mxu0 0
    %1463 = vmatpush1.bf16.xpose.msra.mxu0 %v1452
    %1464 = vmatprep.subr.bf16.mxu0 0
    %1465 = vmatpush1.bf16.xpose.msra.mxu0 %v1455
    %1466 = vmatprep.subr.bf16.mxu0 0
    %1467 = vmatpush1.bf16.xpose.msra.mxu0 %v1458
    %1468 = vmatprep.subr.bf16.mxu0 0
    %1469 = vmatpush1.bf16.xpose.msra.mxu0 0
    %1470 = vmatprep.subr.bf16.mxu0 0
    %1471 = vmatpush1.bf16.xpose.msra.mxu0 0
    %1472 = vmatprep.subr.bf16.mxu0 0
    %1473 = vmatpush1.bf16.xpose.msra.mxu0 0
    %1474 = vmatprep.subr.bf16.mxu0 0
    %1475 = vmatpush1.bf16.xpose.msra.mxu0 0
    %1476 = vmatprep.subr.bf16.mxu0 0
    %1477 = vmatpush1.bf16.xpose.msra.mxu0 0
    %1478 = vmatprep.subr.bf16.mxu0 0
    %1479 = vmatpush1.bf16.xpose.msra.mxu0 0
    %1480 = vmatprep.subr.bf16.mxu0 0
    %1481 = vmatpush1.bf16.xpose.msra.mxu0 0
    %1482 = vmatprep.subr.bf16.mxu0 0
    %1483 = vmatpush1.bf16.xpose.msra.mxu0 0
    %1484 = vmatprep.subr.bf16.mxu0 0
    %1485 = vmatpush1.bf16.xpose.msra.mxu0 0
    %1486 = vmatprep.subr.bf16.mxu0 0
    %1487 = vmatpush1.bf16.xpose.msra.mxu0 0
    %1488 = vmatprep.subr.bf16.mxu0 0
    %1489 = vmatpush1.bf16.xpose.msra.mxu0 0
    %1490 = vmatprep.subr.bf16.mxu0 0
    %1491 = vmatpush1.bf16.xpose.msra.mxu0 0
    %1492 = vmatprep.mubr.bf16.mxu0 0
    %1493 = vmatmul.mubr.bf16.gmra.mrb[0].mxu0 %v1446
    %v1494 = vpop.f32.mrb[0].mxu0
    %v1495 = vadd.f32 0.0, %v1494
    %v1496 = vpop.f32.mrb[0].mxu0
    %v1497 = vpop.f32.mrb[0].mxu0
    %v1498 = vadd.f32 0.0, %v1497
    %v1499 = vpop.f32.mrb[0].mxu0
    %1500 = vdwg.mxu0
    %v1501 = vmul.f32 %v1495, 0.35355338
    %v1502 = vmul.f32 %v1498, 0.35355338
    %v1503 = vadd.f32 %v1501, %v620
    %v1504 = vadd.f32 %v1502, %v621
    %v1505 = vmul.f32 %v1503, 1.442695
    %v1506 = vpow.pop %v1505
    %v1507 = vmul.f32 %v1504, 1.442695
    %v1508 = vpow.pop %v1507
    %v1509 = vpack.c.bf16 %v1508, %v1506
    %v1511 = vsel %vm429, %v1509, 0
    %1513 = vmatprep.subr.bf16.mxu0 0
    %1514 = vmatpush1.bf16.msra.mxu0 %v1010
    %1515 = vmatprep.subr.bf16.mxu0 0
    %1516 = vmatpush1.bf16.msra.mxu0 %v1011
    %1517 = vmatprep.subr.bf16.mxu0 0
    %1518 = vmatpush1.bf16.msra.mxu0 %v1012
    %1519 = vmatprep.subr.bf16.mxu0 0
    %1520 = vmatpush1.bf16.msra.mxu0 %v1013
    %1521 = vmatprep.subr.bf16.mxu0 0
    %1522 = vmatpush1.bf16.msra.mxu0 0
    %1523 = vmatprep.subr.bf16.mxu0 0
    %1524 = vmatpush1.bf16.msra.mxu0 0
    %1525 = vmatprep.subr.bf16.mxu0 0
    %1526 = vmatpush1.bf16.msra.mxu0 0
    %1527 = vmatprep.subr.bf16.mxu0 0
    %1528 = vmatpush1.bf16.msra.mxu0 0
    %1529 = vmatprep.subr.bf16.mxu0 0
    %1530 = vmatpush1.bf16.msra.mxu0 0
    %1531 = vmatprep.subr.bf16.mxu0 0
    %1532 = vmatpush1.bf16.msra.mxu0 0
    %1533 = vmatprep.subr.bf16.mxu0 0
    %1534 = vmatpush1.bf16.msra.mxu0 0
    %1535 = vmatprep.subr.bf16.mxu0 0
    %1536 = vmatpush1.bf16.msra.mxu0 0
    %1537 = vmatprep.subr.bf16.mxu0 0
    %1538 = vmatpush1.bf16.msra.mxu0 0
    %1539 = vmatprep.subr.bf16.mxu0 0
    %1540 = vmatpush1.bf16.msra.mxu0 0
    %1541 = vmatprep.subr.bf16.mxu0 0
    %1542 = vmatpush1.bf16.msra.mxu0 0
    %1543 = vmatprep.subr.bf16.mxu0 0
    %1544 = vmatpush1.bf16.msra.mxu0 0
    %1545 = vmatprep.mubr.bf16.mxu0 0
    %1546 = vmatmul.mubr.bf16.gmra.mrb[0].mxu0 %v1511
    %v1547 = vpop.f32.mrb[0].mxu0
    %v1548 = vadd.f32 0.0, %v1547
    %v1549 = vpop.f32.mrb[0].mxu0
    %v1550 = vpop.f32.mrb[0].mxu0
    %v1551 = vadd.f32 0.0, %v1550
    %v1552 = vpop.f32.mrb[0].mxu0
    %1553 = vdwg.mxu0
    %v1554 = vrcp.pop %v1548
    %v1555 = vrcp.pop %v1551
    %v1556 = vmul.f32 %v1506, %v1554
    %v1557 = vmul.f32 %v1508, %v1555
    %v1558 = vpack.c.bf16 %v1557, %v1556
    %v1560 = vsel %vm429, %v1558, 0
    %1562 = vmatprep.subr.bf16.mxu0 0
    %1563 = vmatpush1.bf16.msra.mxu0 %v1428
    %1564 = vmatprep.subr.bf16.mxu0 0
    %1565 = vmatpush1.bf16.msra.mxu0 %v1429
    %1566 = vmatprep.subr.bf16.mxu0 0
    %1567 = vmatpush1.bf16.msra.mxu0 %v1430
    %1568 = vmatprep.subr.bf16.mxu0 0
    %1569 = vmatpush1.bf16.msra.mxu0 %v1431
    %1570 = vmatprep.subr.bf16.mxu0 0
    %1571 = vmatpush1.bf16.msra.mxu0 0
    %1572 = vmatprep.subr.bf16.mxu0 0
    %1573 = vmatpush1.bf16.msra.mxu0 0
    %1574 = vmatprep.subr.bf16.mxu0 0
    %1575 = vmatpush1.bf16.msra.mxu0 0
    %1576 = vmatprep.subr.bf16.mxu0 0
    %1577 = vmatpush1.bf16.msra.mxu0 0
    %1578 = vmatprep.subr.bf16.mxu0 0
    %1579 = vmatpush1.bf16.msra.mxu0 0
    %1580 = vmatprep.subr.bf16.mxu0 0
    %1581 = vmatpush1.bf16.msra.mxu0 0
    %1582 = vmatprep.subr.bf16.mxu0 0
    %1583 = vmatpush1.bf16.msra.mxu0 0
    %1584 = vmatprep.subr.bf16.mxu0 0
    %1585 = vmatpush1.bf16.msra.mxu0 0
    %1586 = vmatprep.subr.bf16.mxu0 0
    %1587 = vmatpush1.bf16.msra.mxu0 0
    %1588 = vmatprep.subr.bf16.mxu0 0
    %1589 = vmatpush1.bf16.msra.mxu0 0
    %1590 = vmatprep.subr.bf16.mxu0 0
    %1591 = vmatpush1.bf16.msra.mxu0 0
    %1592 = vmatprep.subr.bf16.mxu0 0
    %1593 = vmatpush1.bf16.msra.mxu0 0
    %1594 = vmatprep.mubr.bf16.mxu0 0
    %1595 = vmatmul.mubr.bf16.gmra.mrb[0].mxu0 %v1560
    %v1596 = vpop.f32.mrb[0].mxu0
    %v1597 = vadd.f32 0.0, %v1596
    %v1598 = vpop.f32.mrb[0].mxu0
    %v1599 = vpop.f32.mrb[0].mxu0
    %v1600 = vadd.f32 0.0, %v1599
    %v1601 = vpop.f32.mrb[0].mxu0
    %1602 = vdwg.mxu0
    %v1603 = vpack.c.bf16 %v1600, %v1597
    %s1604 = scalar_lea.vmem %s19, 32
    %v1605 = vld [vmem:[%s1604] sm:$0xf]
    %v1606 = vld [vmem:[%s1604 + $0x4] sm:$0xf]
    %v1607 = vld [vmem:[%s1604 + $0x8] sm:$0xf]
    %v1608 = vld [vmem:[%s1604 + $0xc] sm:$0xf]
    %v1609 = vld [vmem:[%s1604 + $0x10] sm:$0xf]
    %v1610 = vld [vmem:[%s1604 + $0x14] sm:$0xf]
    %v1611 = vld [vmem:[%s1604 + $0x18] sm:$0xf]
    %v1612 = vld [vmem:[%s1604 + $0x1c] sm:$0xf]
    %s1613 = scalar_lea.vmem [#allocation10], 1
    %v1614 = vld [vmem:[%s1613] sm:$0x1]
    %v1616 = vlaneseq
    %v1617 = vshrl.u32 %v1616, 7
    %v1618 = vsub.s32 0, %v1617
    %v1619 = vrot.slane %v1614, %v1618
    %v1629 = vunpack.c.l.b16 %v1605
    %v1630 = vunpack.c.l.b16 %v1606
    %v1631 = vunpack.c.l.b16 %v1607
    %v1632 = vunpack.c.l.b16 %v1608
    %v1633 = vunpack.c.l.b16 %v1609
    %v1634 = vunpack.c.l.b16 %v1610
    %v1635 = vunpack.c.l.b16 %v1611
    %v1636 = vunpack.c.l.b16 %v1612
    %v1637 = vpack.c.b16 %v1630, %v1629
    %v1638 = vpack.c.b16 %v1632, %v1631
    %v1639 = vpack.c.b16 %v1634, %v1633
    %v1640 = vpack.c.b16 %v1636, %v1635
    %v1646 = vsel %vm429, %v1603, 0
    %1648 = vmatprep.subr.bf16.mxu0 0
    %1649 = vmatpush1.bf16.msra.mxu0 %v1637
    %1650 = vmatprep.subr.bf16.mxu0 0
    %1651 = vmatpush1.bf16.msra.mxu0 %v1638
    %1652 = vmatprep.subr.bf16.mxu0 0
    %1653 = vmatpush1.bf16.msra.mxu0 %v1639
    %1654 = vmatprep.subr.bf16.mxu0 0
    %1655 = vmatpush1.bf16.msra.mxu0 %v1640
    %1656 = vmatprep.subr.bf16.mxu0 0
    %1657 = vmatpush1.bf16.msra.mxu0 0
    %1658 = vmatprep.subr.bf16.mxu0 0
    %1659 = vmatpush1.bf16.msra.mxu0 0
    %1660 = vmatprep.subr.bf16.mxu0 0
    %1661 = vmatpush1.bf16.msra.mxu0 0
    %1662 = vmatprep.subr.bf16.mxu0 0
    %1663 = vmatpush1.bf16.msra.mxu0 0
    %1664 = vmatprep.subr.bf16.mxu0 0
    %1665 = vmatpush1.bf16.msra.mxu0 0
    %1666 = vmatprep.subr.bf16.mxu0 0
    %1667 = vmatpush1.bf16.msra.mxu0 0
    %1668 = vmatprep.subr.bf16.mxu0 0
    %1669 = vmatpush1.bf16.msra.mxu0 0
    %1670 = vmatprep.subr.bf16.mxu0 0
    %1671 = vmatpush1.bf16.msra.mxu0 0
    %1672 = vmatprep.subr.bf16.mxu0 0
    %1673 = vmatpush1.bf16.msra.mxu0 0
    %1674 = vmatprep.subr.bf16.mxu0 0
    %1675 = vmatpush1.bf16.msra.mxu0 0
    %1676 = vmatprep.subr.bf16.mxu0 0
    %1677 = vmatpush1.bf16.msra.mxu0 0
    %1678 = vmatprep.subr.bf16.mxu0 0
    %1679 = vmatpush1.bf16.msra.mxu0 0
    %1680 = vmatprep.mubr.bf16.mxu0 0
    %1681 = vmatmul.mubr.bf16.gmra.mrb[0].mxu0 %v1646
    %v1682 = vpop.f32.mrb[0].mxu0
    %v1683 = vadd.f32 %v1619, %v1682
    %v1684 = vpop.f32.mrb[0].mxu0
    %v1685 = vpop.f32.mrb[0].mxu0
    %v1686 = vadd.f32 %v1619, %v1685
    %v1687 = vpop.f32.mrb[0].mxu0
    %1688 = vdwg.mxu0
    %v1689 = vadd.f32 %v1195, %v1683
    %v1690 = vadd.f32 %v1196, %v1686
    %v1691 = vld [vmem:[#allocation15] sm:$0xf]
    %v1692 = vld [vmem:[%s31] sm:$0xf]
    %v1693 = vld [vmem:[%s31 + $0x4] sm:$0xf]
    %v1694 = vpack.c.bf16 %v1690, %v1689
    %vm1695 = vcmask 130048
    %v1697 = vsel %vm1695, %v1691, 0
    %1699 = vmatprep.subr.bf16.mxu0 0
    %1700 = vmatpush1.bf16.msra.mxu0 %v1694
    %1701 = vmatprep.subr.bf16.mxu0 0
    %1702 = vmatpush1.bf16.msra.mxu0 0
    %1703 = vmatprep.subr.bf16.mxu0 0
    %1704 = vmatpush1.bf16.msra.mxu0 0
    %1705 = vmatprep.subr.bf16.mxu0 0
    %1706 = vmatpush1.bf16.msra.mxu0 0
    %1707 = vmatprep.subr.bf16.mxu0 0
    %1708 = vmatpush1.bf16.msra.mxu0 0
    %1709 = vmatprep.subr.bf16.mxu0 0
    %1710 = vmatpush1.bf16.msra.mxu0 0
    %1711 = vmatprep.subr.bf16.mxu0 0
    %1712 = vmatpush1.bf16.msra.mxu0 0
    %1713 = vmatprep.subr.bf16.mxu0 0
    %1714 = vmatpush1.bf16.msra.mxu0 0
    %1715 = vmatprep.subr.bf16.mxu0 0
    %1716 = vmatpush1.bf16.msra.mxu0 0
    %1717 = vmatprep.subr.bf16.mxu0 0
    %1718 = vmatpush1.bf16.msra.mxu0 0
    %1719 = vmatprep.subr.bf16.mxu0 0
    %1720 = vmatpush1.bf16.msra.mxu0 0
    %1721 = vmatprep.subr.bf16.mxu0 0
    %1722 = vmatpush1.bf16.msra.mxu0 0
    %1723 = vmatprep.subr.bf16.mxu0 0
    %1724 = vmatpush1.bf16.msra.mxu0 0
    %1725 = vmatprep.subr.bf16.mxu0 0
    %1726 = vmatpush1.bf16.msra.mxu0 0
    %1727 = vmatprep.subr.bf16.mxu0 0
    %1728 = vmatpush1.bf16.msra.mxu0 0
    %1729 = vmatprep.subr.bf16.mxu0 0
    %1730 = vmatpush1.bf16.msra.mxu0 0
    %1731 = vmatprep.mubr.bf16.mxu0 0
    %1732 = vmatmul.mubr.bf16.gmra.mrb[0].mxu0 %v1697
    %v1733 = vpop.f32.mrb[0].mxu0
    %v1734 = vadd.f32 0.0, %v1733
    %v1735 = vpop.f32.mrb[0].mxu0
    %v1736 = vpop.f32.mrb[0].mxu0
    %v1737 = vpop.f32.mrb[0].mxu0
    %1738 = vdwg.mxu0
    %v1739 = vpack.c.bf16 %v1734, %v1734
    %v1741 = vsel %vm429, %v1739, 0
    %1743 = vmatprep.subr.bf16.mxu0 0
    %1744 = vmatpush1.bf16.msra.mxu0 %v491
    %1745 = vmatprep.subr.bf16.mxu0 0
    %1746 = vmatpush1.bf16.msra.mxu0 %v492
    %1747 = vmatprep.subr.bf16.mxu0 0
    %1748 = vmatpush1.bf16.msra.mxu0 %v493
    %1749 = vmatprep.subr.bf16.mxu0 0
    %1750 = vmatpush1.bf16.msra.mxu0 %v494
    %1751 = vmatprep.subr.bf16.mxu0 0
    %1752 = vmatpush1.bf16.msra.mxu0 0
    %1753 = vmatprep.subr.bf16.mxu0 0
    %1754 = vmatpush1.bf16.msra.mxu0 0
    %1755 = vmatprep.subr.bf16.mxu0 0
    %1756 = vmatpush1.bf16.msra.mxu0 0
    %1757 = vmatprep.subr.bf16.mxu0 0
    %1758 = vmatpush1.bf16.msra.mxu0 0
    %1759 = vmatprep.subr.bf16.mxu0 0
    %1760 = vmatpush1.bf16.msra.mxu0 0
    %1761 = vmatprep.subr.bf16.mxu0 0
    %1762 = vmatpush1.bf16.msra.mxu0 0
    %1763 = vmatprep.subr.bf16.mxu0 0
    %1764 = vmatpush1.bf16.msra.mxu0 0
    %1765 = vmatprep.subr.bf16.mxu0 0
    %1766 = vmatpush1.bf16.msra.mxu0 0
    %1767 = vmatprep.subr.bf16.mxu0 0
    %1768 = vmatpush1.bf16.msra.mxu0 0
    %1769 = vmatprep.subr.bf16.mxu0 0
    %1770 = vmatpush1.bf16.msra.mxu0 0
    %1771 = vmatprep.subr.bf16.mxu0 0
    %1772 = vmatpush1.bf16.msra.mxu0 0
    %1773 = vmatprep.subr.bf16.mxu0 0
    %1774 = vmatpush1.bf16.msra.mxu0 0
    %1775 = vmatprep.mubr.bf16.mxu0 0
    %1776 = vmatmul.mubr.bf16.gmra.mrb[0].mxu0 %v1741
    %v1777 = vpop.f32.mrb[0].mxu0
    %v1778 = vadd.f32 0.0, %v1777
    %v1779 = vpop.f32.mrb[0].mxu0
    %v1780 = vpop.f32.mrb[0].mxu0
    %v1781 = vpop.f32.mrb[0].mxu0
    %1782 = vdwg.mxu0
    %v1783 = vsub.f32 %v1734, %v1778
    %v1784 = vmul.f32 %v1783, %v1783
    %v1785 = vpack.c.bf16 %v1784, %v1784
    %v1787 = vsel %vm429, %v1785, 0
    %1789 = vmatprep.subr.bf16.mxu0 0
    %1790 = vmatpush1.bf16.msra.mxu0 %v491
    %1791 = vmatprep.subr.bf16.mxu0 0
    %1792 = vmatpush1.bf16.msra.mxu0 %v492
    %1793 = vmatprep.subr.bf16.mxu0 0
    %1794 = vmatpush1.bf16.msra.mxu0 %v493
    %1795 = vmatprep.subr.bf16.mxu0 0
    %1796 = vmatpush1.bf16.msra.mxu0 %v494
    %1797 = vmatprep.subr.bf16.mxu0 0
    %1798 = vmatpush1.bf16.msra.mxu0 0
    %1799 = vmatprep.subr.bf16.mxu0 0
    %1800 = vmatpush1.bf16.msra.mxu0 0
    %1801 = vmatprep.subr.bf16.mxu0 0
    %1802 = vmatpush1.bf16.msra.mxu0 0
    %1803 = vmatprep.subr.bf16.mxu0 0
    %1804 = vmatpush1.bf16.msra.mxu0 0
    %1805 = vmatprep.subr.bf16.mxu0 0
    %1806 = vmatpush1.bf16.msra.mxu0 0
    %1807 = vmatprep.subr.bf16.mxu0 0
    %1808 = vmatpush1.bf16.msra.mxu0 0
    %1809 = vmatprep.subr.bf16.mxu0 0
    %1810 = vmatpush1.bf16.msra.mxu0 0
    %1811 = vmatprep.subr.bf16.mxu0 0
    %1812 = vmatpush1.bf16.msra.mxu0 0
    %1813 = vmatprep.subr.bf16.mxu0 0
    %1814 = vmatpush1.bf16.msra.mxu0 0
    %1815 = vmatprep.subr.bf16.mxu0 0
    %1816 = vmatpush1.bf16.msra.mxu0 0
    %1817 = vmatprep.subr.bf16.mxu0 0
    %1818 = vmatpush1.bf16.msra.mxu0 0
    %1819 = vmatprep.subr.bf16.mxu0 0
    %1820 = vmatpush1.bf16.msra.mxu0 0
    %1821 = vmatprep.mubr.bf16.mxu0 0
    %1822 = vmatmul.mubr.bf16.gmra.mrb[0].mxu0 %v1787
    %v1823 = vpop.f32.mrb[0].mxu0
    %v1824 = vadd.f32 1e-05, %v1823
    %v1825 = vpop.f32.mrb[0].mxu0
    %v1826 = vpop.f32.mrb[0].mxu0
    %v1827 = vpop.f32.mrb[0].mxu0
    %1828 = vdwg.mxu0
    %v1829 = vrsqrt.pop %v1824
    %v1830 = vmul.f32 %v1783, %v1829
    %v1831 = vmul.f32 %v1830, %v741
    %v1832 = vadd.f32 %v1831, %v749
    %v1833 = vpack.c.bf16 %v1832, %v1832
    %s1834 = scalar_lea.vmem [#allocation7], 128
    %v1835 = vld [vmem:[%s1834] sm:$0xff]
    %v1836 = vld [vmem:[%s1834 + $0x8] sm:$0xff]
    %v1837 = vld [vmem:[%s1834 + $0x10] sm:$0xff]
    %v1838 = vld [vmem:[%s1834 + $0x18] sm:$0xff]
    %v1839 = vld [vmem:[%s1834 + $0x20] sm:$0xff]
    %v1840 = vld [vmem:[%s1834 + $0x28] sm:$0xff]
    %v1841 = vld [vmem:[%s1834 + $0x30] sm:$0xff]
    %v1842 = vld [vmem:[%s1834 + $0x38] sm:$0xff]
    %s1843 = scalar_lea.vmem [#allocation9], 4
    %v1844 = vld [vmem:[%s1843] sm:$0x3]
    %v1846 = vlaneseq
    %v1847 = vshrl.u32 %v1846, 7
    %v1848 = vsub.s32 0, %v1847
    %v1849 = vrot.slane %v1844, %v1848
    %v1850 = vlaneseq
    %v1851 = vshrl.u32 %v1850, 7
    %v1852 = vsub.s32 1, %v1851
    %v1853 = vrot.slane %v1844, %v1852
    %v1864 = vunpack.c.l.b16 %v1835
    %v1865 = vunpack.c.h.b16 %v1835
    %v1866 = vunpack.c.l.b16 %v1836
    %v1867 = vunpack.c.h.b16 %v1836
    %v1868 = vunpack.c.l.b16 %v1837
    %v1869 = vunpack.c.h.b16 %v1837
    %v1870 = vunpack.c.l.b16 %v1838
    %v1871 = vunpack.c.h.b16 %v1838
    %v1872 = vunpack.c.l.b16 %v1839
    %v1873 = vunpack.c.h.b16 %v1839
    %v1874 = vunpack.c.l.b16 %v1840
    %v1875 = vunpack.c.h.b16 %v1840
    %v1876 = vunpack.c.l.b16 %v1841
    %v1877 = vunpack.c.h.b16 %v1841
    %v1878 = vunpack.c.l.b16 %v1842
    %v1879 = vunpack.c.h.b16 %v1842
    %v1880 = vpack.c.b16 %v1866, %v1864
    %v1881 = vpack.c.b16 %v1867, %v1865
    %v1882 = vpack.c.b16 %v1870, %v1868
    %v1883 = vpack.c.b16 %v1871, %v1869
    %v1884 = vpack.c.b16 %v1874, %v1872
    %v1885 = vpack.c.b16 %v1875, %v1873
    %v1886 = vpack.c.b16 %v1878, %v1876
    %v1887 = vpack.c.b16 %v1879, %v1877
    %v1897 = vsel %vm429, %v1833, 0
    %1899 = vmatprep.subr.bf16.mxu0 %v1881
    %1900 = vmatpush1.bf16.msra.mxu0 %v1880
    %1901 = vmatprep.subr.bf16.mxu0 %v1883
    %1902 = vmatpush1.bf16.msra.mxu0 %v1882
    %1903 = vmatprep.subr.bf16.mxu0 %v1885
    %1904 = vmatpush1.bf16.msra.mxu0 %v1884
    %1905 = vmatprep.subr.bf16.mxu0 %v1887
    %1906 = vmatpush1.bf16.msra.mxu0 %v1886
    %1907 = vmatprep.subr.bf16.mxu0 0
    %1908 = vmatpush1.bf16.msra.mxu0 0
    %1909 = vmatprep.subr.bf16.mxu0 0
    %1910 = vmatpush1.bf16.msra.mxu0 0
    %1911 = vmatprep.subr.bf16.mxu0 0
    %1912 = vmatpush1.bf16.msra.mxu0 0
    %1913 = vmatprep.subr.bf16.mxu0 0
    %1914 = vmatpush1.bf16.msra.mxu0 0
    %1915 = vmatprep.subr.bf16.mxu0 0
    %1916 = vmatpush1.bf16.msra.mxu0 0
    %1917 = vmatprep.subr.bf16.mxu0 0
    %1918 = vmatpush1.bf16.msra.mxu0 0
    %1919 = vmatprep.subr.bf16.mxu0 0
    %1920 = vmatpush1.bf16.msra.mxu0 0
    %1921 = vmatprep.subr.bf16.mxu0 0
    %1922 = vmatpush1.bf16.msra.mxu0 0
    %1923 = vmatprep.subr.bf16.mxu0 0
    %1924 = vmatpush1.bf16.msra.mxu0 0
    %1925 = vmatprep.subr.bf16.mxu0 0
    %1926 = vmatpush1.bf16.msra.mxu0 0
    %1927 = vmatprep.subr.bf16.mxu0 0
    %1928 = vmatpush1.bf16.msra.mxu0 0
    %1929 = vmatprep.subr.bf16.mxu0 0
    %1930 = vmatpush1.bf16.msra.mxu0 0
    %1931 = vmatprep.mubr.bf16.mxu0 0
    %1932 = vmatmul.mubr.bf16.gmra.mrb[0].mxu0 %v1897
    %v1933 = vpop.f32.mrb[0].mxu0
    %v1934 = vadd.f32 %v1849, %v1933
    %v1935 = vpop.f32.mrb[0].mxu0
    %v1936 = vadd.f32 %v1853, %v1935
    %v1937 = vpop.f32.mrb[0].mxu0
    %v1938 = vpop.f32.mrb[0].mxu0
    %1939 = vdwg.mxu0
    %1944 = vrot.lane.b32.xlu0 %v630, 64
    %v1945 = vpop.permute.xlu0 %1944
    %1946 = vrot.lane.b32.xlu0 %v631, 64
    %v1947 = vpop.permute.xlu0 %1946
    %1948 = vrot.lane.b32.xlu0 %v632, 64
    %v1949 = vpop.permute.xlu0 %1948
    %1950 = vrot.lane.b32.xlu0 %v633, 64
    %v1951 = vpop.permute.xlu0 %1950
    %v1956 = vmul.f32 %v1934, %v1945
    %v1957 = vmul.f32 %v1934, %v1947
    %v1958 = vmul.f32 %v1934, %v1949
    %v1959 = vmul.f32 %v1934, %v1951
    %v1960 = vpack.c.bf16 %v1957, %v1956
    %v1961 = vpack.c.bf16 %v1959, %v1958
    %v1962 = vmul.f32 %v1936, %v630
    %v1963 = vmul.f32 %v1936, %v631
    %v1964 = vmul.f32 %v1936, %v632
    %v1965 = vmul.f32 %v1936, %v633
    %v1966 = vpack.c.bf16 %v1963, %v1962
    %v1967 = vpack.c.bf16 %v1965, %v1964
    %v1968 = vpack.c.bf16 %v1934, %v1934
    %1971 = vrot.lane.b32.xlu0 %v1960, 64
    %v1972 = vpop.permute.xlu0 %1971
    %1973 = vrot.lane.b32.xlu0 %v1961, 64
    %v1974 = vpop.permute.xlu0 %1973
    %v1976 = vsel %vm429, %v1968, 0
    %v1979 = vsel %vm429, %v1972, 0
    %v1982 = vsel %vm429, %v1974, 0
    %1984 = vmatprep.subr.bf16.mxu0 0
    %1985 = vmatpush1.bf16.xpose.msra.mxu0 %v1979
    %1986 = vmatprep.subr.bf16.mxu0 0
    %1987 = vmatpush1.bf16.xpose.msra.mxu0 %v1982
    %1988 = vmatprep.subr.bf16.mxu0 0
    %1989 = vmatpush1.bf16.xpose.msra.mxu0 0
    %1990 = vmatprep.subr.bf16.mxu0 0
    %1991 = vmatpush1.bf16.xpose.msra.mxu0 0
    %1992 = vmatprep.subr.bf16.mxu0 0
    %1993 = vmatpush1.bf16.xpose.msra.mxu0 0
    %1994 = vmatprep.subr.bf16.mxu0 0
    %1995 = vmatpush1.bf16.xpose.msra.mxu0 0
    %1996 = vmatprep.subr.bf16.mxu0 0
    %1997 = vmatpush1.bf16.xpose.msra.mxu0 0
    %1998 = vmatprep.subr.bf16.mxu0 0
    %1999 = vmatpush1.bf16.xpose.msra.mxu0 0
    %2000 = vmatprep.subr.bf16.mxu0 0
    %2001 = vmatpush1.bf16.xpose.msra.mxu0 0
    %2002 = vmatprep.subr.bf16.mxu0 0
    %2003 = vmatpush1.bf16.xpose.msra.mxu0 0
    %2004 = vmatprep.subr.bf16.mxu0 0
    %2005 = vmatpush1.bf16.xpose.msra.mxu0 0
    %2006 = vmatprep.subr.bf16.mxu0 0
    %2007 = vmatpush1.bf16.xpose.msra.mxu0 0
    %2008 = vmatprep.subr.bf16.mxu0 0
    %2009 = vmatpush1.bf16.xpose.msra.mxu0 0
    %2010 = vmatprep.subr.bf16.mxu0 0
    %2011 = vmatpush1.bf16.xpose.msra.mxu0 0
    %2012 = vmatprep.subr.bf16.mxu0 0
    %2013 = vmatpush1.bf16.xpose.msra.mxu0 0
    %2014 = vmatprep.subr.bf16.mxu0 0
    %2015 = vmatpush1.bf16.xpose.msra.mxu0 0
    %2016 = vmatprep.mubr.bf16.mxu0 0
    %2017 = vmatmul.mubr.bf16.gmra.mrb[0].mxu0 %v1976
    %v2018 = vpop.f32.mrb[0].mxu0
    %v2019 = vadd.f32 0.0, %v2018
    %v2020 = vpop.f32.mrb[0].mxu0
    %v2021 = vpop.f32.mrb[0].mxu0
    %v2022 = vpop.f32.mrb[0].mxu0
    %2023 = vdwg.mxu0
    %v2024 = vmul.f32 %v2019, 0.35355338
    %v2025 = vadd.f32 %v2024, %v634
    %v2026 = vmul.f32 %v2025, 1.442695
    %v2027 = vpow.pop %v2026
    %v2028 = vpack.c.bf16 %v2027, %v2027
    %v2033 = vunpack.c.l.b16 %v635
    %v2034 = vunpack.c.l.b16 %v636
    %v2035 = vunpack.c.l.b16 %v637
    %v2036 = vunpack.c.l.b16 %v638
    %v2037 = vpack.c.b16 %v2034, %v2033
    %v2038 = vpack.c.b16 %v2036, %v2035
    %vm2041 = vcmask 261120
    %v2043 = vsel %vm2041, %v2028, 0
    %2045 = vmatprep.subr.bf16.mxu0 0
    %2046 = vmatpush1.bf16.msra.mxu0 %v2037
    %2047 = vmatprep.subr.bf16.mxu0 0
    %2048 = vmatpush1.bf16.msra.mxu0 %v2038
    %2049 = vmatprep.subr.bf16.mxu0 0
    %2050 = vmatpush1.bf16.msra.mxu0 0
    %2051 = vmatprep.subr.bf16.mxu0 0
    %2052 = vmatpush1.bf16.msra.mxu0 0
    %2053 = vmatprep.subr.bf16.mxu0 0
    %2054 = vmatpush1.bf16.msra.mxu0 0
    %2055 = vmatprep.subr.bf16.mxu0 0
    %2056 = vmatpush1.bf16.msra.mxu0 0
    %2057 = vmatprep.subr.bf16.mxu0 0
    %2058 = vmatpush1.bf16.msra.mxu0 0
    %2059 = vmatprep.subr.bf16.mxu0 0
    %2060 = vmatpush1.bf16.msra.mxu0 0
    %2061 = vmatprep.subr.bf16.mxu0 0
    %2062 = vmatpush1.bf16.msra.mxu0 0
    %2063 = vmatprep.subr.bf16.mxu0 0
    %2064 = vmatpush1.bf16.msra.mxu0 0
    %2065 = vmatprep.subr.bf16.mxu0 0
    %2066 = vmatpush1.bf16.msra.mxu0 0
    %2067 = vmatprep.subr.bf16.mxu0 0
    %2068 = vmatpush1.bf16.msra.mxu0 0
    %2069 = vmatprep.subr.bf16.mxu0 0
    %2070 = vmatpush1.bf16.msra.mxu0 0
    %2071 = vmatprep.subr.bf16.mxu0 0
    %2072 = vmatpush1.bf16.msra.mxu0 0
    %2073 = vmatprep.subr.bf16.mxu0 0
    %2074 = vmatpush1.bf16.msra.mxu0 0
    %2075 = vmatprep.subr.bf16.mxu0 0
    %2076 = vmatpush1.bf16.msra.mxu0 0
    %2077 = vmatprep.mubr.bf16.mxu0 0
    %2078 = vmatmul.mubr.bf16.gmra.mrb[0].mxu0 %v2043
    %v2079 = vpop.f32.mrb[0].mxu0
    %v2080 = vadd.f32 0.0, %v2079
    %v2081 = vpop.f32.mrb[0].mxu0
    %v2082 = vpop.f32.mrb[0].mxu0
    %v2083 = vpop.f32.mrb[0].mxu0
    %2084 = vdwg.mxu0
    %v2085 = vrcp.pop %v2080
    %v2086 = vmul.f32 %v2027, %v2085
    %v2087 = vpack.c.bf16 %v2086, %v2086
    %v2089 = vsel %vm2041, %v2087, 0
    %2091 = vmatprep.subr.bf16.mxu0 0
    %2092 = vmatpush1.bf16.msra.mxu0 %v1966
    %2093 = vmatprep.subr.bf16.mxu0 0
    %2094 = vmatpush1.bf16.msra.mxu0 %v1967
    %2095 = vmatprep.subr.bf16.mxu0 0
    %2096 = vmatpush1.bf16.msra.mxu0 0
    %2097 = vmatprep.subr.bf16.mxu0 0
    %2098 = vmatpush1.bf16.msra.mxu0 0
    %2099 = vmatprep.subr.bf16.mxu0 0
    %2100 = vmatpush1.bf16.msra.mxu0 0
    %2101 = vmatprep.subr.bf16.mxu0 0
    %2102 = vmatpush1.bf16.msra.mxu0 0
    %2103 = vmatprep.subr.bf16.mxu0 0
    %2104 = vmatpush1.bf16.msra.mxu0 0
    %2105 = vmatprep.subr.bf16.mxu0 0
    %2106 = vmatpush1.bf16.msra.mxu0 0
    %2107 = vmatprep.subr.bf16.mxu0 0
    %2108 = vmatpush1.bf16.msra.mxu0 0
    %2109 = vmatprep.subr.bf16.mxu0 0
    %2110 = vmatpush1.bf16.msra.mxu0 0
    %2111 = vmatprep.subr.bf16.mxu0 0
    %2112 = vmatpush1.bf16.msra.mxu0 0
    %2113 = vmatprep.subr.bf16.mxu0 0
    %2114 = vmatpush1.bf16.msra.mxu0 0
    %2115 = vmatprep.subr.bf16.mxu0 0
    %2116 = vmatpush1.bf16.msra.mxu0 0
    %2117 = vmatprep.subr.bf16.mxu0 0
    %2118 = vmatpush1.bf16.msra.mxu0 0
    %2119 = vmatprep.subr.bf16.mxu0 0
    %2120 = vmatpush1.bf16.msra.mxu0 0
    %2121 = vmatprep.subr.bf16.mxu0 0
    %2122 = vmatpush1.bf16.msra.mxu0 0
    %2123 = vmatprep.mubr.bf16.mxu0 0
    %2124 = vmatmul.mubr.bf16.gmra.mrb[0].mxu0 %v2089
    %v2125 = vpop.f32.mrb[0].mxu0
    %v2126 = vadd.f32 0.0, %v2125
    %v2127 = vpop.f32.mrb[0].mxu0
    %v2128 = vpop.f32.mrb[0].mxu0
    %v2129 = vpop.f32.mrb[0].mxu0
    %2130 = vdwg.mxu0
    %v2131 = vpack.c.bf16 %v2126, %v2126
    %s2132 = scalar_lea.vmem %s19, 64
    %v2133 = vld [vmem:[%s2132] sm:$0xf]
    %v2134 = vld [vmem:[%s2132 + $0x4] sm:$0xf]
    %v2135 = vld [vmem:[%s2132 + $0x8] sm:$0xf]
    %v2136 = vld [vmem:[%s2132 + $0xc] sm:$0xf]
    %v2137 = vld [vmem:[%s2132 + $0x10] sm:$0xf]
    %v2138 = vld [vmem:[%s2132 + $0x14] sm:$0xf]
    %v2139 = vld [vmem:[%s2132 + $0x18] sm:$0xf]
    %v2140 = vld [vmem:[%s2132 + $0x1c] sm:$0xf]
    %s2141 = scalar_lea.vmem [#allocation10], 2
    %v2142 = vld [vmem:[%s2141] sm:$0x1]
    %v2144 = vlaneseq
    %v2145 = vshrl.u32 %v2144, 7
    %v2146 = vsub.s32 0, %v2145
    %v2147 = vrot.slane %v2142, %v2146
    %v2157 = vunpack.c.l.b16 %v2133
    %v2158 = vunpack.c.l.b16 %v2134
    %v2159 = vunpack.c.l.b16 %v2135
    %v2160 = vunpack.c.l.b16 %v2136
    %v2161 = vunpack.c.l.b16 %v2137
    %v2162 = vunpack.c.l.b16 %v2138
    %v2163 = vunpack.c.l.b16 %v2139
    %v2164 = vunpack.c.l.b16 %v2140
    %v2165 = vpack.c.b16 %v2158, %v2157
    %v2166 = vpack.c.b16 %v2160, %v2159
    %v2167 = vpack.c.b16 %v2162, %v2161
    %v2168 = vpack.c.b16 %v2164, %v2163
    %v2174 = vsel %vm429, %v2131, 0
    %2176 = vmatprep.subr.bf16.mxu0 0
    %2177 = vmatpush1.bf16.msra.mxu0 %v2165
    %2178 = vmatprep.subr.bf16.mxu0 0
    %2179 = vmatpush1.bf16.msra.mxu0 %v2166
    %2180 = vmatprep.subr.bf16.mxu0 0
    %2181 = vmatpush1.bf16.msra.mxu0 %v2167
    %2182 = vmatprep.subr.bf16.mxu0 0
    %2183 = vmatpush1.bf16.msra.mxu0 %v2168
    %2184 = vmatprep.subr.bf16.mxu0 0
    %2185 = vmatpush1.bf16.msra.mxu0 0
    %2186 = vmatprep.subr.bf16.mxu0 0
    %2187 = vmatpush1.bf16.msra.mxu0 0
    %2188 = vmatprep.subr.bf16.mxu0 0
    %2189 = vmatpush1.bf16.msra.mxu0 0
    %2190 = vmatprep.subr.bf16.mxu0 0
    %2191 = vmatpush1.bf16.msra.mxu0 0
    %2192 = vmatprep.subr.bf16.mxu0 0
    %2193 = vmatpush1.bf16.msra.mxu0 0
    %2194 = vmatprep.subr.bf16.mxu0 0
    %2195 = vmatpush1.bf16.msra.mxu0 0
    %2196 = vmatprep.subr.bf16.mxu0 0
    %2197 = vmatpush1.bf16.msra.mxu0 0
    %2198 = vmatprep.subr.bf16.mxu0 0
    %2199 = vmatpush1.bf16.msra.mxu0 0
    %2200 = vmatprep.subr.bf16.mxu0 0
    %2201 = vmatpush1.bf16.msra.mxu0 0
    %2202 = vmatprep.subr.bf16.mxu0 0
    %2203 = vmatpush1.bf16.msra.mxu0 0
    %2204 = vmatprep.subr.bf16.mxu0 0
    %2205 = vmatpush1.bf16.msra.mxu0 0
    %2206 = vmatprep.subr.bf16.mxu0 0
    %2207 = vmatpush1.bf16.msra.mxu0 0
    %2208 = vmatprep.mubr.bf16.mxu0 0
    %2209 = vmatmul.mubr.bf16.gmra.mrb[0].mxu0 %v2174
    %v2210 = vpop.f32.mrb[0].mxu0
    %v2211 = vadd.f32 %v2147, %v2210
    %v2212 = vpop.f32.mrb[0].mxu0
    %v2213 = vpop.f32.mrb[0].mxu0
    %v2214 = vpop.f32.mrb[0].mxu0
    %2215 = vdwg.mxu0
    %v2216 = vadd.f32 %v1734, %v2211
    %v2217 = vpack.c.bf16 %v2216, %v2216
    %v2219 = vsel %vm429, %v2217, 0
    %2221 = vmatprep.subr.bf16.mxu0 0
    %2222 = vmatpush1.bf16.msra.mxu0 %v491
    %2223 = vmatprep.subr.bf16.mxu0 0
    %2224 = vmatpush1.bf16.msra.mxu0 %v492
    %2225 = vmatprep.subr.bf16.mxu0 0
    %2226 = vmatpush1.bf16.msra.mxu0 %v493
    %2227 = vmatprep.subr.bf16.mxu0 0
    %2228 = vmatpush1.bf16.msra.mxu0 %v494
    %2229 = vmatprep.subr.bf16.mxu0 0
    %2230 = vmatpush1.bf16.msra.mxu0 0
    %2231 = vmatprep.subr.bf16.mxu0 0
    %2232 = vmatpush1.bf16.msra.mxu0 0
    %2233 = vmatprep.subr.bf16.mxu0 0
    %2234 = vmatpush1.bf16.msra.mxu0 0
    %2235 = vmatprep.subr.bf16.mxu0 0
    %2236 = vmatpush1.bf16.msra.mxu0 0
    %2237 = vmatprep.subr.bf16.mxu0 0
    %2238 = vmatpush1.bf16.msra.mxu0 0
    %2239 = vmatprep.subr.bf16.mxu0 0
    %2240 = vmatpush1.bf16.msra.mxu0 0
    %2241 = vmatprep.subr.bf16.mxu0 0
    %2242 = vmatpush1.bf16.msra.mxu0 0
    %2243 = vmatprep.subr.bf16.mxu0 0
    %2244 = vmatpush1.bf16.msra.mxu0 0
    %2245 = vmatprep.subr.bf16.mxu0 0
    %2246 = vmatpush1.bf16.msra.mxu0 0
    %2247 = vmatprep.subr.bf16.mxu0 0
    %2248 = vmatpush1.bf16.msra.mxu0 0
    %2249 = vmatprep.subr.bf16.mxu0 0
    %2250 = vmatpush1.bf16.msra.mxu0 0
    %2251 = vmatprep.subr.bf16.mxu0 0
    %2252 = vmatpush1.bf16.msra.mxu0 0
    %2253 = vmatprep.mubr.bf16.mxu0 0
    %2254 = vmatmul.mubr.bf16.gmra.mrb[0].mxu0 %v2219
    %v2255 = vpop.f32.mrb[0].mxu0
    %v2256 = vadd.f32 0.0, %v2255
    %v2257 = vpop.f32.mrb[0].mxu0
    %v2258 = vpop.f32.mrb[0].mxu0
    %v2259 = vpop.f32.mrb[0].mxu0
    %2260 = vdwg.mxu0
    %v2261 = vsub.f32 %v2216, %v2256
    %v2262 = vmul.f32 %v2261, %v2261
    %v2263 = vpack.c.bf16 %v2262, %v2262
    %v2265 = vsel %vm429, %v2263, 0
    %2267 = vmatprep.subr.bf16.mxu0 0
    %2268 = vmatpush1.bf16.msra.mxu0 %v491
    %2269 = vmatprep.subr.bf16.mxu0 0
    %2270 = vmatpush1.bf16.msra.mxu0 %v492
    %2271 = vmatprep.subr.bf16.mxu0 0
    %2272 = vmatpush1.bf16.msra.mxu0 %v493
    %2273 = vmatprep.subr.bf16.mxu0 0
    %2274 = vmatpush1.bf16.msra.mxu0 %v494
    %2275 = vmatprep.subr.bf16.mxu0 0
    %2276 = vmatpush1.bf16.msra.mxu0 0
    %2277 = vmatprep.subr.bf16.mxu0 0
    %2278 = vmatpush1.bf16.msra.mxu0 0
    %2279 = vmatprep.subr.bf16.mxu0 0
    %2280 = vmatpush1.bf16.msra.mxu0 0
    %2281 = vmatprep.subr.bf16.mxu0 0
    %2282 = vmatpush1.bf16.msra.mxu0 0
    %2283 = vmatprep.subr.bf16.mxu0 0
    %2284 = vmatpush1.bf16.msra.mxu0 0
    %2285 = vmatprep.subr.bf16.mxu0 0
    %2286 = vmatpush1.bf16.msra.mxu0 0
    %2287 = vmatprep.subr.bf16.mxu0 0
    %2288 = vmatpush1.bf16.msra.mxu0 0
    %2289 = vmatprep.subr.bf16.mxu0 0
    %2290 = vmatpush1.bf16.msra.mxu0 0
    %2291 = vmatprep.subr.bf16.mxu0 0
    %2292 = vmatpush1.bf16.msra.mxu0 0
    %2293 = vmatprep.subr.bf16.mxu0 0
    %2294 = vmatpush1.bf16.msra.mxu0 0
    %2295 = vmatprep.subr.bf16.mxu0 0
    %2296 = vmatpush1.bf16.msra.mxu0 0
    %2297 = vmatprep.subr.bf16.mxu0 0
    %2298 = vmatpush1.bf16.msra.mxu0 0
    %2299 = vmatprep.mubr.bf16.mxu0 0
    %2300 = vmatmul.mubr.bf16.gmra.mrb[0].mxu0 %v2265
    %v2301 = vpop.f32.mrb[0].mxu0
    %v2302 = vadd.f32 1e-05, %v2301
    %v2303 = vpop.f32.mrb[0].mxu0
    %v2304 = vpop.f32.mrb[0].mxu0
    %v2305 = vpop.f32.mrb[0].mxu0
    %2306 = vdwg.mxu0
    %v2307 = vrsqrt.pop %v2302
    %v2308 = vmul.f32 %v2261, %v2307
    %v2309 = vmul.f32 %v2308, %v741
    %v2310 = vadd.f32 %v2309, %v749
    %v2311 = vpack.c.bf16 %v2310, %v2310
    %s2312 = scalar_lea.vmem [#allocation7], 192
    %v2313 = vld [vmem:[%s2312] sm:$0xff]
    %v2314 = vld [vmem:[%s2312 + $0x8] sm:$0xff]
    %v2315 = vld [vmem:[%s2312 + $0x10] sm:$0xff]
    %v2316 = vld [vmem:[%s2312 + $0x18] sm:$0xff]
    %v2317 = vld [vmem:[%s2312 + $0x20] sm:$0xff]
    %v2318 = vld [vmem:[%s2312 + $0x28] sm:$0xff]
    %v2319 = vld [vmem:[%s2312 + $0x30] sm:$0xff]
    %v2320 = vld [vmem:[%s2312 + $0x38] sm:$0xff]
    %s2321 = scalar_lea.vmem [#allocation9], 6
    %v2322 = vld [vmem:[%s2321] sm:$0x3]
    %v2324 = vlaneseq
    %v2325 = vshrl.u32 %v2324, 7
    %v2326 = vsub.s32 0, %v2325
    %v2327 = vrot.slane %v2322, %v2326
    %v2328 = vlaneseq
    %v2329 = vshrl.u32 %v2328, 7
    %v2330 = vsub.s32 1, %v2329
    %v2331 = vrot.slane %v2322, %v2330
    %v2342 = vunpack.c.l.b16 %v2313
    %v2343 = vunpack.c.h.b16 %v2313
    %v2344 = vunpack.c.l.b16 %v2314
    %v2345 = vunpack.c.h.b16 %v2314
    %v2346 = vunpack.c.l.b16 %v2315
    %v2347 = vunpack.c.h.b16 %v2315
    %v2348 = vunpack.c.l.b16 %v2316
    %v2349 = vunpack.c.h.b16 %v2316
    %v2350 = vunpack.c.l.b16 %v2317
    %v2351 = vunpack.c.h.b16 %v2317
    %v2352 = vunpack.c.l.b16 %v2318
    %v2353 = vunpack.c.h.b16 %v2318
    %v2354 = vunpack.c.l.b16 %v2319
    %v2355 = vunpack.c.h.b16 %v2319
    %v2356 = vunpack.c.l.b16 %v2320
    %v2357 = vunpack.c.h.b16 %v2320
    %v2358 = vpack.c.b16 %v2344, %v2342
    %v2359 = vpack.c.b16 %v2345, %v2343
    %v2360 = vpack.c.b16 %v2348, %v2346
    %v2361 = vpack.c.b16 %v2349, %v2347
    %v2362 = vpack.c.b16 %v2352, %v2350
    %v2363 = vpack.c.b16 %v2353, %v2351
    %v2364 = vpack.c.b16 %v2356, %v2354
    %v2365 = vpack.c.b16 %v2357, %v2355
    %v2375 = vsel %vm429, %v2311, 0
    %2377 = vmatprep.subr.bf16.mxu0 %v2359
    %2378 = vmatpush1.bf16.msra.mxu0 %v2358
    %2379 = vmatprep.subr.bf16.mxu0 %v2361
    %2380 = vmatpush1.bf16.msra.mxu0 %v2360
    %2381 = vmatprep.subr.bf16.mxu0 %v2363
    %2382 = vmatpush1.bf16.msra.mxu0 %v2362
    %2383 = vmatprep.subr.bf16.mxu0 %v2365
    %2384 = vmatpush1.bf16.msra.mxu0 %v2364
    %2385 = vmatprep.subr.bf16.mxu0 0
    %2386 = vmatpush1.bf16.msra.mxu0 0
    %2387 = vmatprep.subr.bf16.mxu0 0
    %2388 = vmatpush1.bf16.msra.mxu0 0
    %2389 = vmatprep.subr.bf16.mxu0 0
    %2390 = vmatpush1.bf16.msra.mxu0 0
    %2391 = vmatprep.subr.bf16.mxu0 0
    %2392 = vmatpush1.bf16.msra.mxu0 0
    %2393 = vmatprep.subr.bf16.mxu0 0
    %2394 = vmatpush1.bf16.msra.mxu0 0
    %2395 = vmatprep.subr.bf16.mxu0 0
    %2396 = vmatpush1.bf16.msra.mxu0 0
    %2397 = vmatprep.subr.bf16.mxu0 0
    %2398 = vmatpush1.bf16.msra.mxu0 0
    %2399 = vmatprep.subr.bf16.mxu0 0
    %2400 = vmatpush1.bf16.msra.mxu0 0
    %2401 = vmatprep.subr.bf16.mxu0 0
    %2402 = vmatpush1.bf16.msra.mxu0 0
    %2403 = vmatprep.subr.bf16.mxu0 0
    %2404 = vmatpush1.bf16.msra.mxu0 0
    %2405 = vmatprep.subr.bf16.mxu0 0
    %2406 = vmatpush1.bf16.msra.mxu0 0
    %2407 = vmatprep.subr.bf16.mxu0 0
    %2408 = vmatpush1.bf16.msra.mxu0 0
    %2409 = vmatprep.mubr.bf16.mxu0 0
    %2410 = vmatmul.mubr.bf16.gmra.mrb[0].mxu0 %v2375
    %v2411 = vpop.f32.mrb[0].mxu0
    %v2412 = vadd.f32 %v2327, %v2411
    %v2413 = vpop.f32.mrb[0].mxu0
    %v2414 = vadd.f32 %v2331, %v2413
    %v2415 = vpop.f32.mrb[0].mxu0
    %v2416 = vpop.f32.mrb[0].mxu0
    %2417 = vdwg.mxu0
    %v2418 = vmul.f32 %v2412, %v1945
    %v2419 = vmul.f32 %v2412, %v1947
    %v2420 = vmul.f32 %v2412, %v1949
    %v2421 = vmul.f32 %v2412, %v1951
    %v2422 = vpack.c.bf16 %v2419, %v2418
    %v2423 = vpack.c.bf16 %v2421, %v2420
    %v2424 = vmul.f32 %v2414, %v630
    %v2425 = vmul.f32 %v2414, %v631
    %v2426 = vmul.f32 %v2414, %v632
    %v2427 = vmul.f32 %v2414, %v633
    %v2428 = vpack.c.bf16 %v2425, %v2424
    %v2429 = vpack.c.bf16 %v2427, %v2426
    %v2430 = vpack.c.bf16 %v2412, %v2412
    %2433 = vrot.lane.b32.xlu0 %v2422, 64
    %v2434 = vpop.permute.xlu0 %2433
    %2435 = vrot.lane.b32.xlu0 %v2423, 64
    %v2436 = vpop.permute.xlu0 %2435
    %v2438 = vsel %vm429, %v2430, 0
    %v2441 = vsel %vm429, %v2434, 0
    %v2444 = vsel %vm429, %v2436, 0
    %2446 = vmatprep.subr.bf16.mxu0 0
    %2447 = vmatpush1.bf16.xpose.msra.mxu0 %v2441
    %2448 = vmatprep.subr.bf16.mxu0 0
    %2449 = vmatpush1.bf16.xpose.msra.mxu0 %v2444
    %2450 = vmatprep.subr.bf16.mxu0 0
    %2451 = vmatpush1.bf16.xpose.msra.mxu0 0
    %2452 = vmatprep.subr.bf16.mxu0 0
    %2453 = vmatpush1.bf16.xpose.msra.mxu0 0
    %2454 = vmatprep.subr.bf16.mxu0 0
    %2455 = vmatpush1.bf16.xpose.msra.mxu0 0
    %2456 = vmatprep.subr.bf16.mxu0 0
    %2457 = vmatpush1.bf16.xpose.msra.mxu0 0
    %2458 = vmatprep.subr.bf16.mxu0 0
    %2459 = vmatpush1.bf16.xpose.msra.mxu0 0
    %2460 = vmatprep.subr.bf16.mxu0 0
    %2461 = vmatpush1.bf16.xpose.msra.mxu0 0
    %2462 = vmatprep.subr.bf16.mxu0 0
    %2463 = vmatpush1.bf16.xpose.msra.mxu0 0
    %2464 = vmatprep.subr.bf16.mxu0 0
    %2465 = vmatpush1.bf16.xpose.msra.mxu0 0
    %2466 = vmatprep.subr.bf16.mxu0 0
    %2467 = vmatpush1.bf16.xpose.msra.mxu0 0
    %2468 = vmatprep.subr.bf16.mxu0 0
    %2469 = vmatpush1.bf16.xpose.msra.mxu0 0
    %2470 = vmatprep.subr.bf16.mxu0 0
    %2471 = vmatpush1.bf16.xpose.msra.mxu0 0
    %2472 = vmatprep.subr.bf16.mxu0 0
    %2473 = vmatpush1.bf16.xpose.msra.mxu0 0
    %2474 = vmatprep.subr.bf16.mxu0 0
    %2475 = vmatpush1.bf16.xpose.msra.mxu0 0
    %2476 = vmatprep.subr.bf16.mxu0 0
    %2477 = vmatpush1.bf16.xpose.msra.mxu0 0
    %2478 = vmatprep.mubr.bf16.mxu0 0
    %2479 = vmatmul.mubr.bf16.gmra.mrb[0].mxu0 %v2438
    %v2480 = vpop.f32.mrb[0].mxu0
    %v2481 = vadd.f32 0.0, %v2480
    %v2482 = vpop.f32.mrb[0].mxu0
    %v2483 = vpop.f32.mrb[0].mxu0
    %v2484 = vpop.f32.mrb[0].mxu0
    %2485 = vdwg.mxu0
    %v2486 = vmul.f32 %v2481, 0.35355338
    %v2487 = vadd.f32 %v2486, %v634
    %v2488 = vmul.f32 %v2487, 1.442695
    %v2489 = vpow.pop %v2488
    %v2490 = vpack.c.bf16 %v2489, %v2489
    %v2492 = vsel %vm2041, %v2490, 0
    %2494 = vmatprep.subr.bf16.mxu0 0
    %2495 = vmatpush1.bf16.msra.mxu0 %v2037
    %2496 = vmatprep.subr.bf16.mxu0 0
    %2497 = vmatpush1.bf16.msra.mxu0 %v2038
    %2498 = vmatprep.subr.bf16.mxu0 0
    %2499 = vmatpush1.bf16.msra.mxu0 0
    %2500 = vmatprep.subr.bf16.mxu0 0
    %2501 = vmatpush1.bf16.msra.mxu0 0
    %2502 = vmatprep.subr.bf16.mxu0 0
    %2503 = vmatpush1.bf16.msra.mxu0 0
    %2504 = vmatprep.subr.bf16.mxu0 0
    %2505 = vmatpush1.bf16.msra.mxu0 0
    %2506 = vmatprep.subr.bf16.mxu0 0
    %2507 = vmatpush1.bf16.msra.mxu0 0
    %2508 = vmatprep.subr.bf16.mxu0 0
    %2509 = vmatpush1.bf16.msra.mxu0 0
    %2510 = vmatprep.subr.bf16.mxu0 0
    %2511 = vmatpush1.bf16.msra.mxu0 0
    %2512 = vmatprep.subr.bf16.mxu0 0
    %2513 = vmatpush1.bf16.msra.mxu0 0
    %2514 = vmatprep.subr.bf16.mxu0 0
    %2515 = vmatpush1.bf16.msra.mxu0 0
    %2516 = vmatprep.subr.bf16.mxu0 0
    %2517 = vmatpush1.bf16.msra.mxu0 0
    %2518 = vmatprep.subr.bf16.mxu0 0
    %2519 = vmatpush1.bf16.msra.mxu0 0
    %2520 = vmatprep.subr.bf16.mxu0 0
    %2521 = vmatpush1.bf16.msra.mxu0 0
    %2522 = vmatprep.subr.bf16.mxu0 0
    %2523 = vmatpush1.bf16.msra.mxu0 0
    %2524 = vmatprep.subr.bf16.mxu0 0
    %2525 = vmatpush1.bf16.msra.mxu0 0
    %2526 = vmatprep.mubr.bf16.mxu0 0
    %2527 = vmatmul.mubr.bf16.gmra.mrb[0].mxu0 %v2492
    %v2528 = vpop.f32.mrb[0].mxu0
    %v2529 = vadd.f32 0.0, %v2528
    %v2530 = vpop.f32.mrb[0].mxu0
    %v2531 = vpop.f32.mrb[0].mxu0
    %v2532 = vpop.f32.mrb[0].mxu0
    %2533 = vdwg.mxu0
    %v2534 = vrcp.pop %v2529
    %v2535 = vmul.f32 %v2489, %v2534
    %v2536 = vpack.c.bf16 %v2535, %v2535
    %v2538 = vsel %vm2041, %v2536, 0
    %2540 = vmatprep.subr.bf16.mxu0 0
    %2541 = vmatpush1.bf16.msra.mxu0 %v2428
    %2542 = vmatprep.subr.bf16.mxu0 0
    %2543 = vmatpush1.bf16.msra.mxu0 %v2429
    %2544 = vmatprep.subr.bf16.mxu0 0
    %2545 = vmatpush1.bf16.msra.mxu0 0
    %2546 = vmatprep.subr.bf16.mxu0 0
    %2547 = vmatpush1.bf16.msra.mxu0 0
    %2548 = vmatprep.subr.bf16.mxu0 0
    %2549 = vmatpush1.bf16.msra.mxu0 0
    %2550 = vmatprep.subr.bf16.mxu0 0
    %2551 = vmatpush1.bf16.msra.mxu0 0
    %2552 = vmatprep.subr.bf16.mxu0 0
    %2553 = vmatpush1.bf16.msra.mxu0 0
    %2554 = vmatprep.subr.bf16.mxu0 0
    %2555 = vmatpush1.bf16.msra.mxu0 0
    %2556 = vmatprep.subr.bf16.mxu0 0
    %2557 = vmatpush1.bf16.msra.mxu0 0
    %2558 = vmatprep.subr.bf16.mxu0 0
    %2559 = vmatpush1.bf16.msra.mxu0 0
    %2560 = vmatprep.subr.bf16.mxu0 0
    %2561 = vmatpush1.bf16.msra.mxu0 0
    %2562 = vmatprep.subr.bf16.mxu0 0
    %2563 = vmatpush1.bf16.msra.mxu0 0
    %2564 = vmatprep.subr.bf16.mxu0 0
    %2565 = vmatpush1.bf16.msra.mxu0 0
    %2566 = vmatprep.subr.bf16.mxu0 0
    %2567 = vmatpush1.bf16.msra.mxu0 0
    %2568 = vmatprep.subr.bf16.mxu0 0
    %2569 = vmatpush1.bf16.msra.mxu0 0
    %2570 = vmatprep.subr.bf16.mxu0 0
    %2571 = vmatpush1.bf16.msra.mxu0 0
    %2572 = vmatprep.mubr.bf16.mxu0 0
    %2573 = vmatmul.mubr.bf16.gmra.mrb[0].mxu0 %v2538
    %v2574 = vpop.f32.mrb[0].mxu0
    %v2575 = vadd.f32 0.0, %v2574
    %v2576 = vpop.f32.mrb[0].mxu0
    %v2577 = vpop.f32.mrb[0].mxu0
    %v2578 = vpop.f32.mrb[0].mxu0
    %2579 = vdwg.mxu0
    %v2580 = vpack.c.bf16 %v2575, %v2575
    %s2581 = scalar_lea.vmem %s19, 96
    %v2582 = vld [vmem:[%s2581] sm:$0xf]
    %v2583 = vld [vmem:[%s2581 + $0x4] sm:$0xf]
    %v2584 = vld [vmem:[%s2581 + $0x8] sm:$0xf]
    %v2585 = vld [vmem:[%s2581 + $0xc] sm:$0xf]
    %v2586 = vld [vmem:[%s2581 + $0x10] sm:$0xf]
    %v2587 = vld [vmem:[%s2581 + $0x14] sm:$0xf]
    %v2588 = vld [vmem:[%s2581 + $0x18] sm:$0xf]
    %v2589 = vld [vmem:[%s2581 + $0x1c] sm:$0xf]
    %s2590 = scalar_lea.vmem [#allocation10], 3
    %v2591 = vld [vmem:[%s2590] sm:$0x1]
    %v2593 = vlaneseq
    %v2594 = vshrl.u32 %v2593, 7
    %v2595 = vsub.s32 0, %v2594
    %v2596 = vrot.slane %v2591, %v2595
    %v2606 = vunpack.c.l.b16 %v2582
    %v2607 = vunpack.c.l.b16 %v2583
    %v2608 = vunpack.c.l.b16 %v2584
    %v2609 = vunpack.c.l.b16 %v2585
    %v2610 = vunpack.c.l.b16 %v2586
    %v2611 = vunpack.c.l.b16 %v2587
    %v2612 = vunpack.c.l.b16 %v2588
    %v2613 = vunpack.c.l.b16 %v2589
    %v2614 = vpack.c.b16 %v2607, %v2606
    %v2615 = vpack.c.b16 %v2609, %v2608
    %v2616 = vpack.c.b16 %v2611, %v2610
    %v2617 = vpack.c.b16 %v2613, %v2612
    %v2623 = vsel %vm429, %v2580, 0
    %2625 = vmatprep.subr.bf16.mxu0 0
    %2626 = vmatpush1.bf16.msra.mxu0 %v2614
    %2627 = vmatprep.subr.bf16.mxu0 0
    %2628 = vmatpush1.bf16.msra.mxu0 %v2615
    %2629 = vmatprep.subr.bf16.mxu0 0
    %2630 = vmatpush1.bf16.msra.mxu0 %v2616
    %2631 = vmatprep.subr.bf16.mxu0 0
    %2632 = vmatpush1.bf16.msra.mxu0 %v2617
    %2633 = vmatprep.subr.bf16.mxu0 0
    %2634 = vmatpush1.bf16.msra.mxu0 0
    %2635 = vmatprep.subr.bf16.mxu0 0
    %2636 = vmatpush1.bf16.msra.mxu0 0
    %2637 = vmatprep.subr.bf16.mxu0 0
    %2638 = vmatpush1.bf16.msra.mxu0 0
    %2639 = vmatprep.subr.bf16.mxu0 0
    %2640 = vmatpush1.bf16.msra.mxu0 0
    %2641 = vmatprep.subr.bf16.mxu0 0
    %2642 = vmatpush1.bf16.msra.mxu0 0
    %2643 = vmatprep.subr.bf16.mxu0 0
    %2644 = vmatpush1.bf16.msra.mxu0 0
    %2645 = vmatprep.subr.bf16.mxu0 0
    %2646 = vmatpush1.bf16.msra.mxu0 0
    %2647 = vmatprep.subr.bf16.mxu0 0
    %2648 = vmatpush1.bf16.msra.mxu0 0
    %2649 = vmatprep.subr.bf16.mxu0 0
    %2650 = vmatpush1.bf16.msra.mxu0 0
    %2651 = vmatprep.subr.bf16.mxu0 0
    %2652 = vmatpush1.bf16.msra.mxu0 0
    %2653 = vmatprep.subr.bf16.mxu0 0
    %2654 = vmatpush1.bf16.msra.mxu0 0
    %2655 = vmatprep.subr.bf16.mxu0 0
    %2656 = vmatpush1.bf16.msra.mxu0 0
    %2657 = vmatprep.mubr.bf16.mxu0 0
    %2658 = vmatmul.mubr.bf16.gmra.mrb[0].mxu0 %v2623
    %v2659 = vpop.f32.mrb[0].mxu0
    %v2660 = vadd.f32 %v2596, %v2659
    %v2661 = vpop.f32.mrb[0].mxu0
    %v2662 = vpop.f32.mrb[0].mxu0
    %v2663 = vpop.f32.mrb[0].mxu0
    %2664 = vdwg.mxu0
    %v2665 = vadd.f32 %v2216, %v2660
    %v2666 = vpack.c.bf16 %v2665, %v2665
    %v2669 = vunpack.c.l.b16 %v1692
    %v2670 = vunpack.c.l.b16 %v1693
    %v2671 = vpack.c.b16 %v2670, %v2669
    %vm2672 = vcmask 64512
    %v2674 = vsel %vm2672, %v2671, 0
    %vm2676 = vcmask 1043456
    %v2678 = vsel %vm2676, %v2666, 0
    %2680 = vmatprep.subr.bf16.mxu0 0
    %2681 = vmatpush1.bf16.msra.mxu0 %v2678
    %2682 = vmatprep.subr.bf16.mxu0 0
    %2683 = vmatpush1.bf16.msra.mxu0 0
    %2684 = vmatprep.subr.bf16.mxu0 0
    %2685 = vmatpush1.bf16.msra.mxu0 0
    %2686 = vmatprep.subr.bf16.mxu0 0
    %2687 = vmatpush1.bf16.msra.mxu0 0
    %2688 = vmatprep.subr.bf16.mxu0 0
    %2689 = vmatpush1.bf16.msra.mxu0 0
    %2690 = vmatprep.subr.bf16.mxu0 0
    %2691 = vmatpush1.bf16.msra.mxu0 0
    %2692 = vmatprep.subr.bf16.mxu0 0
    %2693 = vmatpush1.bf16.msra.mxu0 0
    %2694 = vmatprep.subr.bf16.mxu0 0
    %2695 = vmatpush1.bf16.msra.mxu0 0
    %2696 = vmatprep.subr.bf16.mxu0 0
    %2697 = vmatpush1.bf16.msra.mxu0 0
    %2698 = vmatprep.subr.bf16.mxu0 0
    %2699 = vmatpush1.bf16.msra.mxu0 0
    %2700 = vmatprep.subr.bf16.mxu0 0
    %2701 = vmatpush1.bf16.msra.mxu0 0
    %2702 = vmatprep.subr.bf16.mxu0 0
    %2703 = vmatpush1.bf16.msra.mxu0 0
    %2704 = vmatprep.subr.bf16.mxu0 0
    %2705 = vmatpush1.bf16.msra.mxu0 0
    %2706 = vmatprep.subr.bf16.mxu0 0
    %2707 = vmatpush1.bf16.msra.mxu0 0
    %2708 = vmatprep.subr.bf16.mxu0 0
    %2709 = vmatpush1.bf16.msra.mxu0 0
    %2710 = vmatprep.subr.bf16.mxu0 0
    %2711 = vmatpush1.bf16.msra.mxu0 0
    %2712 = vmatprep.mubr.bf16.mxu0 0
    %2713 = vmatmul.mubr.bf16.gmra.mrb[0].mxu0 %v2674
    %v2714 = vpop.f32.mrb[0].mxu0
    %v2715 = vadd.f32 0.0, %v2714
    %v2716 = vpop.f32.mrb[0].mxu0
    %v2717 = vpop.f32.mrb[0].mxu0
    %v2718 = vadd.f32 0.0, %v2717
    %v2719 = vpop.f32.mrb[0].mxu0
    %2720 = vdwg.mxu0
    %v2721 = vpack.c.bf16 %v2718, %v2715
    %v2722 = vld [vmem:[%s23] sm:$0xf]
    %v2723 = vld [vmem:[%s23 + $0x4] sm:$0xf]
    %v2724 = vld [vmem:[%s23 + $0x8] sm:$0xf]
    %v2725 = vld [vmem:[%s23 + $0xc] sm:$0xf]
    %v2726 = vld [vmem:[%s23 + $0x10] sm:$0xf]
    %v2727 = vld [vmem:[%s23 + $0x14] sm:$0xf]
    %v2728 = vld [vmem:[%s23 + $0x18] sm:$0xf]
    %v2729 = vld [vmem:[%s23 + $0x1c] sm:$0xf]
    %v2730 = vld [vmem:[#allocation12] sm:$0x1]
    %v2732 = vlaneseq
    %v2733 = vshrl.u32 %v2732, 7
    %v2734 = vsub.s32 0, %v2733
    %v2735 = vrot.slane %v2730, %v2734
    %v2745 = vunpack.c.l.b16 %v2722
    %v2746 = vunpack.c.l.b16 %v2723
    %v2747 = vunpack.c.l.b16 %v2724
    %v2748 = vunpack.c.l.b16 %v2725
    %v2749 = vunpack.c.l.b16 %v2726
    %v2750 = vunpack.c.l.b16 %v2727
    %v2751 = vunpack.c.l.b16 %v2728
    %v2752 = vunpack.c.l.b16 %v2729
    %v2753 = vpack.c.b16 %v2746, %v2745
    %v2754 = vpack.c.b16 %v2748, %v2747
    %v2755 = vpack.c.b16 %v2750, %v2749
    %v2756 = vpack.c.b16 %v2752, %v2751
    %v2762 = vsel %vm429, %v2721, 0
    %2764 = vmatprep.subr.bf16.mxu0 0
    %2765 = vmatpush1.bf16.msra.mxu0 %v2753
    %2766 = vmatprep.subr.bf16.mxu0 0
    %2767 = vmatpush1.bf16.msra.mxu0 %v2754
    %2768 = vmatprep.subr.bf16.mxu0 0
    %2769 = vmatpush1.bf16.msra.mxu0 %v2755
    %2770 = vmatprep.subr.bf16.mxu0 0
    %2771 = vmatpush1.bf16.msra.mxu0 %v2756
    %2772 = vmatprep.subr.bf16.mxu0 0
    %2773 = vmatpush1.bf16.msra.mxu0 0
    %2774 = vmatprep.subr.bf16.mxu0 0
    %2775 = vmatpush1.bf16.msra.mxu0 0
    %2776 = vmatprep.subr.bf16.mxu0 0
    %2777 = vmatpush1.bf16.msra.mxu0 0
    %2778 = vmatprep.subr.bf16.mxu0 0
    %2779 = vmatpush1.bf16.msra.mxu0 0
    %2780 = vmatprep.subr.bf16.mxu0 0
    %2781 = vmatpush1.bf16.msra.mxu0 0
    %2782 = vmatprep.subr.bf16.mxu0 0
    %2783 = vmatpush1.bf16.msra.mxu0 0
    %2784 = vmatprep.subr.bf16.mxu0 0
    %2785 = vmatpush1.bf16.msra.mxu0 0
    %2786 = vmatprep.subr.bf16.mxu0 0
    %2787 = vmatpush1.bf16.msra.mxu0 0
    %2788 = vmatprep.subr.bf16.mxu0 0
    %2789 = vmatpush1.bf16.msra.mxu0 0
    %2790 = vmatprep.subr.bf16.mxu0 0
    %2791 = vmatpush1.bf16.msra.mxu0 0
    %2792 = vmatprep.subr.bf16.mxu0 0
    %2793 = vmatpush1.bf16.msra.mxu0 0
    %2794 = vmatprep.subr.bf16.mxu0 0
    %2795 = vmatpush1.bf16.msra.mxu0 0
    %2796 = vmatprep.mubr.bf16.mxu0 0
    %2797 = vmatmul.mubr.bf16.gmra.mrb[0].mxu0 %v2762
    %v2798 = vpop.f32.mrb[0].mxu0
    %v2799 = vadd.f32 %v2735, %v2798
    %v2800 = vpop.f32.mrb[0].mxu0
    %v2801 = vpop.f32.mrb[0].mxu0
    %v2802 = vadd.f32 %v2735, %v2801
    %v2803 = vpop.f32.mrb[0].mxu0
    %2804 = vdwg.mxu0
    %v2805 = vadd.f32 %v1689, %v2799
    %v2806 = vadd.f32 %v1690, %v2802
    %v2807 = vpack.c.bf16 %v2806, %v2805
    %2808 = vmatprep.subr.bf16.mxu0 0
    %2809 = vmatpush1.bf16.msra.mxu0 %v2807
    %2810 = vmatprep.subr.bf16.mxu0 0
    %2811 = vmatpush1.bf16.msra.mxu0 0
    %2812 = vmatprep.subr.bf16.mxu0 0
    %2813 = vmatpush1.bf16.msra.mxu0 0
    %2814 = vmatprep.subr.bf16.mxu0 0
    %2815 = vmatpush1.bf16.msra.mxu0 0
    %2816 = vmatprep.subr.bf16.mxu0 0
    %2817 = vmatpush1.bf16.msra.mxu0 0
    %2818 = vmatprep.subr.bf16.mxu0 0
    %2819 = vmatpush1.bf16.msra.mxu0 0
    %2820 = vmatprep.subr.bf16.mxu0 0
    %2821 = vmatpush1.bf16.msra.mxu0 0
    %2822 = vmatprep.subr.bf16.mxu0 0
    %2823 = vmatpush1.bf16.msra.mxu0 0
    %2824 = vmatprep.subr.bf16.mxu0 0
    %2825 = vmatpush1.bf16.msra.mxu0 0
    %2826 = vmatprep.subr.bf16.mxu0 0
    %2827 = vmatpush1.bf16.msra.mxu0 0
    %2828 = vmatprep.subr.bf16.mxu0 0
    %2829 = vmatpush1.bf16.msra.mxu0 0
    %2830 = vmatprep.subr.bf16.mxu0 0
    %2831 = vmatpush1.bf16.msra.mxu0 0
    %2832 = vmatprep.subr.bf16.mxu0 0
    %2833 = vmatpush1.bf16.msra.mxu0 0
    %2834 = vmatprep.subr.bf16.mxu0 0
    %2835 = vmatpush1.bf16.msra.mxu0 0
    %2836 = vmatprep.subr.bf16.mxu0 0
    %2837 = vmatpush1.bf16.msra.mxu0 0
    %2838 = vmatprep.subr.bf16.mxu0 0
    %2839 = vmatpush1.bf16.msra.mxu0 0
    %2840 = vmatprep.mubr.bf16.mxu0 0
    %2841 = vmatmul.mubr.bf16.gmra.mrb[0].mxu0 %v1697
    %v2842 = vpop.f32.mrb[0].mxu0
    %v2843 = vadd.f32 0.0, %v2842
    %v2844 = vpop.f32.mrb[0].mxu0
    %v2845 = vpop.f32.mrb[0].mxu0
    %v2846 = vpop.f32.mrb[0].mxu0
    %2847 = vdwg.mxu0
    %v2848 = vpack.c.bf16 %v2843, %v2843
    %v2850 = vsel %vm429, %v2848, 0
    %2852 = vmatprep.subr.bf16.mxu0 0
    %2853 = vmatpush1.bf16.msra.mxu0 %v491
    %2854 = vmatprep.subr.bf16.mxu0 0
    %2855 = vmatpush1.bf16.msra.mxu0 %v492
    %2856 = vmatprep.subr.bf16.mxu0 0
    %2857 = vmatpush1.bf16.msra.mxu0 %v493
    %2858 = vmatprep.subr.bf16.mxu0 0
    %2859 = vmatpush1.bf16.msra.mxu0 %v494
    %2860 = vmatprep.subr.bf16.mxu0 0
    %2861 = vmatpush1.bf16.msra.mxu0 0
    %2862 = vmatprep.subr.bf16.mxu0 0
    %2863 = vmatpush1.bf16.msra.mxu0 0
    %2864 = vmatprep.subr.bf16.mxu0 0
    %2865 = vmatpush1.bf16.msra.mxu0 0
    %2866 = vmatprep.subr.bf16.mxu0 0
    %2867 = vmatpush1.bf16.msra.mxu0 0
    %2868 = vmatprep.subr.bf16.mxu0 0
    %2869 = vmatpush1.bf16.msra.mxu0 0
    %2870 = vmatprep.subr.bf16.mxu0 0
    %2871 = vmatpush1.bf16.msra.mxu0 0
    %2872 = vmatprep.subr.bf16.mxu0 0
    %2873 = vmatpush1.bf16.msra.mxu0 0
    %2874 = vmatprep.subr.bf16.mxu0 0
    %2875 = vmatpush1.bf16.msra.mxu0 0
    %2876 = vmatprep.subr.bf16.mxu0 0
    %2877 = vmatpush1.bf16.msra.mxu0 0
    %2878 = vmatprep.subr.bf16.mxu0 0
    %2879 = vmatpush1.bf16.msra.mxu0 0
    %2880 = vmatprep.subr.bf16.mxu0 0
    %2881 = vmatpush1.bf16.msra.mxu0 0
    %2882 = vmatprep.subr.bf16.mxu0 0
    %2883 = vmatpush1.bf16.msra.mxu0 0
    %2884 = vmatprep.mubr.bf16.mxu0 0
    %2885 = vmatmul.mubr.bf16.gmra.mrb[0].mxu0 %v2850
    %v2886 = vpop.f32.mrb[0].mxu0
    %v2887 = vadd.f32 0.0, %v2886
    %v2888 = vpop.f32.mrb[0].mxu0
    %v2889 = vpop.f32.mrb[0].mxu0
    %v2890 = vpop.f32.mrb[0].mxu0
    %2891 = vdwg.mxu0
    %v2892 = vsub.f32 %v2843, %v2887
    %v2893 = vmul.f32 %v2892, %v2892
    %v2894 = vpack.c.bf16 %v2893, %v2893
    %v2896 = vsel %vm429, %v2894, 0
    %2898 = vmatprep.subr.bf16.mxu0 0
    %2899 = vmatpush1.bf16.msra.mxu0 %v491
    %2900 = vmatprep.subr.bf16.mxu0 0
    %2901 = vmatpush1.bf16.msra.mxu0 %v492
    %2902 = vmatprep.subr.bf16.mxu0 0
    %2903 = vmatpush1.bf16.msra.mxu0 %v493
    %2904 = vmatprep.subr.bf16.mxu0 0
    %2905 = vmatpush1.bf16.msra.mxu0 %v494
    %2906 = vmatprep.subr.bf16.mxu0 0
    %2907 = vmatpush1.bf16.msra.mxu0 0
    %2908 = vmatprep.subr.bf16.mxu0 0
    %2909 = vmatpush1.bf16.msra.mxu0 0
    %2910 = vmatprep.subr.bf16.mxu0 0
    %2911 = vmatpush1.bf16.msra.mxu0 0
    %2912 = vmatprep.subr.bf16.mxu0 0
    %2913 = vmatpush1.bf16.msra.mxu0 0
    %2914 = vmatprep.subr.bf16.mxu0 0
    %2915 = vmatpush1.bf16.msra.mxu0 0
    %2916 = vmatprep.subr.bf16.mxu0 0
    %2917 = vmatpush1.bf16.msra.mxu0 0
    %2918 = vmatprep.subr.bf16.mxu0 0
    %2919 = vmatpush1.bf16.msra.mxu0 0
    %2920 = vmatprep.subr.bf16.mxu0 0
    %2921 = vmatpush1.bf16.msra.mxu0 0
    %2922 = vmatprep.subr.bf16.mxu0 0
    %2923 = vmatpush1.bf16.msra.mxu0 0
    %2924 = vmatprep.subr.bf16.mxu0 0
    %2925 = vmatpush1.bf16.msra.mxu0 0
    %2926 = vmatprep.subr.bf16.mxu0 0
    %2927 = vmatpush1.bf16.msra.mxu0 0
    %2928 = vmatprep.subr.bf16.mxu0 0
    %2929 = vmatpush1.bf16.msra.mxu0 0
    %2930 = vmatprep.mubr.bf16.mxu0 0
    %2931 = vmatmul.mubr.bf16.gmra.mrb[0].mxu0 %v2896
    %v2932 = vpop.f32.mrb[0].mxu0
    %v2933 = vadd.f32 1e-05, %v2932
    %v2934 = vpop.f32.mrb[0].mxu0
    %v2935 = vpop.f32.mrb[0].mxu0
    %v2936 = vpop.f32.mrb[0].mxu0
    %2937 = vdwg.mxu0
    %v2938 = vrsqrt.pop %v2933
    %v2939 = vmul.f32 %v2892, %v2938
    %v2940 = vmul.f32 %v2939, %v741
    %v2941 = vadd.f32 %v2940, %v749
    %v2942 = vpack.c.bf16 %v2941, %v2941
    %s2943 = scalar_lea.vmem [#allocation7], 256
    %v2944 = vld [vmem:[%s2943] sm:$0xff]
    %v2945 = vld [vmem:[%s2943 + $0x8] sm:$0xff]
    %v2946 = vld [vmem:[%s2943 + $0x10] sm:$0xff]
    %v2947 = vld [vmem:[%s2943 + $0x18] sm:$0xff]
    %v2948 = vld [vmem:[%s2943 + $0x20] sm:$0xff]
    %v2949 = vld [vmem:[%s2943 + $0x28] sm:$0xff]
    %v2950 = vld [vmem:[%s2943 + $0x30] sm:$0xff]
    %v2951 = vld [vmem:[%s2943 + $0x38] sm:$0xff]
    %s2952 = scalar_lea.vmem [#allocation9], 8
    %v2953 = vld [vmem:[%s2952] sm:$0x3]
    %v2955 = vlaneseq
    %v2956 = vshrl.u32 %v2955, 7
    %v2957 = vsub.s32 0, %v2956
    %v2958 = vrot.slane %v2953, %v2957
    %v2959 = vlaneseq
    %v2960 = vshrl.u32 %v2959, 7
    %v2961 = vsub.s32 1, %v2960
    %v2962 = vrot.slane %v2953, %v2961
    %v2973 = vunpack.c.l.b16 %v2944
    %v2974 = vunpack.c.h.b16 %v2944
    %v2975 = vunpack.c.l.b16 %v2945
    %v2976 = vunpack.c.h.b16 %v2945
    %v2977 = vunpack.c.l.b16 %v2946
    %v2978 = vunpack.c.h.b16 %v2946
    %v2979 = vunpack.c.l.b16 %v2947
    %v2980 = vunpack.c.h.b16 %v2947
    %v2981 = vunpack.c.l.b16 %v2948
    %v2982 = vunpack.c.h.b16 %v2948
    %v2983 = vunpack.c.l.b16 %v2949
    %v2984 = vunpack.c.h.b16 %v2949
    %v2985 = vunpack.c.l.b16 %v2950
    %v2986 = vunpack.c.h.b16 %v2950
    %v2987 = vunpack.c.l.b16 %v2951
    %v2988 = vunpack.c.h.b16 %v2951
    %v2989 = vpack.c.b16 %v2975, %v2973
    %v2990 = vpack.c.b16 %v2976, %v2974
    %v2991 = vpack.c.b16 %v2979, %v2977
    %v2992 = vpack.c.b16 %v2980, %v2978
    %v2993 = vpack.c.b16 %v2983, %v2981
    %v2994 = vpack.c.b16 %v2984, %v2982
    %v2995 = vpack.c.b16 %v2987, %v2985
    %v2996 = vpack.c.b16 %v2988, %v2986
    %v3006 = vsel %vm429, %v2942, 0
    %3008 = vmatprep.subr.bf16.mxu0 %v2990
    %3009 = vmatpush1.bf16.msra.mxu0 %v2989
    %3010 = vmatprep.subr.bf16.mxu0 %v2992
    %3011 = vmatpush1.bf16.msra.mxu0 %v2991
    %3012 = vmatprep.subr.bf16.mxu0 %v2994
    %3013 = vmatpush1.bf16.msra.mxu0 %v2993
    %3014 = vmatprep.subr.bf16.mxu0 %v2996
    %3015 = vmatpush1.bf16.msra.mxu0 %v2995
    %3016 = vmatprep.subr.bf16.mxu0 0
    %3017 = vmatpush1.bf16.msra.mxu0 0
    %3018 = vmatprep.subr.bf16.mxu0 0
    %3019 = vmatpush1.bf16.msra.mxu0 0
    %3020 = vmatprep.subr.bf16.mxu0 0
    %3021 = vmatpush1.bf16.msra.mxu0 0
    %3022 = vmatprep.subr.bf16.mxu0 0
    %3023 = vmatpush1.bf16.msra.mxu0 0
    %3024 = vmatprep.subr.bf16.mxu0 0
    %3025 = vmatpush1.bf16.msra.mxu0 0
    %3026 = vmatprep.subr.bf16.mxu0 0
    %3027 = vmatpush1.bf16.msra.mxu0 0
    %3028 = vmatprep.subr.bf16.mxu0 0
    %3029 = vmatpush1.bf16.msra.mxu0 0
    %3030 = vmatprep.subr.bf16.mxu0 0
    %3031 = vmatpush1.bf16.msra.mxu0 0
    %3032 = vmatprep.subr.bf16.mxu0 0
    %3033 = vmatpush1.bf16.msra.mxu0 0
    %3034 = vmatprep.subr.bf16.mxu0 0
    %3035 = vmatpush1.bf16.msra.mxu0 0
    %3036 = vmatprep.subr.bf16.mxu0 0
    %3037 = vmatpush1.bf16.msra.mxu0 0
    %3038 = vmatprep.subr.bf16.mxu0 0
    %3039 = vmatpush1.bf16.msra.mxu0 0
    %3040 = vmatprep.mubr.bf16.mxu0 0
    %3041 = vmatmul.mubr.bf16.gmra.mrb[0].mxu0 %v3006
    %v3042 = vpop.f32.mrb[0].mxu0
    %v3043 = vadd.f32 %v2958, %v3042
    %v3044 = vpop.f32.mrb[0].mxu0
    %v3045 = vadd.f32 %v2962, %v3044
    %v3046 = vpop.f32.mrb[0].mxu0
    %v3047 = vpop.f32.mrb[0].mxu0
    %3048 = vdwg.mxu0
    %v3049 = vmul.f32 %v3043, %v1945
    %v3050 = vmul.f32 %v3043, %v1947
    %v3051 = vmul.f32 %v3043, %v1949
    %v3052 = vmul.f32 %v3043, %v1951
    %v3053 = vpack.c.bf16 %v3050, %v3049
    %v3054 = vpack.c.bf16 %v3052, %v3051
    %v3055 = vmul.f32 %v3045, %v630
    %v3056 = vmul.f32 %v3045, %v631
    %v3057 = vmul.f32 %v3045, %v632
    %v3058 = vmul.f32 %v3045, %v633
    %v3059 = vpack.c.bf16 %v3056, %v3055
    %v3060 = vpack.c.bf16 %v3058, %v3057
    %v3061 = vpack.c.bf16 %v3043, %v3043
    %3064 = vrot.lane.b32.xlu0 %v3053, 64
    %v3065 = vpop.permute.xlu0 %3064
    %3066 = vrot.lane.b32.xlu0 %v3054, 64
    %v3067 = vpop.permute.xlu0 %3066
    %v3069 = vsel %vm429, %v3061, 0
    %v3072 = vsel %vm429, %v3065, 0
    %v3075 = vsel %vm429, %v3067, 0
    %3077 = vmatprep.subr.bf16.mxu0 0
    %3078 = vmatpush1.bf16.xpose.msra.mxu0 %v3072
    %3079 = vmatprep.subr.bf16.mxu0 0
    %3080 = vmatpush1.bf16.xpose.msra.mxu0 %v3075
    %3081 = vmatprep.subr.bf16.mxu0 0
    %3082 = vmatpush1.bf16.xpose.msra.mxu0 0
    %3083 = vmatprep.subr.bf16.mxu0 0
    %3084 = vmatpush1.bf16.xpose.msra.mxu0 0
    %3085 = vmatprep.subr.bf16.mxu0 0
    %3086 = vmatpush1.bf16.xpose.msra.mxu0 0
    %3087 = vmatprep.subr.bf16.mxu0 0
    %3088 = vmatpush1.bf16.xpose.msra.mxu0 0
    %3089 = vmatprep.subr.bf16.mxu0 0
    %3090 = vmatpush1.bf16.xpose.msra.mxu0 0
    %3091 = vmatprep.subr.bf16.mxu0 0
    %3092 = vmatpush1.bf16.xpose.msra.mxu0 0
    %3093 = vmatprep.subr.bf16.mxu0 0
    %3094 = vmatpush1.bf16.xpose.msra.mxu0 0
    %3095 = vmatprep.subr.bf16.mxu0 0
    %3096 = vmatpush1.bf16.xpose.msra.mxu0 0
    %3097 = vmatprep.subr.bf16.mxu0 0
    %3098 = vmatpush1.bf16.xpose.msra.mxu0 0
    %3099 = vmatprep.subr.bf16.mxu0 0
    %3100 = vmatpush1.bf16.xpose.msra.mxu0 0
    %3101 = vmatprep.subr.bf16.mxu0 0
    %3102 = vmatpush1.bf16.xpose.msra.mxu0 0
    %3103 = vmatprep.subr.bf16.mxu0 0
    %3104 = vmatpush1.bf16.xpose.msra.mxu0 0
    %3105 = vmatprep.subr.bf16.mxu0 0
    %3106 = vmatpush1.bf16.xpose.msra.mxu0 0
    %3107 = vmatprep.subr.bf16.mxu0 0
    %3108 = vmatpush1.bf16.xpose.msra.mxu0 0
    %3109 = vmatprep.mubr.bf16.mxu0 0
    %3110 = vmatmul.mubr.bf16.gmra.mrb[0].mxu0 %v3069
    %v3111 = vpop.f32.mrb[0].mxu0
    %v3112 = vadd.f32 0.0, %v3111
    %v3113 = vpop.f32.mrb[0].mxu0
    %v3114 = vpop.f32.mrb[0].mxu0
    %v3115 = vpop.f32.mrb[0].mxu0
    %3116 = vdwg.mxu0
    %v3117 = vmul.f32 %v3112, 0.35355338
    %v3118 = vadd.f32 %v3117, %v634
    %v3119 = vmul.f32 %v3118, 1.442695
    %v3120 = vpow.pop %v3119
    %v3121 = vpack.c.bf16 %v3120, %v3120
    %v3123 = vsel %vm2041, %v3121, 0
    %3125 = vmatprep.subr.bf16.mxu0 0
    %3126 = vmatpush1.bf16.msra.mxu0 %v2037
    %3127 = vmatprep.subr.bf16.mxu0 0
    %3128 = vmatpush1.bf16.msra.mxu0 %v2038
    %3129 = vmatprep.subr.bf16.mxu0 0
    %3130 = vmatpush1.bf16.msra.mxu0 0
    %3131 = vmatprep.subr.bf16.mxu0 0
    %3132 = vmatpush1.bf16.msra.mxu0 0
    %3133 = vmatprep.subr.bf16.mxu0 0
    %3134 = vmatpush1.bf16.msra.mxu0 0
    %3135 = vmatprep.subr.bf16.mxu0 0
    %3136 = vmatpush1.bf16.msra.mxu0 0
    %3137 = vmatprep.subr.bf16.mxu0 0
    %3138 = vmatpush1.bf16.msra.mxu0 0
    %3139 = vmatprep.subr.bf16.mxu0 0
    %3140 = vmatpush1.bf16.msra.mxu0 0
    %3141 = vmatprep.subr.bf16.mxu0 0
    %3142 = vmatpush1.bf16.msra.mxu0 0
    %3143 = vmatprep.subr.bf16.mxu0 0
    %3144 = vmatpush1.bf16.msra.mxu0 0
    %3145 = vmatprep.subr.bf16.mxu0 0
    %3146 = vmatpush1.bf16.msra.mxu0 0
    %3147 = vmatprep.subr.bf16.mxu0 0
    %3148 = vmatpush1.bf16.msra.mxu0 0
    %3149 = vmatprep.subr.bf16.mxu0 0
    %3150 = vmatpush1.bf16.msra.mxu0 0
    %3151 = vmatprep.subr.bf16.mxu0 0
    %3152 = vmatpush1.bf16.msra.mxu0 0
    %3153 = vmatprep.subr.bf16.mxu0 0
    %3154 = vmatpush1.bf16.msra.mxu0 0
    %3155 = vmatprep.subr.bf16.mxu0 0
    %3156 = vmatpush1.bf16.msra.mxu0 0
    %3157 = vmatprep.mubr.bf16.mxu0 0
    %3158 = vmatmul.mubr.bf16.gmra.mrb[0].mxu0 %v3123
    %v3159 = vpop.f32.mrb[0].mxu0
    %v3160 = vadd.f32 0.0, %v3159
    %v3161 = vpop.f32.mrb[0].mxu0
    %v3162 = vpop.f32.mrb[0].mxu0
    %v3163 = vpop.f32.mrb[0].mxu0
    %3164 = vdwg.mxu0
    %v3165 = vrcp.pop %v3160
    %v3166 = vmul.f32 %v3120, %v3165
    %v3167 = vpack.c.bf16 %v3166, %v3166
    %v3169 = vsel %vm2041, %v3167, 0
    %3171 = vmatprep.subr.bf16.mxu0 0
    %3172 = vmatpush1.bf16.msra.mxu0 %v3059
    %3173 = vmatprep.subr.bf16.mxu0 0
    %3174 = vmatpush1.bf16.msra.mxu0 %v3060
    %3175 = vmatprep.subr.bf16.mxu0 0
    %3176 = vmatpush1.bf16.msra.mxu0 0
    %3177 = vmatprep.subr.bf16.mxu0 0
    %3178 = vmatpush1.bf16.msra.mxu0 0
    %3179 = vmatprep.subr.bf16.mxu0 0
    %3180 = vmatpush1.bf16.msra.mxu0 0
    %3181 = vmatprep.subr.bf16.mxu0 0
    %3182 = vmatpush1.bf16.msra.mxu0 0
    %3183 = vmatprep.subr.bf16.mxu0 0
    %3184 = vmatpush1.bf16.msra.mxu0 0
    %3185 = vmatprep.subr.bf16.mxu0 0
    %3186 = vmatpush1.bf16.msra.mxu0 0
    %3187 = vmatprep.subr.bf16.mxu0 0
    %3188 = vmatpush1.bf16.msra.mxu0 0
    %3189 = vmatprep.subr.bf16.mxu0 0
    %3190 = vmatpush1.bf16.msra.mxu0 0
    %3191 = vmatprep.subr.bf16.mxu0 0
    %3192 = vmatpush1.bf16.msra.mxu0 0
    %3193 = vmatprep.subr.bf16.mxu0 0
    %3194 = vmatpush1.bf16.msra.mxu0 0
    %3195 = vmatprep.subr.bf16.mxu0 0
    %3196 = vmatpush1.bf16.msra.mxu0 0
    %3197 = vmatprep.subr.bf16.mxu0 0
    %3198 = vmatpush1.bf16.msra.mxu0 0
    %3199 = vmatprep.subr.bf16.mxu0 0
    %3200 = vmatpush1.bf16.msra.mxu0 0
    %3201 = vmatprep.subr.bf16.mxu0 0
    %3202 = vmatpush1.bf16.msra.mxu0 0
    %3203 = vmatprep.mubr.bf16.mxu0 0
    %3204 = vmatmul.mubr.bf16.gmra.mrb[0].mxu0 %v3169
    %v3205 = vpop.f32.mrb[0].mxu0
    %v3206 = vadd.f32 0.0, %v3205
    %v3207 = vpop.f32.mrb[0].mxu0
    %v3208 = vpop.f32.mrb[0].mxu0
    %v3209 = vpop.f32.mrb[0].mxu0
    %3210 = vdwg.mxu0
    %v3211 = vpack.c.bf16 %v3206, %v3206
    %s3212 = scalar_lea.vmem %s19, 128
    %v3213 = vld [vmem:[%s3212] sm:$0xf]
    %v3214 = vld [vmem:[%s3212 + $0x4] sm:$0xf]
    %v3215 = vld [vmem:[%s3212 + $0x8] sm:$0xf]
    %v3216 = vld [vmem:[%s3212 + $0xc] sm:$0xf]
    %v3217 = vld [vmem:[%s3212 + $0x10] sm:$0xf]
    %v3218 = vld [vmem:[%s3212 + $0x14] sm:$0xf]
    %v3219 = vld [vmem:[%s3212 + $0x18] sm:$0xf]
    %v3220 = vld [vmem:[%s3212 + $0x1c] sm:$0xf]
    %s3221 = scalar_lea.vmem [#allocation10], 4
    %v3222 = vld [vmem:[%s3221] sm:$0x1]
    %v3224 = vlaneseq
    %v3225 = vshrl.u32 %v3224, 7
    %v3226 = vsub.s32 0, %v3225
    %v3227 = vrot.slane %v3222, %v3226
    %v3237 = vunpack.c.l.b16 %v3213
    %v3238 = vunpack.c.l.b16 %v3214
    %v3239 = vunpack.c.l.b16 %v3215
    %v3240 = vunpack.c.l.b16 %v3216
    %v3241 = vunpack.c.l.b16 %v3217
    %v3242 = vunpack.c.l.b16 %v3218
    %v3243 = vunpack.c.l.b16 %v3219
    %v3244 = vunpack.c.l.b16 %v3220
    %v3245 = vpack.c.b16 %v3238, %v3237
    %v3246 = vpack.c.b16 %v3240, %v3239
    %v3247 = vpack.c.b16 %v3242, %v3241
    %v3248 = vpack.c.b16 %v3244, %v3243
    %v3254 = vsel %vm429, %v3211, 0
    %3256 = vmatprep.subr.bf16.mxu0 0
    %3257 = vmatpush1.bf16.msra.mxu0 %v3245
    %3258 = vmatprep.subr.bf16.mxu0 0
    %3259 = vmatpush1.bf16.msra.mxu0 %v3246
    %3260 = vmatprep.subr.bf16.mxu0 0
    %3261 = vmatpush1.bf16.msra.mxu0 %v3247
    %3262 = vmatprep.subr.bf16.mxu0 0
    %3263 = vmatpush1.bf16.msra.mxu0 %v3248
    %3264 = vmatprep.subr.bf16.mxu0 0
    %3265 = vmatpush1.bf16.msra.mxu0 0
    %3266 = vmatprep.subr.bf16.mxu0 0
    %3267 = vmatpush1.bf16.msra.mxu0 0
    %3268 = vmatprep.subr.bf16.mxu0 0
    %3269 = vmatpush1.bf16.msra.mxu0 0
    %3270 = vmatprep.subr.bf16.mxu0 0
    %3271 = vmatpush1.bf16.msra.mxu0 0
    %3272 = vmatprep.subr.bf16.mxu0 0
    %3273 = vmatpush1.bf16.msra.mxu0 0
    %3274 = vmatprep.subr.bf16.mxu0 0
    %3275 = vmatpush1.bf16.msra.mxu0 0
    %3276 = vmatprep.subr.bf16.mxu0 0
    %3277 = vmatpush1.bf16.msra.mxu0 0
    %3278 = vmatprep.subr.bf16.mxu0 0
    %3279 = vmatpush1.bf16.msra.mxu0 0
    %3280 = vmatprep.subr.bf16.mxu0 0
    %3281 = vmatpush1.bf16.msra.mxu0 0
    %3282 = vmatprep.subr.bf16.mxu0 0
    %3283 = vmatpush1.bf16.msra.mxu0 0
    %3284 = vmatprep.subr.bf16.mxu0 0
    %3285 = vmatpush1.bf16.msra.mxu0 0
    %3286 = vmatprep.subr.bf16.mxu0 0
    %3287 = vmatpush1.bf16.msra.mxu0 0
    %3288 = vmatprep.mubr.bf16.mxu0 0
    %3289 = vmatmul.mubr.bf16.gmra.mrb[0].mxu0 %v3254
    %v3290 = vpop.f32.mrb[0].mxu0
    %v3291 = vadd.f32 %v3227, %v3290
    %v3292 = vpop.f32.mrb[0].mxu0
    %v3293 = vpop.f32.mrb[0].mxu0
    %v3294 = vpop.f32.mrb[0].mxu0
    %3295 = vdwg.mxu0
    %v3296 = vadd.f32 %v2843, %v3291
    %v3297 = vpack.c.bf16 %v3296, %v3296
    %v3299 = vsel %vm2676, %v3297, 0
    %3301 = vmatprep.subr.bf16.mxu0 0
    %3302 = vmatpush1.bf16.msra.mxu0 %v3299
    %3303 = vmatprep.subr.bf16.mxu0 0
    %3304 = vmatpush1.bf16.msra.mxu0 0
    %3305 = vmatprep.subr.bf16.mxu0 0
    %3306 = vmatpush1.bf16.msra.mxu0 0
    %3307 = vmatprep.subr.bf16.mxu0 0
    %3308 = vmatpush1.bf16.msra.mxu0 0
    %3309 = vmatprep.subr.bf16.mxu0 0
    %3310 = vmatpush1.bf16.msra.mxu0 0
    %3311 = vmatprep.subr.bf16.mxu0 0
    %3312 = vmatpush1.bf16.msra.mxu0 0
    %3313 = vmatprep.subr.bf16.mxu0 0
    %3314 = vmatpush1.bf16.msra.mxu0 0
    %3315 = vmatprep.subr.bf16.mxu0 0
    %3316 = vmatpush1.bf16.msra.mxu0 0
    %3317 = vmatprep.subr.bf16.mxu0 0
    %3318 = vmatpush1.bf16.msra.mxu0 0
    %3319 = vmatprep.subr.bf16.mxu0 0
    %3320 = vmatpush1.bf16.msra.mxu0 0
    %3321 = vmatprep.subr.bf16.mxu0 0
    %3322 = vmatpush1.bf16.msra.mxu0 0
    %3323 = vmatprep.subr.bf16.mxu0 0
    %3324 = vmatpush1.bf16.msra.mxu0 0
    %3325 = vmatprep.subr.bf16.mxu0 0
    %3326 = vmatpush1.bf16.msra.mxu0 0
    %3327 = vmatprep.subr.bf16.mxu0 0
    %3328 = vmatpush1.bf16.msra.mxu0 0
    %3329 = vmatprep.subr.bf16.mxu0 0
    %3330 = vmatpush1.bf16.msra.mxu0 0
    %3331 = vmatprep.subr.bf16.mxu0 0
    %3332 = vmatpush1.bf16.msra.mxu0 0
    %3333 = vmatprep.mubr.bf16.mxu0 0
    %3334 = vmatmul.mubr.bf16.gmra.mrb[0].mxu0 %v2674
    %v3335 = vpop.f32.mrb[0].mxu0
    %v3336 = vadd.f32 0.0, %v3335
    %v3337 = vpop.f32.mrb[0].mxu0
    %v3338 = vpop.f32.mrb[0].mxu0
    %v3339 = vadd.f32 0.0, %v3338
    %v3340 = vpop.f32.mrb[0].mxu0
    %3341 = vdwg.mxu0
    %v3342 = vpack.c.bf16 %v3339, %v3336
    %s3343 = scalar_lea.vmem %s23, 32
    %v3344 = vld [vmem:[%s3343] sm:$0xf]
    %v3345 = vld [vmem:[%s3343 + $0x4] sm:$0xf]
    %v3346 = vld [vmem:[%s3343 + $0x8] sm:$0xf]
    %v3347 = vld [vmem:[%s3343 + $0xc] sm:$0xf]
    %v3348 = vld [vmem:[%s3343 + $0x10] sm:$0xf]
    %v3349 = vld [vmem:[%s3343 + $0x14] sm:$0xf]
    %v3350 = vld [vmem:[%s3343 + $0x18] sm:$0xf]
    %v3351 = vld [vmem:[%s3343 + $0x1c] sm:$0xf]
    %s3352 = scalar_lea.vmem [#allocation12], 1
    %v3353 = vld [vmem:[%s3352] sm:$0x1]
    %v3355 = vlaneseq
    %v3356 = vshrl.u32 %v3355, 7
    %v3357 = vsub.s32 0, %v3356
    %v3358 = vrot.slane %v3353, %v3357
    %v3368 = vunpack.c.l.b16 %v3344
    %v3369 = vunpack.c.l.b16 %v3345
    %v3370 = vunpack.c.l.b16 %v3346
    %v3371 = vunpack.c.l.b16 %v3347
    %v3372 = vunpack.c.l.b16 %v3348
    %v3373 = vunpack.c.l.b16 %v3349
    %v3374 = vunpack.c.l.b16 %v3350
    %v3375 = vunpack.c.l.b16 %v3351
    %v3376 = vpack.c.b16 %v3369, %v3368
    %v3377 = vpack.c.b16 %v3371, %v3370
    %v3378 = vpack.c.b16 %v3373, %v3372
    %v3379 = vpack.c.b16 %v3375, %v3374
    %v3385 = vsel %vm429, %v3342, 0
    %3387 = vmatprep.subr.bf16.mxu0 0
    %3388 = vmatpush1.bf16.msra.mxu0 %v3376
    %3389 = vmatprep.subr.bf16.mxu0 0
    %3390 = vmatpush1.bf16.msra.mxu0 %v3377
    %3391 = vmatprep.subr.bf16.mxu0 0
    %3392 = vmatpush1.bf16.msra.mxu0 %v3378
    %3393 = vmatprep.subr.bf16.mxu0 0
    %3394 = vmatpush1.bf16.msra.mxu0 %v3379
    %3395 = vmatprep.subr.bf16.mxu0 0
    %3396 = vmatpush1.bf16.msra.mxu0 0
    %3397 = vmatprep.subr.bf16.mxu0 0
    %3398 = vmatpush1.bf16.msra.mxu0 0
    %3399 = vmatprep.subr.bf16.mxu0 0
    %3400 = vmatpush1.bf16.msra.mxu0 0
    %3401 = vmatprep.subr.bf16.mxu0 0
    %3402 = vmatpush1.bf16.msra.mxu0 0
    %3403 = vmatprep.subr.bf16.mxu0 0
    %3404 = vmatpush1.bf16.msra.mxu0 0
    %3405 = vmatprep.subr.bf16.mxu0 0
    %3406 = vmatpush1.bf16.msra.mxu0 0
    %3407 = vmatprep.subr.bf16.mxu0 0
    %3408 = vmatpush1.bf16.msra.mxu0 0
    %3409 = vmatprep.subr.bf16.mxu0 0
    %3410 = vmatpush1.bf16.msra.mxu0 0
    %3411 = vmatprep.subr.bf16.mxu0 0
    %3412 = vmatpush1.bf16.msra.mxu0 0
    %3413 = vmatprep.subr.bf16.mxu0 0
    %3414 = vmatpush1.bf16.msra.mxu0 0
    %3415 = vmatprep.subr.bf16.mxu0 0
    %3416 = vmatpush1.bf16.msra.mxu0 0
    %3417 = vmatprep.subr.bf16.mxu0 0
    %3418 = vmatpush1.bf16.msra.mxu0 0
    %3419 = vmatprep.mubr.bf16.mxu0 0
    %3420 = vmatmul.mubr.bf16.gmra.mrb[0].mxu0 %v3385
    %v3421 = vpop.f32.mrb[0].mxu0
    %v3422 = vadd.f32 %v3358, %v3421
    %v3423 = vpop.f32.mrb[0].mxu0
    %v3424 = vpop.f32.mrb[0].mxu0
    %v3425 = vadd.f32 %v3358, %v3424
    %v3426 = vpop.f32.mrb[0].mxu0
    %3427 = vdwg.mxu0
    %v3428 = vadd.f32 %v2805, %v3422
    %v3429 = vadd.f32 %v2806, %v3425
    %v3430 = vpack.c.bf16 %v3429, %v3428
    %v3432 = vsel %vm429, %v3430, 0
    %3434 = vmatprep.subr.bf16.mxu0 0
    %3435 = vmatpush1.bf16.msra.mxu0 %v491
    %3436 = vmatprep.subr.bf16.mxu0 0
    %3437 = vmatpush1.bf16.msra.mxu0 %v492
    %3438 = vmatprep.subr.bf16.mxu0 0
    %3439 = vmatpush1.bf16.msra.mxu0 %v493
    %3440 = vmatprep.subr.bf16.mxu0 0
    %3441 = vmatpush1.bf16.msra.mxu0 %v494
    %3442 = vmatprep.subr.bf16.mxu0 0
    %3443 = vmatpush1.bf16.msra.mxu0 0
    %3444 = vmatprep.subr.bf16.mxu0 0
    %3445 = vmatpush1.bf16.msra.mxu0 0
    %3446 = vmatprep.subr.bf16.mxu0 0
    %3447 = vmatpush1.bf16.msra.mxu0 0
    %3448 = vmatprep.subr.bf16.mxu0 0
    %3449 = vmatpush1.bf16.msra.mxu0 0
    %3450 = vmatprep.subr.bf16.mxu0 0
    %3451 = vmatpush1.bf16.msra.mxu0 0
    %3452 = vmatprep.subr.bf16.mxu0 0
    %3453 = vmatpush1.bf16.msra.mxu0 0
    %3454 = vmatprep.subr.bf16.mxu0 0
    %3455 = vmatpush1.bf16.msra.mxu0 0
    %3456 = vmatprep.subr.bf16.mxu0 0
    %3457 = vmatpush1.bf16.msra.mxu0 0
    %3458 = vmatprep.subr.bf16.mxu0 0
    %3459 = vmatpush1.bf16.msra.mxu0 0
    %3460 = vmatprep.subr.bf16.mxu0 0
    %3461 = vmatpush1.bf16.msra.mxu0 0
    %3462 = vmatprep.subr.bf16.mxu0 0
    %3463 = vmatpush1.bf16.msra.mxu0 0
    %3464 = vmatprep.subr.bf16.mxu0 0
    %3465 = vmatpush1.bf16.msra.mxu0 0
    %3466 = vmatprep.mubr.bf16.mxu0 0
    %3467 = vmatmul.mubr.bf16.gmra.mrb[0].mxu0 %v3432
    %v3468 = vpop.f32.mrb[0].mxu0
    %v3469 = vadd.f32 0.0, %v3468
    %v3470 = vpop.f32.mrb[0].mxu0
    %v3471 = vpop.f32.mrb[0].mxu0
    %v3472 = vadd.f32 0.0, %v3471
    %v3473 = vpop.f32.mrb[0].mxu0
    %3474 = vdwg.mxu0
    %v3475 = vsub.f32 %v3428, %v3469
    %v3476 = vsub.f32 %v3429, %v3472
    %v3477 = vmul.f32 %v3475, %v3475
    %v3478 = vmul.f32 %v3476, %v3476
    %v3479 = vpack.c.bf16 %v3478, %v3477
    %v3481 = vsel %vm429, %v3479, 0
    %3483 = vmatprep.subr.bf16.mxu0 0
    %3484 = vmatpush1.bf16.msra.mxu0 %v491
    %3485 = vmatprep.subr.bf16.mxu0 0
    %3486 = vmatpush1.bf16.msra.mxu0 %v492
    %3487 = vmatprep.subr.bf16.mxu0 0
    %3488 = vmatpush1.bf16.msra.mxu0 %v493
    %3489 = vmatprep.subr.bf16.mxu0 0
    %3490 = vmatpush1.bf16.msra.mxu0 %v494
    %3491 = vmatprep.subr.bf16.mxu0 0
    %3492 = vmatpush1.bf16.msra.mxu0 0
    %3493 = vmatprep.subr.bf16.mxu0 0
    %3494 = vmatpush1.bf16.msra.mxu0 0
    %3495 = vmatprep.subr.bf16.mxu0 0
    %3496 = vmatpush1.bf16.msra.mxu0 0
    %3497 = vmatprep.subr.bf16.mxu0 0
    %3498 = vmatpush1.bf16.msra.mxu0 0
    %3499 = vmatprep.subr.bf16.mxu0 0
    %3500 = vmatpush1.bf16.msra.mxu0 0
    %3501 = vmatprep.subr.bf16.mxu0 0
    %3502 = vmatpush1.bf16.msra.mxu0 0
    %3503 = vmatprep.subr.bf16.mxu0 0
    %3504 = vmatpush1.bf16.msra.mxu0 0
    %3505 = vmatprep.subr.bf16.mxu0 0
    %3506 = vmatpush1.bf16.msra.mxu0 0
    %3507 = vmatprep.subr.bf16.mxu0 0
    %3508 = vmatpush1.bf16.msra.mxu0 0
    %3509 = vmatprep.subr.bf16.mxu0 0
    %3510 = vmatpush1.bf16.msra.mxu0 0
    %3511 = vmatprep.subr.bf16.mxu0 0
    %3512 = vmatpush1.bf16.msra.mxu0 0
    %3513 = vmatprep.subr.bf16.mxu0 0
    %3514 = vmatpush1.bf16.msra.mxu0 0
    %3515 = vmatprep.mubr.bf16.mxu0 0
    %3516 = vmatmul.mubr.bf16.gmra.mrb[0].mxu0 %v3481
    %v3517 = vpop.f32.mrb[0].mxu0
    %v3518 = vadd.f32 1e-05, %v3517
    %v3519 = vpop.f32.mrb[0].mxu0
    %v3520 = vpop.f32.mrb[0].mxu0
    %v3521 = vadd.f32 1e-05, %v3520
    %v3522 = vpop.f32.mrb[0].mxu0
    %3523 = vdwg.mxu0
    %v3524 = vrsqrt.pop %v3518
    %v3525 = vrsqrt.pop %v3521
    %v3526 = vmul.f32 %v3475, %v3524
    %v3527 = vmul.f32 %v3476, %v3525
    %v3528 = vmul.f32 %v3526, %v741
    %v3529 = vmul.f32 %v3527, %v741
    %v3530 = vadd.f32 %v3528, %v749
    %v3531 = vadd.f32 %v3529, %v749
    %v3532 = vpack.c.bf16 %v3531, %v3530
    %v3533 = vld [vmem:[%s45] sm:$0xf]
    %v3534 = vld [vmem:[%s45 + $0x4] sm:$0xf]
    %v3535 = vld [vmem:[%s45 + $0x8] sm:$0xf]
    %v3536 = vld [vmem:[%s45 + $0xc] sm:$0xf]
    %v3537 = vld [vmem:[%s45 + $0x10] sm:$0xf]
    %v3538 = vld [vmem:[%s45 + $0x14] sm:$0xf]
    %v3539 = vld [vmem:[%s45 + $0x18] sm:$0xf]
    %v3540 = vld [vmem:[%s45 + $0x1c] sm:$0xf]
    %v3549 = vunpack.c.l.b16 %v3533
    %v3550 = vunpack.c.l.b16 %v3534
    %v3551 = vunpack.c.l.b16 %v3535
    %v3552 = vunpack.c.l.b16 %v3536
    %v3553 = vunpack.c.l.b16 %v3537
    %v3554 = vunpack.c.l.b16 %v3538
    %v3555 = vunpack.c.l.b16 %v3539
    %v3556 = vunpack.c.l.b16 %v3540
    %v3557 = vpack.c.b16 %v3550, %v3549
    %v3558 = vpack.c.b16 %v3552, %v3551
    %v3559 = vpack.c.b16 %v3554, %v3553
    %v3560 = vpack.c.b16 %v3556, %v3555
    %v3566 = vsel %vm429, %v3532, 0
    %3568 = vmatprep.subr.bf16.mxu0 0
    %3569 = vmatpush1.bf16.msra.mxu0 %v3557
    %3570 = vmatprep.subr.bf16.mxu0 0
    %3571 = vmatpush1.bf16.msra.mxu0 %v3558
    %3572 = vmatprep.subr.bf16.mxu0 0
    %3573 = vmatpush1.bf16.msra.mxu0 %v3559
    %3574 = vmatprep.subr.bf16.mxu0 0
    %3575 = vmatpush1.bf16.msra.mxu0 %v3560
    %3576 = vmatprep.subr.bf16.mxu0 0
    %3577 = vmatpush1.bf16.msra.mxu0 0
    %3578 = vmatprep.subr.bf16.mxu0 0
    %3579 = vmatpush1.bf16.msra.mxu0 0
    %3580 = vmatprep.subr.bf16.mxu0 0
    %3581 = vmatpush1.bf16.msra.mxu0 0
    %3582 = vmatprep.subr.bf16.mxu0 0
    %3583 = vmatpush1.bf16.msra.mxu0 0
    %3584 = vmatprep.subr.bf16.mxu0 0
    %3585 = vmatpush1.bf16.msra.mxu0 0
    %3586 = vmatprep.subr.bf16.mxu0 0
    %3587 = vmatpush1.bf16.msra.mxu0 0
    %3588 = vmatprep.subr.bf16.mxu0 0
    %3589 = vmatpush1.bf16.msra.mxu0 0
    %3590 = vmatprep.subr.bf16.mxu0 0
    %3591 = vmatpush1.bf16.msra.mxu0 0
    %3592 = vmatprep.subr.bf16.mxu0 0
    %3593 = vmatpush1.bf16.msra.mxu0 0
    %3594 = vmatprep.subr.bf16.mxu0 0
    %3595 = vmatpush1.bf16.msra.mxu0 0
    %3596 = vmatprep.subr.bf16.mxu0 0
    %3597 = vmatpush1.bf16.msra.mxu0 0
    %3598 = vmatprep.subr.bf16.mxu0 0
    %3599 = vmatpush1.bf16.msra.mxu0 0
    %3600 = vmatprep.mubr.bf16.mxu0 0
    %3601 = vmatmul.mubr.bf16.gmra.mrb[0].mxu0 %v3566
    %v3602 = vpop.f32.mrb[0].mxu0
    %v3603 = vadd.f32 0.0, %v3602
    %v3604 = vpop.f32.mrb[0].mxu0
    %v3605 = vpop.f32.mrb[0].mxu0
    %v3606 = vadd.f32 0.0, %v3605
    %v3607 = vpop.f32.mrb[0].mxu0
    %3608 = vdwg.mxu0
    %v3609 = vmul.f32 %v3530, %v3530
    %v3610 = vmul.f32 %v3531, %v3531
    %v3611 = vpack.c.bf16 %v3610, %v3609
    %v3612 = vld [vmem:[%s49] sm:$0xf]
    %v3613 = vld [vmem:[%s49 + $0x4] sm:$0xf]
    %v3614 = vld [vmem:[%s49 + $0x8] sm:$0xf]
    %v3615 = vld [vmem:[%s49 + $0xc] sm:$0xf]
    %v3616 = vld [vmem:[%s49 + $0x10] sm:$0xf]
    %v3617 = vld [vmem:[%s49 + $0x14] sm:$0xf]
    %v3618 = vld [vmem:[%s49 + $0x18] sm:$0xf]
    %v3619 = vld [vmem:[%s49 + $0x1c] sm:$0xf]
    %v3628 = vunpack.c.l.b16 %v3612
    %v3629 = vunpack.c.l.b16 %v3613
    %v3630 = vunpack.c.l.b16 %v3614
    %v3631 = vunpack.c.l.b16 %v3615
    %v3632 = vunpack.c.l.b16 %v3616
    %v3633 = vunpack.c.l.b16 %v3617
    %v3634 = vunpack.c.l.b16 %v3618
    %v3635 = vunpack.c.l.b16 %v3619
    %v3636 = vpack.c.b16 %v3629, %v3628
    %v3637 = vpack.c.b16 %v3631, %v3630
    %v3638 = vpack.c.b16 %v3633, %v3632
    %v3639 = vpack.c.b16 %v3635, %v3634
    %v3645 = vsel %vm429, %v3611, 0
    %3647 = vmatprep.subr.bf16.mxu0 0
    %3648 = vmatpush1.bf16.msra.mxu0 %v3636
    %3649 = vmatprep.subr.bf16.mxu0 0
    %3650 = vmatpush1.bf16.msra.mxu0 %v3637
    %3651 = vmatprep.subr.bf16.mxu0 0
    %3652 = vmatpush1.bf16.msra.mxu0 %v3638
    %3653 = vmatprep.subr.bf16.mxu0 0
    %3654 = vmatpush1.bf16.msra.mxu0 %v3639
    %3655 = vmatprep.subr.bf16.mxu0 0
    %3656 = vmatpush1.bf16.msra.mxu0 0
    %3657 = vmatprep.subr.bf16.mxu0 0
    %3658 = vmatpush1.bf16.msra.mxu0 0
    %3659 = vmatprep.subr.bf16.mxu0 0
    %3660 = vmatpush1.bf16.msra.mxu0 0
    %3661 = vmatprep.subr.bf16.mxu0 0
    %3662 = vmatpush1.bf16.msra.mxu0 0
    %3663 = vmatprep.subr.bf16.mxu0 0
    %3664 = vmatpush1.bf16.msra.mxu0 0
    %3665 = vmatprep.subr.bf16.mxu0 0
    %3666 = vmatpush1.bf16.msra.mxu0 0
    %3667 = vmatprep.subr.bf16.mxu0 0
    %3668 = vmatpush1.bf16.msra.mxu0 0
    %3669 = vmatprep.subr.bf16.mxu0 0
    %3670 = vmatpush1.bf16.msra.mxu0 0
    %3671 = vmatprep.subr.bf16.mxu0 0
    %3672 = vmatpush1.bf16.msra.mxu0 0
    %3673 = vmatprep.subr.bf16.mxu0 0
    %3674 = vmatpush1.bf16.msra.mxu0 0
    %3675 = vmatprep.subr.bf16.mxu0 0
    %3676 = vmatpush1.bf16.msra.mxu0 0
    %3677 = vmatprep.subr.bf16.mxu0 0
    %3678 = vmatpush1.bf16.msra.mxu0 0
    %3679 = vmatprep.mubr.bf16.mxu0 0
    %3680 = vmatmul.mubr.bf16.gmra.mrb[0].mxu0 %v3645
    %v3681 = vpop.f32.mrb[0].mxu0
    %v3682 = vadd.f32 1e-08, %v3681
    %v3683 = vpop.f32.mrb[0].mxu0
    %v3684 = vpop.f32.mrb[0].mxu0
    %v3685 = vadd.f32 1e-08, %v3684
    %v3686 = vpop.f32.mrb[0].mxu0
    %3687 = vdwg.mxu0
    %v3688 = vrsqrt.pop %v3682
    %v3689 = vrsqrt.pop %v3685
    %v3690 = vmul.f32 %v3603, %v3688
    %v3691 = vmul.f32 %v3606, %v3689
    %v3692 = vsel %vm2041, %v3690, -inf
    %3693 = vmax.xlane.f32.xlu0 %v3692
    %v3694 = vpop.xlane.xlu0 %3693
    %v3695 = vsel %vm2041, %v3691, -inf
    %3696 = vmax.xlane.f32.xlu0 %v3695
    %v3697 = vpop.xlane.xlu0 %3696
    %v3698 = vsub.f32 %v3690, %v3694
    %v3699 = vsub.f32 %v3691, %v3697
    %v3700 = vmul.f32 %v3698, 1.442695
    %v3701 = vpow.pop %v3700
    %v3702 = vmul.f32 %v3699, 1.442695
    %v3703 = vpow.pop %v3702
    %v3704 = vsel %vm2041, %v3701, 0.0
    %3705 = vadd.xlane.f32.xlu0 %v3704
    %v3706 = vpop.xlane.xlu0 %3705
    %v3707 = vsel %vm2041, %v3703, 0.0
    %3708 = vadd.xlane.f32.xlu0 %v3707
    %v3709 = vpop.xlane.xlu0 %3708
    %v3710 = vrcp.pop %v3706
    %v3711 = vrcp.pop %v3709
    %v3712 = vmul.f32 %v3701, %v3710
    %v3713 = vmul.f32 %v3703, %v3711
    %v3714 = vpack.c.bf16 %v3713, %v3712
    %v3715 = vld [vmem:[#allocation25] sm:$0xf]
    %v3716 = vld [vmem:[#allocation25 + $0x4] sm:$0xf]
    %v3717 = vld [vmem:[#allocation25 + $0x8] sm:$0xf]
    %v3718 = vld [vmem:[#allocation25 + $0xc] sm:$0xf]
    %v3723 = vunpack.c.l.b16 %v3715
    %v3724 = vunpack.c.l.b16 %v3716
    %v3725 = vunpack.c.l.b16 %v3717
    %v3726 = vunpack.c.l.b16 %v3718
    %v3727 = vpack.c.b16 %v3724, %v3723
    %v3728 = vpack.c.b16 %v3726, %v3725
    %v3732 = vsel %vm2041, %v3714, 0
    %3734 = vmatprep.subr.bf16.mxu0 0
    %3735 = vmatpush1.bf16.msra.mxu0 %v3727
    %3736 = vmatprep.subr.bf16.mxu0 0
    %3737 = vmatpush1.bf16.msra.mxu0 %v3728
    %3738 = vmatprep.subr.bf16.mxu0 0
    %3739 = vmatpush1.bf16.msra.mxu0 0
    %3740 = vmatprep.subr.bf16.mxu0 0
    %3741 = vmatpush1.bf16.msra.mxu0 0
    %3742 = vmatprep.subr.bf16.mxu0 0
    %3743 = vmatpush1.bf16.msra.mxu0 0
    %3744 = vmatprep.subr.bf16.mxu0 0
    %3745 = vmatpush1.bf16.msra.mxu0 0
    %3746 = vmatprep.subr.bf16.mxu0 0
    %3747 = vmatpush1.bf16.msra.mxu0 0
    %3748 = vmatprep.subr.bf16.mxu0 0
    %3749 = vmatpush1.bf16.msra.mxu0 0
    %3750 = vmatprep.subr.bf16.mxu0 0
    %3751 = vmatpush1.bf16.msra.mxu0 0
    %3752 = vmatprep.subr.bf16.mxu0 0
    %3753 = vmatpush1.bf16.msra.mxu0 0
    %3754 = vmatprep.subr.bf16.mxu0 0
    %3755 = vmatpush1.bf16.msra.mxu0 0
    %3756 = vmatprep.subr.bf16.mxu0 0
    %3757 = vmatpush1.bf16.msra.mxu0 0
    %3758 = vmatprep.subr.bf16.mxu0 0
    %3759 = vmatpush1.bf16.msra.mxu0 0
    %3760 = vmatprep.subr.bf16.mxu0 0
    %3761 = vmatpush1.bf16.msra.mxu0 0
    %3762 = vmatprep.subr.bf16.mxu0 0
    %3763 = vmatpush1.bf16.msra.mxu0 0
    %3764 = vmatprep.subr.bf16.mxu0 0
    %3765 = vmatpush1.bf16.msra.mxu0 0
    %3766 = vmatprep.mubr.bf16.mxu0 0
    %3767 = vmatmul.mubr.bf16.gmra.mrb[0].mxu0 %v3732
    %v3768 = vpop.f32.mrb[0].mxu0
    %v3769 = vadd.f32 0.0, %v3768
    %v3770 = vpop.f32.mrb[0].mxu0
    %v3771 = vpop.f32.mrb[0].mxu0
    %v3772 = vadd.f32 0.0, %v3771
    %v3773 = vpop.f32.mrb[0].mxu0
    %3774 = vdwg.mxu0
    %v3775 = vpack.c.bf16 %v3772, %v3769
    %v3776 = vld [vmem:[%s51] sm:$0xf]
    %v3777 = vld [vmem:[%s51 + $0x4] sm:$0xf]
    %v3778 = vld [vmem:[%s51 + $0x8] sm:$0xf]
    %v3779 = vld [vmem:[%s51 + $0xc] sm:$0xf]
    %v3780 = vld [vmem:[%s51 + $0x10] sm:$0xf]
    %v3781 = vld [vmem:[%s51 + $0x14] sm:$0xf]
    %v3782 = vld [vmem:[%s51 + $0x18] sm:$0xf]
    %v3783 = vld [vmem:[%s51 + $0x1c] sm:$0xf]
    %v3784 = vld [vmem:[#allocation27] sm:$0x1]
    %v3786 = vlaneseq
    %v3787 = vshrl.u32 %v3786, 7
    %v3788 = vsub.s32 0, %v3787
    %v3789 = vrot.slane %v3784, %v3788
    %v3799 = vunpack.c.l.b16 %v3776
    %v3800 = vunpack.c.l.b16 %v3777
    %v3801 = vunpack.c.l.b16 %v3778
    %v3802 = vunpack.c.l.b16 %v3779
    %v3803 = vunpack.c.l.b16 %v3780
    %v3804 = vunpack.c.l.b16 %v3781
    %v3805 = vunpack.c.l.b16 %v3782
    %v3806 = vunpack.c.l.b16 %v3783
    %v3807 = vpack.c.b16 %v3800, %v3799
    %v3808 = vpack.c.b16 %v3802, %v3801
    %v3809 = vpack.c.b16 %v3804, %v3803
    %v3810 = vpack.c.b16 %v3806, %v3805
    %v3816 = vsel %vm429, %v3775, 0
    %3818 = vmatprep.subr.bf16.mxu0 0
    %3819 = vmatpush1.bf16.msra.mxu0 %v3807
    %3820 = vmatprep.subr.bf16.mxu0 0
    %3821 = vmatpush1.bf16.msra.mxu0 %v3808
    %3822 = vmatprep.subr.bf16.mxu0 0
    %3823 = vmatpush1.bf16.msra.mxu0 %v3809
    %3824 = vmatprep.subr.bf16.mxu0 0
    %3825 = vmatpush1.bf16.msra.mxu0 %v3810
    %3826 = vmatprep.subr.bf16.mxu0 0
    %3827 = vmatpush1.bf16.msra.mxu0 0
    %3828 = vmatprep.subr.bf16.mxu0 0
    %3829 = vmatpush1.bf16.msra.mxu0 0
    %3830 = vmatprep.subr.bf16.mxu0 0
    %3831 = vmatpush1.bf16.msra.mxu0 0
    %3832 = vmatprep.subr.bf16.mxu0 0
    %3833 = vmatpush1.bf16.msra.mxu0 0
    %3834 = vmatprep.subr.bf16.mxu0 0
    %3835 = vmatpush1.bf16.msra.mxu0 0
    %3836 = vmatprep.subr.bf16.mxu0 0
    %3837 = vmatpush1.bf16.msra.mxu0 0
    %3838 = vmatprep.subr.bf16.mxu0 0
    %3839 = vmatpush1.bf16.msra.mxu0 0
    %3840 = vmatprep.subr.bf16.mxu0 0
    %3841 = vmatpush1.bf16.msra.mxu0 0
    %3842 = vmatprep.subr.bf16.mxu0 0
    %3843 = vmatpush1.bf16.msra.mxu0 0
    %3844 = vmatprep.subr.bf16.mxu0 0
    %3845 = vmatpush1.bf16.msra.mxu0 0
    %3846 = vmatprep.subr.bf16.mxu0 0
    %3847 = vmatpush1.bf16.msra.mxu0 0
    %3848 = vmatprep.subr.bf16.mxu0 0
    %3849 = vmatpush1.bf16.msra.mxu0 0
    %3850 = vmatprep.mubr.bf16.mxu0 0
    %3851 = vmatmul.mubr.bf16.gmra.mrb[0].mxu0 %v3816
    %v3852 = vpop.f32.mrb[0].mxu0
    %v3853 = vadd.f32 %v3789, %v3852
    %v3854 = vpop.f32.mrb[0].mxu0
    %v3855 = vpop.f32.mrb[0].mxu0
    %v3856 = vadd.f32 %v3789, %v3855
    %v3857 = vpop.f32.mrb[0].mxu0
    %3858 = vdwg.mxu0
    %v3859 = vadd.f32 %v3530, %v3853
    %v3860 = vadd.f32 %v3531, %v3856
    %v3861 = vpack.c.bf16 %v3860, %v3859
    %v3863 = vsel %vm429, %v3861, 0
    %3865 = vmatprep.subr.bf16.mxu0 0
    %3866 = vmatpush1.bf16.msra.mxu0 %v491
    %3867 = vmatprep.subr.bf16.mxu0 0
    %3868 = vmatpush1.bf16.msra.mxu0 %v492
    %3869 = vmatprep.subr.bf16.mxu0 0
    %3870 = vmatpush1.bf16.msra.mxu0 %v493
    %3871 = vmatprep.subr.bf16.mxu0 0
    %3872 = vmatpush1.bf16.msra.mxu0 %v494
    %3873 = vmatprep.subr.bf16.mxu0 0
    %3874 = vmatpush1.bf16.msra.mxu0 0
    %3875 = vmatprep.subr.bf16.mxu0 0
    %3876 = vmatpush1.bf16.msra.mxu0 0
    %3877 = vmatprep.subr.bf16.mxu0 0
    %3878 = vmatpush1.bf16.msra.mxu0 0
    %3879 = vmatprep.subr.bf16.mxu0 0
    %3880 = vmatpush1.bf16.msra.mxu0 0
    %3881 = vmatprep.subr.bf16.mxu0 0
    %3882 = vmatpush1.bf16.msra.mxu0 0
    %3883 = vmatprep.subr.bf16.mxu0 0
    %3884 = vmatpush1.bf16.msra.mxu0 0
    %3885 = vmatprep.subr.bf16.mxu0 0
    %3886 = vmatpush1.bf16.msra.mxu0 0
    %3887 = vmatprep.subr.bf16.mxu0 0
    %3888 = vmatpush1.bf16.msra.mxu0 0
    %3889 = vmatprep.subr.bf16.mxu0 0
    %3890 = vmatpush1.bf16.msra.mxu0 0
    %3891 = vmatprep.subr.bf16.mxu0 0
    %3892 = vmatpush1.bf16.msra.mxu0 0
    %3893 = vmatprep.subr.bf16.mxu0 0
    %3894 = vmatpush1.bf16.msra.mxu0 0
    %3895 = vmatprep.subr.bf16.mxu0 0
    %3896 = vmatpush1.bf16.msra.mxu0 0
    %3897 = vmatprep.mubr.bf16.mxu0 0
    %3898 = vmatmul.mubr.bf16.gmra.mrb[0].mxu0 %v3863
    %v3899 = vpop.f32.mrb[0].mxu0
    %v3900 = vadd.f32 0.0, %v3899
    %v3901 = vpop.f32.mrb[0].mxu0
    %v3902 = vpop.f32.mrb[0].mxu0
    %v3903 = vadd.f32 0.0, %v3902
    %v3904 = vpop.f32.mrb[0].mxu0
    %3905 = vdwg.mxu0
    %v3906 = vsub.f32 %v3859, %v3900
    %v3907 = vsub.f32 %v3860, %v3903
    %v3908 = vmul.f32 %v3906, %v3906
    %v3909 = vmul.f32 %v3907, %v3907
    %v3910 = vpack.c.bf16 %v3909, %v3908
    %v3912 = vsel %vm429, %v3910, 0
    %3914 = vmatprep.subr.bf16.mxu0 0
    %3915 = vmatpush1.bf16.msra.mxu0 %v491
    %3916 = vmatprep.subr.bf16.mxu0 0
    %3917 = vmatpush1.bf16.msra.mxu0 %v492
    %3918 = vmatprep.subr.bf16.mxu0 0
    %3919 = vmatpush1.bf16.msra.mxu0 %v493
    %3920 = vmatprep.subr.bf16.mxu0 0
    %3921 = vmatpush1.bf16.msra.mxu0 %v494
    %3922 = vmatprep.subr.bf16.mxu0 0
    %3923 = vmatpush1.bf16.msra.mxu0 0
    %3924 = vmatprep.subr.bf16.mxu0 0
    %3925 = vmatpush1.bf16.msra.mxu0 0
    %3926 = vmatprep.subr.bf16.mxu0 0
    %3927 = vmatpush1.bf16.msra.mxu0 0
    %3928 = vmatprep.subr.bf16.mxu0 0
    %3929 = vmatpush1.bf16.msra.mxu0 0
    %3930 = vmatprep.subr.bf16.mxu0 0
    %3931 = vmatpush1.bf16.msra.mxu0 0
    %3932 = vmatprep.subr.bf16.mxu0 0
    %3933 = vmatpush1.bf16.msra.mxu0 0
    %3934 = vmatprep.subr.bf16.mxu0 0
    %3935 = vmatpush1.bf16.msra.mxu0 0
    %3936 = vmatprep.subr.bf16.mxu0 0
    %3937 = vmatpush1.bf16.msra.mxu0 0
    %3938 = vmatprep.subr.bf16.mxu0 0
    %3939 = vmatpush1.bf16.msra.mxu0 0
    %3940 = vmatprep.subr.bf16.mxu0 0
    %3941 = vmatpush1.bf16.msra.mxu0 0
    %3942 = vmatprep.subr.bf16.mxu0 0
    %3943 = vmatpush1.bf16.msra.mxu0 0
    %3944 = vmatprep.subr.bf16.mxu0 0
    %3945 = vmatpush1.bf16.msra.mxu0 0
    %3946 = vmatprep.mubr.bf16.mxu0 0
    %3947 = vmatmul.mubr.bf16.gmra.mrb[0].mxu0 %v3912
    %v3948 = vpop.f32.mrb[0].mxu0
    %v3949 = vadd.f32 1e-05, %v3948
    %v3950 = vpop.f32.mrb[0].mxu0
    %v3951 = vpop.f32.mrb[0].mxu0
    %v3952 = vadd.f32 1e-05, %v3951
    %v3953 = vpop.f32.mrb[0].mxu0
    %3954 = vdwg.mxu0
    %v3955 = vrsqrt.pop %v3949
    %v3956 = vrsqrt.pop %v3952
    %v3957 = vmul.f32 %v3906, %v3955
    %v3958 = vmul.f32 %v3907, %v3956
    %v3959 = vmul.f32 %v3957, %v600
    %v3960 = vmul.f32 %v3958, %v600
    %v3961 = vadd.f32 %v3959, %v608
    %v3962 = vadd.f32 %v3960, %v608
    %v3963 = vmul.f32 %v3961, %v3961
    %v3964 = vmul.f32 %v3962, %v3962
    %v3965 = vpack.c.bf16 %v3964, %v3963
    %v3966 = vld [vmem:[#allocation28] sm:$0xf]
    %v3967 = vld [vmem:[#allocation28 + $0x4] sm:$0xf]
    %v3968 = vld [vmem:[#allocation28 + $0x8] sm:$0xf]
    %v3969 = vld [vmem:[#allocation28 + $0xc] sm:$0xf]
    %v3970 = vld [vmem:[#allocation28 + $0x10] sm:$0xf]
    %v3971 = vld [vmem:[#allocation28 + $0x14] sm:$0xf]
    %v3972 = vld [vmem:[#allocation28 + $0x18] sm:$0xf]
    %v3973 = vld [vmem:[#allocation28 + $0x1c] sm:$0xf]
    %v3974 = vld [vmem:[#allocation30] sm:$0x1]
    %v3976 = vlaneseq
    %v3977 = vshrl.u32 %v3976, 7
    %v3978 = vsub.s32 0, %v3977
    %v3979 = vrot.slane %v3974, %v3978
    %v3989 = vunpack.c.l.b16 %v3966
    %v3990 = vunpack.c.l.b16 %v3967
    %v3991 = vunpack.c.l.b16 %v3968
    %v3992 = vunpack.c.l.b16 %v3969
    %v3993 = vunpack.c.l.b16 %v3970
    %v3994 = vunpack.c.l.b16 %v3971
    %v3995 = vunpack.c.l.b16 %v3972
    %v3996 = vunpack.c.l.b16 %v3973
    %v3997 = vpack.c.b16 %v3990, %v3989
    %v3998 = vpack.c.b16 %v3992, %v3991
    %v3999 = vpack.c.b16 %v3994, %v3993
    %v4000 = vpack.c.b16 %v3996, %v3995
    %v4006 = vsel %vm429, %v3965, 0
    %4008 = vmatprep.subr.bf16.mxu0 0
    %4009 = vmatpush1.bf16.msra.mxu0 %v3997
    %4010 = vmatprep.subr.bf16.mxu0 0
    %4011 = vmatpush1.bf16.msra.mxu0 %v3998
    %4012 = vmatprep.subr.bf16.mxu0 0
    %4013 = vmatpush1.bf16.msra.mxu0 %v3999
    %4014 = vmatprep.subr.bf16.mxu0 0
    %4015 = vmatpush1.bf16.msra.mxu0 %v4000
    %4016 = vmatprep.subr.bf16.mxu0 0
    %4017 = vmatpush1.bf16.msra.mxu0 0
    %4018 = vmatprep.subr.bf16.mxu0 0
    %4019 = vmatpush1.bf16.msra.mxu0 0
    %4020 = vmatprep.subr.bf16.mxu0 0
    %4021 = vmatpush1.bf16.msra.mxu0 0
    %4022 = vmatprep.subr.bf16.mxu0 0
    %4023 = vmatpush1.bf16.msra.mxu0 0
    %4024 = vmatprep.subr.bf16.mxu0 0
    %4025 = vmatpush1.bf16.msra.mxu0 0
    %4026 = vmatprep.subr.bf16.mxu0 0
    %4027 = vmatpush1.bf16.msra.mxu0 0
    %4028 = vmatprep.subr.bf16.mxu0 0
    %4029 = vmatpush1.bf16.msra.mxu0 0
    %4030 = vmatprep.subr.bf16.mxu0 0
    %4031 = vmatpush1.bf16.msra.mxu0 0
    %4032 = vmatprep.subr.bf16.mxu0 0
    %4033 = vmatpush1.bf16.msra.mxu0 0
    %4034 = vmatprep.subr.bf16.mxu0 0
    %4035 = vmatpush1.bf16.msra.mxu0 0
    %4036 = vmatprep.subr.bf16.mxu0 0
    %4037 = vmatpush1.bf16.msra.mxu0 0
    %4038 = vmatprep.subr.bf16.mxu0 0
    %4039 = vmatpush1.bf16.msra.mxu0 0
    %4040 = vmatprep.mubr.bf16.mxu0 0
    %4041 = vmatmul.mubr.bf16.gmra.mrb[0].mxu0 %v4006
    %v4042 = vpop.f32.mrb[0].mxu0
    %v4043 = vadd.f32 %v3979, %v4042
    %v4044 = vpop.f32.mrb[0].mxu0
    %v4045 = vpop.f32.mrb[0].mxu0
    %v4046 = vadd.f32 %v3979, %v4045
    %v4047 = vpop.f32.mrb[0].mxu0
    %4048 = vdwg.mxu0
    %v4049 = vmax.f32 %v4043, 0.0
    %v4050 = vmax.f32 %v4046, 0.0
    %v4051 = vadd.f32 %v4049, 1e-10
    %v4052 = vadd.f32 %v4050, 1e-10
    %4053 = vst [vmem:[%s59] sm:$0xff] %v4051
    %4054 = vst [vmem:[%s59 + $0x8] sm:$0xff] %v4052
    // Predicated region
    $region194: #{forward.1} parent=1 // pred_check
      _
    $region195: #{forward.1} parent=1 // pred_check_branch
      %4056 = sbr.rel (0) target = $region197
    $region196: #{forward.1} parent=1 // pred_region
      _
    $region197: #{forward.1} parent=1 // pred_fallthru
      _
    // Predicated region
    $region198: #{forward.1} parent=1 // pred_check
      _
    $region199: #{forward.1} parent=1 // pred_check_branch
      %4058 = sbr.rel (0) target = $region201
    $region200: #{forward.1} parent=1 // pred_region
      _
    $region201: #{forward.1} parent=1 // pred_fallthru
      _
    %4059 = vsyncpa [#allocation3], 1
    %4060 = vsyncpa [#allocation5], 1
    %4061 = vsyncpa [#allocation8], 1
    %4062 = vsyncpa [#allocation11], 1
    %4063 = vsyncpa [#allocation14], 1
    %4064 = vsyncpa [#allocation17], 1
    %4065 = vsyncpa [#allocation20], 1
    %4066 = vsyncpa [#allocation23], 1
    %4067 = vsyncpa [#allocation26], 1
    %4068 = vsyncpa [#allocation29], 1

</llo_original>
